<compile_context>
chip_gen: v7x
topology: tpu7x:2x2x1
jax: 0.10.0
libtpu: 0.0.40
codegen_flags: <defaults>
</compile_context>

<pallas_src>
import functools
import math

import jax
import jax.numpy as jnp
from jax.experimental import pallas as pl
from jax.experimental.pallas import tpu as pltpu


_VMEM_LIMIT = 32 * 1024 * 1024  # explicit scoped-VMEM budget, safe on v5e/v6e/v7x


def _round_up(x, m):
    return ((x + m - 1) // m) * m


def _pad_cin_for_k128(c, khw):
    """Smallest c' >= c such that khw * c' is a multiple of 128."""
    step = 128 // math.gcd(khw, 128)
    return _round_up(c, step)


def _pick_tk(kp):
    """Largest multiple-of-128 divisor of kp that is <= 512 (kp % 128 == 0)."""
    if kp <= 512:
        return kp
    for cand in range(512, 127, -128):
        if kp % cand == 0:
            return cand
    return 128


def _pick_tm(m):
    """Row tile. Returns (tm, mp); mp > m means the caller zero-pads rows."""
    for tm in (256, 128):
        if m >= tm and m % tm == 0:
            return tm, m
    if m <= 512:
        return m, m          # full-extent block: (8,128) constraint does not apply
    mp = _round_up(m, 128)
    return 128, mp


# ----------------------------------------------------------------------------
# GEMM (+ bias + optional ReLU) kernels for the conv layers (im2col GEMM).
# ----------------------------------------------------------------------------
def _gemm_kernel_single_k(x_ref, w_ref, b_ref, o_ref, *, relu):
    y = jnp.dot(x_ref[...], w_ref[...], preferred_element_type=jnp.float32)
    y = y + b_ref[...]
    if relu:
        y = jnp.maximum(y, 0.0)
    o_ref[...] = y.astype(o_ref.dtype)


def _gemm_kernel_multi_k(x_ref, w_ref, b_ref, o_ref, acc_ref, *, relu):
    @pl.when(pl.program_id(2) == 0)
    def _():
        acc_ref[...] = jnp.zeros_like(acc_ref)

    acc_ref[...] += jnp.dot(x_ref[...], w_ref[...],
                            preferred_element_type=jnp.float32)

    @pl.when(pl.program_id(2) == pl.num_programs(2) - 1)
    def _():
        y = acc_ref[...] + b_ref[...]
        if relu:
            y = jnp.maximum(y, 0.0)
        o_ref[...] = y.astype(o_ref.dtype)


def fused_matmul(x, w, bias, *, relu, out_dtype):
    """out = relu_opt(x @ w + bias).

    `w` is pre-padded/pre-cast bf16 (K % 128 == 0, N % 128 == 0); `bias` is the
    matching padded (1, N) f32 row. No activation padding/slicing for small M.
    """
    m, k = x.shape
    kw, np_ = w.shape
    assert k == kw, (k, kw)
    assert k % 128 == 0 and np_ % 128 == 0

    tm, mp = _pick_tm(m)
    tk = _pick_tk(k)
    tn = 256 if (np_ % 256 == 0) else 128
    xp = x if mp == m else jnp.pad(x, ((0, mp - m), (0, 0)))

    grid = (mp // tm, np_ // tn, k // tk)
    multi_k = grid[2] > 1

    in_specs = [
        pl.BlockSpec((tm, tk), lambda i, j, kk: (i, kk)),
        pl.BlockSpec((tk, tn), lambda i, j, kk: (kk, j)),
        pl.BlockSpec((1, tn), lambda i, j, kk: (0, j)),
    ]
    out_spec = pl.BlockSpec((tm, tn), lambda i, j, kk: (i, j))
    if multi_k:
        kernel = functools.partial(_gemm_kernel_multi_k, relu=relu)
        scratch = [pltpu.VMEM((tm, tn), jnp.float32)]
    else:
        kernel = functools.partial(_gemm_kernel_single_k, relu=relu)
        scratch = []

    out = pl.pallas_call(
        kernel,
        out_shape=jax.ShapeDtypeStruct((mp, np_), out_dtype),
        grid_spec=pltpu.PrefetchScalarGridSpec(
            num_scalar_prefetch=0,
            grid=grid,
            in_specs=in_specs,
            out_specs=out_spec,
            scratch_shapes=scratch,
        ),
        compiler_params=pltpu.CompilerParams(
            dimension_semantics=("parallel", "parallel", "arbitrary"),
            vmem_limit_bytes=_VMEM_LIMIT),
    )(xp, w, bias)

    return out if mp == m else out[:m]


# ----------------------------------------------------------------------------
# Fused fc1 -> fc2 -> (action_head ++ value_head) kernel: one launch, weights
# VMEM-resident, bf16 intermediates kept in-kernel, f32 head output.
# ----------------------------------------------------------------------------
def _mlp_head_kernel(x_ref, w1_ref, b1_ref, w2_ref, b2_ref, wh_ref, bh_ref,
                     o_ref):
    h = jnp.dot(x_ref[...], w1_ref[...], preferred_element_type=jnp.float32)
    h = jnp.maximum(h + b1_ref[...], 0.0).astype(jnp.bfloat16)        # fc1+ReLU
    h = jnp.dot(h, w2_ref[...], preferred_element_type=jnp.float32)
    h = jnp.maximum(h + b2_ref[...], 0.0).astype(jnp.bfloat16)        # fc2+ReLU
    o_ref[...] = (jnp.dot(h, wh_ref[...], preferred_element_type=jnp.float32)
                  + bh_ref[...])                                       # heads


def mlp_head(x, fc1, fc2, heads):
    m, k1 = x.shape
    w1, b1 = fc1["wmat"], fc1["shift"]
    w2, b2 = fc2["wmat"], fc2["shift"]
    wh = heads["wmat"]
    nh = wh.shape[1]
    bh = jnp.pad(heads["shift"], ((0, 0), (0, nh - heads["shift"].shape[1])))

    tm, mp = _pick_tm(m)
    xp = x if mp == m else jnp.pad(x, ((0, mp - m), (0, 0)))
    grid = (mp // tm,)

    out = pl.pallas_call(
        _mlp_head_kernel,
        out_shape=jax.ShapeDtypeStruct((mp, nh), jnp.float32),
        grid_spec=pltpu.PrefetchScalarGridSpec(
            num_scalar_prefetch=0,
            grid=grid,
            in_specs=[
                pl.BlockSpec((tm, k1), lambda i: (i, 0)),
                pl.BlockSpec(w1.shape, lambda i: (0, 0)),   # VMEM-resident
                pl.BlockSpec(b1.shape, lambda i: (0, 0)),
                pl.BlockSpec(w2.shape, lambda i: (0, 0)),
                pl.BlockSpec(b2.shape, lambda i: (0, 0)),
                pl.BlockSpec(wh.shape, lambda i: (0, 0)),
                pl.BlockSpec(bh.shape, lambda i: (0, 0)),
            ],
            out_specs=pl.BlockSpec((tm, nh), lambda i: (i, 0)),
        ),
        compiler_params=pltpu.CompilerParams(
            dimension_semantics=("parallel",),
            vmem_limit_bytes=_VMEM_LIMIT),
    )(xp, w1, b1, w2, b2, wh, bh)

    return out if mp == m else out[:m]


# ----------------------------------------------------------------------------
# Conv (NHWC im2col glue) + folded BN + ReLU, using the GEMM kernel.
# ----------------------------------------------------------------------------
def _im2col_nhwc(x, kh, kw, stride):
    # x: [N, H, W, C] -> patches [N*oh*ow, kh*kw*C], K ordered (ky, kx, c)
    n, h, w, c = x.shape
    oh = (h - kh) // stride + 1
    ow = (w - kw) // stride + 1
    cols = []
    for ky in range(kh):
        for kx in range(kw):
            cols.append(x[:, ky:ky + stride * oh:stride,
                             kx:kx + stride * ow:stride, :])   # [n, oh, ow, c]
    p = jnp.stack(cols, axis=3)                  # [n, oh, ow, kh*kw, c]
    return p.reshape(n * oh * ow, kh * kw * c), oh, ow


def conv_block(x, layer, *, kernel, stride):
    """x: NHWC bf16 -> NHWC bf16, conv + folded BN + ReLU (channels kept padded)."""
    n = x.shape[0]
    patches, oh, ow = _im2col_nhwc(x, kernel, kernel, stride)
    out = fused_matmul(patches, layer["wmat"], layer["shift"],
                       relu=True, out_dtype=jnp.bfloat16)       # [n*oh*ow, Cpad]
    cout = layer["wmat"].shape[1]                                # padded channels
    return out.reshape(n, oh, ow, cout)


# ----------------------------------------------------------------------------
# Parameter init (PyTorch layout: Xavier uniform weights, zero bias; BN fresh)
# ----------------------------------------------------------------------------
def _xavier_uniform(key, shape, fan_in, fan_out):
    bound = math.sqrt(6.0 / (fan_in + fan_out))
    return jax.random.uniform(key, shape, jnp.float32, -bound, bound)


def _conv_out_hw(h, w):
    h1, w1 = (h - 8) // 4 + 1, (w - 8) // 4 + 1
    h2, w2 = (h1 - 4) // 2 + 1, (w1 - 4) // 2 + 1
    h3, w3 = (h2 - 3) // 1 + 1, (w2 - 3) // 1 + 1
    return h3, w3


def init_params(key, input_shape, action_dim):
    c_in, h, w = input_shape
    keys = jax.random.split(key, 7)

    def conv_init(k, cout, cin, ksz):
        fan_in, fan_out = cin * ksz * ksz, cout * ksz * ksz
        return {"w": _xavier_uniform(k, (cout, cin, ksz, ksz), fan_in, fan_out),
                "b": jnp.zeros((cout,), jnp.float32)}

    def bn_init(c):
        return {"gamma": jnp.ones((c,), jnp.float32),
                "beta": jnp.zeros((c,), jnp.float32),
                "mean": jnp.zeros((c,), jnp.float32),
                "var": jnp.ones((c,), jnp.float32)}

    def fc_init(k, out_f, in_f):
        return {"w": _xavier_uniform(k, (out_f, in_f), in_f, out_f),
                "b": jnp.zeros((out_f,), jnp.float32)}

    h3, w3 = _conv_out_hw(h, w)
    conv_out = 128 * h3 * w3

    return {
        "conv1": conv_init(keys[0], 64, c_in, 8),
        "conv2": conv_init(keys[1], 128, 64, 4),
        "conv3": conv_init(keys[2], 128, 128, 3),
        "bn1": bn_init(64), "bn2": bn_init(128), "bn3": bn_init(128),
        "fc1": fc_init(keys[3], 1024, conv_out),
        "fc2": fc_init(keys[4], 512, 1024),
        "action_head": fc_init(keys[5], action_dim, 512),
        "value_head": fc_init(keys[6], 1, 512),
    }


# ----------------------------------------------------------------------------
# One-time weight preparation: fold BN (scale into weights, shift into bias),
# reorder to NHWC/im2col layout, pre-pad K/N to 128-multiples, cast to bf16,
# fuse the two heads.
# ----------------------------------------------------------------------------
def prepare_inference_params(params, input_shape):
    eps = 1e-5
    c_in, h, w_in = input_shape
    h3, w3 = _conv_out_hw(h, w_in)

    def conv_prep(conv, bn, cin_pad, cout_pad):
        w = conv["w"]                                   # [cout, cin, kh, kw]
        cout, cin, kh, kw = w.shape
        scale = bn["gamma"] / jnp.sqrt(bn["var"] + eps)
        shift = bn["beta"] + (conv["b"] - bn["mean"]) * scale
        w = w * scale[:, None, None, None]              # fold BN scale into weights
        wmat = jnp.transpose(w, (2, 3, 1, 0))           # [kh, kw, cin, cout]
        wmat = jnp.pad(wmat, ((0, 0), (0, 0), (0, cin_pad - cin), (0, 0)))
        wmat = wmat.reshape(kh * kw * cin_pad, cout)    # rows ordered (ky, kx, c)
        wmat = jnp.pad(wmat, ((0, 0), (0, cout_pad - cout)))
        shift = jnp.pad(shift, (0, cout_pad - cout)).reshape(1, -1)
        return {"wmat": wmat.astype(jnp.bfloat16),
                "shift": shift.astype(jnp.float32)}

    # conv1's padded in/out channel counts flow through the rest of the net.
    c1_in = _pad_cin_for_k128(c_in, 8 * 8)       # e.g. 3 -> 4  (K = 64*4 = 256)
    c1_out = _round_up(64, 128)                  # 64 -> 128, carried (never sliced)
    conv1 = conv_prep(params["conv1"], params["bn1"], c1_in, c1_out)
    conv2 = conv_prep(params["conv2"], params["bn2"], c1_out, 128)
    conv3 = conv_prep(params["conv3"], params["bn3"], 128, 128)

    def fc_prep(w, b):
        return {"wmat": w.T.astype(jnp.bfloat16),
                "shift": b.astype(jnp.float32).reshape(1, -1)}

    # fc1: reorder columns from PyTorch (C,H,W) flatten to our (H,W,C) flatten.
    w_fc1 = params["fc1"]["w"].reshape(-1, 128, h3, w3)
    w_fc1 = jnp.transpose(w_fc1, (0, 2, 3, 1)).reshape(w_fc1.shape[0], -1)
    fc1 = fc_prep(w_fc1, params["fc1"]["b"])
    fc2 = fc_prep(params["fc2"]["w"], params["fc2"]["b"])

    # Fuse action_head and value_head into one [512, action_dim+1] GEMM,
    # padding the output columns to 128 for a lane-dense store.
    hw = jnp.concatenate([params["action_head"]["w"], params["value_head"]["w"]],
                         axis=0)                                  # [a+1, 512]
    hb = jnp.concatenate([params["action_head"]["b"], params["value_head"]["b"]],
                         axis=0)                                  # [a+1]
    nh = _round_up(hw.shape[0], 128)
    heads = {
        "wmat": jnp.pad(hw.T, ((0, 0), (0, nh - hw.shape[0]))).astype(jnp.bfloat16),
        # shift kept unpadded so its static length encodes action_dim + 1.
        "shift": hb.astype(jnp.float32).reshape(1, -1),
    }

    return {"conv1": conv1, "conv2": conv2, "conv3": conv3,
            "fc1": fc1, "fc2": fc2, "heads": heads}


# ----------------------------------------------------------------------------
# Forward pass (mirrors AdvancedCNNModel.forward, inference-mode BN)
# ----------------------------------------------------------------------------
def forward(params, memory_state, obses):
    del memory_state  # unused by the PyTorch forward as well
    x = obses
    # NOTE: mirrors the PyTorch layout heuristic exactly (it can misfire for
    # NCHW inputs whose width happens to be 3 or 6).
    if x.ndim == 4 and x.shape[3] in (3, 6):
        x = jnp.transpose(x, (0, 3, 1, 2))       # NHWC -> NCHW (PyTorch branch)
    x = jnp.transpose(x, (0, 2, 3, 1))           # internal channels-last layout
    x = x.astype(jnp.bfloat16)

    # Pad input channels once so conv1's im2col K is already a 128-multiple.
    c1_in = _pad_cin_for_k128(x.shape[3], 8 * 8)
    if c1_in != x.shape[3]:
        x = jnp.pad(x, ((0, 0), (0, 0), (0, 0), (0, c1_in - x.shape[3])))

    x = conv_block(x, params["conv1"], kernel=8, stride=4)
    x = conv_block(x, params["conv2"], kernel=4, stride=2)
    x = conv_block(x, params["conv3"], kernel=3, stride=1)

    n = x.shape[0]
    x = x.reshape(n, -1)                         # (H,W,C) flatten; fc1 pre-permuted

    heads = mlp_head(x, params["fc1"], params["fc2"], params["heads"])
    action_dim = params["heads"]["shift"].shape[1] - 1
    return {"actor": heads[:, :action_dim],
            "critic": heads[:, action_dim:action_dim + 1]}


if __name__ == "__main__":
    key = jax.random.PRNGKey(0)
    k_param, k_obs, k_mem = jax.random.split(key, 3)

    input_shape = (3, 36, 36)   # small spatial size valid for 8/4, 4/2, 3/1 convs
    action_dim = 6
    batch = 2

    params = init_params(k_param, input_shape, action_dim)
    prepared = prepare_inference_params(params, input_shape)

    obses = jax.random.uniform(k_obs, (batch,) + input_shape, jnp.float32)  # NCHW
    memory_state = jax.random.uniform(k_mem, (batch, 8), jnp.float32)

    fwd = jax.jit(forward)
    out = fwd(prepared, memory_state, obses)
    jax.block_until_ready(out)

    assert out["actor"].shape == (batch, action_dim)
    assert out["critic"].shape == (batch, 1)
    assert bool(jnp.isfinite(out["actor"]).all()) and bool(jnp.isfinite(out["critic"]).all())
    print("KERNEL_OK")
</pallas_src>

<mosaic_0001>
module attributes {stable_mosaic.version = 11 : i64} {
  func.func @_gemm_kernel_single_k(%arg0: i32, %arg1: i32, %arg2: i32, %arg3: memref<128x256xbf16, #tpu.memory_space<vmem>>, %arg4: memref<256x128xbf16, #tpu.memory_space<vmem>>, %arg5: memref<1x128xf32, #tpu.memory_space<vmem>>, %arg6: memref<128x128xbf16, #tpu.memory_space<vmem>>) attributes {dimension_semantics = [#tpu.dimension_semantics<parallel>, #tpu.dimension_semantics<parallel>, #tpu.dimension_semantics<arbitrary>], iteration_bounds = array<i64: 1, 1, 1>, scalar_prefetch = 0 : i64, scratch_operands = 0 : i64, tpu.core_type = #tpu.core_type<tc>, window_params = [{transform_indices = @transform_0, window_bounds = array<i64: 128, 256>}, {transform_indices = @transform_1, window_bounds = array<i64: 256, 128>}, {transform_indices = @transform_2, window_bounds = array<i64: 1, 128>}, {transform_indices = @transform_3, window_bounds = array<i64: 128, 128>}]} {
    %c0 = arith.constant 0 : index
    %c0_0 = arith.constant 0 : index
    %0 = vector.load %arg3[%c0, %c0_0] : memref<128x256xbf16, #tpu.memory_space<vmem>>, vector<128x256xbf16>
    %c0_1 = arith.constant 0 : index
    %c0_2 = arith.constant 0 : index
    %1 = vector.load %arg4[%c0_1, %c0_2] : memref<256x128xbf16, #tpu.memory_space<vmem>>, vector<256x128xbf16>
    %cst = arith.constant dense<0.000000e+00> : vector<128x128xf32>
    %2 = tpu.matmul %0, %1, %cst {dimension_numbers = #tpu.dot_dimension_numbers<[1], [0], [0], [1], [0, 0, 1, 1], [], []>} : vector<128x256xbf16>, vector<256x128xbf16>, vector<128x128xf32> -> vector<128x128xf32>
    %c0_3 = arith.constant 0 : index
    %c0_4 = arith.constant 0 : index
    %3 = vector.load %arg5[%c0_3, %c0_4] : memref<1x128xf32, #tpu.memory_space<vmem>>, vector<1x128xf32>
    %4 = vector.broadcast %3 : vector<1x128xf32> to vector<128x128xf32>
    %5 = arith.addf %2, %4 : vector<128x128xf32>
    %cst_5 = arith.constant 0.000000e+00 : f32
    %6 = vector.broadcast %cst_5 : f32 to vector<128x128xf32>
    %7 = arith.maximumf %5, %6 : vector<128x128xf32>
    %8 = arith.truncf %7 : vector<128x128xf32> to vector<128x128xbf16>
    %c0_6 = arith.constant 0 : index
    %c0_7 = arith.constant 0 : index
    %9 = vector.load %arg6[%c0_6, %c0_7] : memref<128x128xbf16, #tpu.memory_space<vmem>>, vector<128x128xbf16>
    tpu.vector_store %arg6[%c0_6, %c0_7], %8 {strides = array<i32>} : memref<128x128xbf16, #tpu.memory_space<vmem>>, vector<128x128xbf16>,
    return
  }
  func.func @transform_0(%arg0: i32, %arg1: i32, %arg2: i32) -> (i32, i32) {
    %c0_i32 = arith.constant 0 : i32
    return %arg0, %arg2 : i32, i32
  }
  func.func @transform_1(%arg0: i32, %arg1: i32, %arg2: i32) -> (i32, i32) {
    %c0_i32 = arith.constant 0 : i32
    return %arg2, %arg1 : i32, i32
  }
  func.func @transform_2(%arg0: i32, %arg1: i32, %arg2: i32) -> (i32, i32) {
    %c0_i32 = arith.constant 0 : i32
    %c0_i32_0 = arith.constant 0 : i32
    return %c0_i32, %arg1 : i32, i32
  }
  func.func @transform_3(%arg0: i32, %arg1: i32, %arg2: i32) -> (i32, i32) {
    %c0_i32 = arith.constant 0 : i32
    return %arg0, %arg1 : i32, i32
  }
}

module attributes {stable_mosaic.version = 11 : i64} {
  func.func @_gemm_kernel_multi_k(%arg0: i32, %arg1: i32, %arg2: i32, %arg3: memref<18x512xbf16, #tpu.memory_space<vmem>>, %arg4: memref<512x128xbf16, #tpu.memory_space<vmem>>, %arg5: memref<1x128xf32, #tpu.memory_space<vmem>>, %arg6: memref<18x128xbf16, #tpu.memory_space<vmem>>, %arg7: memref<18x128xf32, #tpu.memory_space<vmem>>) attributes {dimension_semantics = [#tpu.dimension_semantics<parallel>, #tpu.dimension_semantics<parallel>, #tpu.dimension_semantics<arbitrary>], iteration_bounds = array<i64: 1, 1, 4>, scalar_prefetch = 0 : i64, scratch_operands = 1 : i64, tpu.core_type = #tpu.core_type<tc>, window_params = [{transform_indices = @transform_0, window_bounds = array<i64: 18, 512>}, {transform_indices = @transform_1, window_bounds = array<i64: 512, 128>}, {transform_indices = @transform_2, window_bounds = array<i64: 1, 128>}, {transform_indices = @transform_3, window_bounds = array<i64: 18, 128>}]} {
    %c0_i32 = arith.constant 0 : i32
    %0 = arith.cmpi eq, %arg2, %c0_i32 : i32
    %1 = arith.extui %0 : i1 to i32
    %c0_i32_0 = arith.constant 0 : i32
    %2 = arith.cmpi ne, %1, %c0_i32_0 : i32
    scf.if %2 {
      %cst_9 = arith.constant 0.000000e+00 : f32
      %12 = vector.broadcast %cst_9 : f32 to vector<18x128xf32>
      %c0_10 = arith.constant 0 : index
      %c0_11 = arith.constant 0 : index
      %13 = vector.load %arg7[%c0_10, %c0_11] : memref<18x128xf32, #tpu.memory_space<vmem>>, vector<18x128xf32>
      tpu.vector_store %arg7[%c0_10, %c0_11], %12 {strides = array<i32>} : memref<18x128xf32, #tpu.memory_space<vmem>>, vector<18x128xf32>,
    } else {
    }
    %c0 = arith.constant 0 : index
    %c0_1 = arith.constant 0 : index
    %3 = vector.load %arg7[%c0, %c0_1] : memref<18x128xf32, #tpu.memory_space<vmem>>, vector<18x128xf32>
    %c0_2 = arith.constant 0 : index
    %c0_3 = arith.constant 0 : index
    %4 = vector.load %arg3[%c0_2, %c0_3] : memref<18x512xbf16, #tpu.memory_space<vmem>>, vector<18x512xbf16>
    %c0_4 = arith.constant 0 : index
    %c0_5 = arith.constant 0 : index
    %5 = vector.load %arg4[%c0_4, %c0_5] : memref<512x128xbf16, #tpu.memory_space<vmem>>, vector<512x128xbf16>
    %cst = arith.constant dense<0.000000e+00> : vector<18x128xf32>
    %6 = tpu.matmul %4, %5, %cst {dimension_numbers = #tpu.dot_dimension_numbers<[1], [0], [0], [1], [0, 0, 1, 1], [], []>} : vector<18x512xbf16>, vector<512x128xbf16>, vector<18x128xf32> -> vector<18x128xf32>
    %7 = arith.addf %3, %6 : vector<18x128xf32>
    %c0_6 = arith.constant 0 : index
    %c0_7 = arith.constant 0 : index
    %8 = vector.load %arg7[%c0_6, %c0_7] : memref<18x128xf32, #tpu.memory_space<vmem>>, vector<18x128xf32>
    tpu.vector_store %arg7[%c0_6, %c0_7], %7 {strides = array<i32>} : memref<18x128xf32, #tpu.memory_space<vmem>>, vector<18x128xf32>,
    %c3_i32 = arith.constant 3 : i32
    %9 = arith.cmpi eq, %arg2, %c3_i32 : i32
    %10 = arith.extui %9 : i1 to i32
    %c0_i32_8 = arith.constant 0 : i32
    %11 = arith.cmpi ne, %10, %c0_i32_8 : i32
    scf.if %11 {
      %c0_9 = arith.constant 0 : index
      %c0_10 = arith.constant 0 : index
      %12 = vector.load %arg7[%c0_9, %c0_10] : memref<18x128xf32, #tpu.memory_space<vmem>>, vector<18x128xf32>
      %c0_11 = arith.constant 0 : index
      %c0_12 = arith.constant 0 : index
      %13 = vector.load %arg5[%c0_11, %c0_12] : memref<1x128xf32, #tpu.memory_space<vmem>>, vector<1x128xf32>
      %14 = vector.broadcast %13 : vector<1x128xf32> to vector<18x128xf32>
      %15 = arith.addf %12, %14 : vector<18x128xf32>
      %cst_13 = arith.constant 0.000000e+00 : f32
      %16 = vector.broadcast %cst_13 : f32 to vector<18x128xf32>
      %17 = arith.maximumf %15, %16 : vector<18x128xf32>
      %18 = arith.truncf %17 : vector<18x128xf32> to vector<18x128xbf16>
      %c0_14 = arith.constant 0 : index
      %c0_15 = arith.constant 0 : index
      %19 = vector.load %arg6[%c0_14, %c0_15] : memref<18x128xbf16, #tpu.memory_space<vmem>>, vector<18x128xbf16>
      tpu.vector_store %arg6[%c0_14, %c0_15], %18 {strides = array<i32>} : memref<18x128xbf16, #tpu.memory_space<vmem>>, vector<18x128xbf16>,
    } else {
    }
    return
  }
  func.func @transform_0(%arg0: i32, %arg1: i32, %arg2: i32) -> (i32, i32) {
    %c0_i32 = arith.constant 0 : i32
    return %arg0, %arg2 : i32, i32
  }
  func.func @transform_1(%arg0: i32, %arg1: i32, %arg2: i32) -> (i32, i32) {
    %c0_i32 = arith.constant 0 : i32
    return %arg2, %arg1 : i32, i32
  }
  func.func @transform_2(%arg0: i32, %arg1: i32, %arg2: i32) -> (i32, i32) {
    %c0_i32 = arith.constant 0 : i32
    %c0_i32_0 = arith.constant 0 : i32
    return %c0_i32, %arg1 : i32, i32
  }
  func.func @transform_3(%arg0: i32, %arg1: i32, %arg2: i32) -> (i32, i32) {
    %c0_i32 = arith.constant 0 : i32
    return %arg0, %arg1 : i32, i32
  }
}

module attributes {stable_mosaic.version = 11 : i64} {
  func.func @_gemm_kernel_multi_k(%arg0: i32, %arg1: i32, %arg2: i32, %arg3: memref<2x384xbf16, #tpu.memory_space<vmem>>, %arg4: memref<384x128xbf16, #tpu.memory_space<vmem>>, %arg5: memref<1x128xf32, #tpu.memory_space<vmem>>, %arg6: memref<2x128xbf16, #tpu.memory_space<vmem>>, %arg7: memref<2x128xf32, #tpu.memory_space<vmem>>) attributes {dimension_semantics = [#tpu.dimension_semantics<parallel>, #tpu.dimension_semantics<parallel>, #tpu.dimension_semantics<arbitrary>], iteration_bounds = array<i64: 1, 1, 3>, scalar_prefetch = 0 : i64, scratch_operands = 1 : i64, tpu.core_type = #tpu.core_type<tc>, window_params = [{transform_indices = @transform_0, window_bounds = array<i64: 2, 384>}, {transform_indices = @transform_1, window_bounds = array<i64: 384, 128>}, {transform_indices = @transform_2, window_bounds = array<i64: 1, 128>}, {transform_indices = @transform_3, window_bounds = array<i64: 2, 128>}]} {
    %c0_i32 = arith.constant 0 : i32
    %0 = arith.cmpi eq, %arg2, %c0_i32 : i32
    %1 = arith.extui %0 : i1 to i32
    %c0_i32_0 = arith.constant 0 : i32
    %2 = arith.cmpi ne, %1, %c0_i32_0 : i32
    scf.if %2 {
      %cst_9 = arith.constant 0.000000e+00 : f32
      %12 = vector.broadcast %cst_9 : f32 to vector<2x128xf32>
      %c0_10 = arith.constant 0 : index
      %c0_11 = arith.constant 0 : index
      %13 = vector.load %arg7[%c0_10, %c0_11] : memref<2x128xf32, #tpu.memory_space<vmem>>, vector<2x128xf32>
      tpu.vector_store %arg7[%c0_10, %c0_11], %12 {strides = array<i32>} : memref<2x128xf32, #tpu.memory_space<vmem>>, vector<2x128xf32>,
    } else {
    }
    %c0 = arith.constant 0 : index
    %c0_1 = arith.constant 0 : index
    %3 = vector.load %arg7[%c0, %c0_1] : memref<2x128xf32, #tpu.memory_space<vmem>>, vector<2x128xf32>
    %c0_2 = arith.constant 0 : index
    %c0_3 = arith.constant 0 : index
    %4 = vector.load %arg3[%c0_2, %c0_3] : memref<2x384xbf16, #tpu.memory_space<vmem>>, vector<2x384xbf16>
    %c0_4 = arith.constant 0 : index
    %c0_5 = arith.constant 0 : index
    %5 = vector.load %arg4[%c0_4, %c0_5] : memref<384x128xbf16, #tpu.memory_space<vmem>>, vector<384x128xbf16>
    %cst = arith.constant dense<0.000000e+00> : vector<2x128xf32>
    %6 = tpu.matmul %4, %5, %cst {dimension_numbers = #tpu.dot_dimension_numbers<[1], [0], [0], [1], [0, 0, 1, 1], [], []>} : vector<2x384xbf16>, vector<384x128xbf16>, vector<2x128xf32> -> vector<2x128xf32>
    %7 = arith.addf %3, %6 : vector<2x128xf32>
    %c0_6 = arith.constant 0 : index
    %c0_7 = arith.constant 0 : index
    %8 = vector.load %arg7[%c0_6, %c0_7] : memref<2x128xf32, #tpu.memory_space<vmem>>, vector<2x128xf32>
    tpu.vector_store %arg7[%c0_6, %c0_7], %7 {strides = array<i32>} : memref<2x128xf32, #tpu.memory_space<vmem>>, vector<2x128xf32>,
    %c2_i32 = arith.constant 2 : i32
    %9 = arith.cmpi eq, %arg2, %c2_i32 : i32
    %10 = arith.extui %9 : i1 to i32
    %c0_i32_8 = arith.constant 0 : i32
    %11 = arith.cmpi ne, %10, %c0_i32_8 : i32
    scf.if %11 {
      %c0_9 = arith.constant 0 : index
      %c0_10 = arith.constant 0 : index
      %12 = vector.load %arg7[%c0_9, %c0_10] : memref<2x128xf32, #tpu.memory_space<vmem>>, vector<2x128xf32>
      %c0_11 = arith.constant 0 : index
      %c0_12 = arith.constant 0 : index
      %13 = vector.load %arg5[%c0_11, %c0_12] : memref<1x128xf32, #tpu.memory_space<vmem>>, vector<1x128xf32>
      %14 = vector.broadcast %13 : vector<1x128xf32> to vector<2x128xf32>
      %15 = arith.addf %12, %14 : vector<2x128xf32>
      %cst_13 = arith.constant 0.000000e+00 : f32
      %16 = vector.broadcast %cst_13 : f32 to vector<2x128xf32>
      %17 = arith.maximumf %15, %16 : vector<2x128xf32>
      %18 = arith.truncf %17 : vector<2x128xf32> to vector<2x128xbf16>
      %c0_14 = arith.constant 0 : index
      %c0_15 = arith.constant 0 : index
      %19 = vector.load %arg6[%c0_14, %c0_15] : memref<2x128xbf16, #tpu.memory_space<vmem>>, vector<2x128xbf16>
      tpu.vector_store %arg6[%c0_14, %c0_15], %18 {strides = array<i32>} : memref<2x128xbf16, #tpu.memory_space<vmem>>, vector<2x128xbf16>,
    } else {
    }
    return
  }
  func.func @transform_0(%arg0: i32, %arg1: i32, %arg2: i32) -> (i32, i32) {
    %c0_i32 = arith.constant 0 : i32
    return %arg0, %arg2 : i32, i32
  }
  func.func @transform_1(%arg0: i32, %arg1: i32, %arg2: i32) -> (i32, i32) {
    %c0_i32 = arith.constant 0 : i32
    return %arg2, %arg1 : i32, i32
  }
  func.func @transform_2(%arg0: i32, %arg1: i32, %arg2: i32) -> (i32, i32) {
    %c0_i32 = arith.constant 0 : i32
    %c0_i32_0 = arith.constant 0 : i32
    return %c0_i32, %arg1 : i32, i32
  }
  func.func @transform_3(%arg0: i32, %arg1: i32, %arg2: i32) -> (i32, i32) {
    %c0_i32 = arith.constant 0 : i32
    return %arg0, %arg1 : i32, i32
  }
}

module attributes {stable_mosaic.version = 11 : i64} {
  func.func @_mlp_head_kernel(%arg0: i32, %arg1: memref<2x128xbf16, #tpu.memory_space<vmem>>, %arg2: memref<128x1024xbf16, #tpu.memory_space<vmem>>, %arg3: memref<1x1024xf32, #tpu.memory_space<vmem>>, %arg4: memref<1024x512xbf16, #tpu.memory_space<vmem>>, %arg5: memref<1x512xf32, #tpu.memory_space<vmem>>, %arg6: memref<512x128xbf16, #tpu.memory_space<vmem>>, %arg7: memref<1x128xf32, #tpu.memory_space<vmem>>, %arg8: memref<2x128xf32, #tpu.memory_space<vmem>>) attributes {dimension_semantics = [#tpu.dimension_semantics<parallel>], iteration_bounds = array<i64: 1>, scalar_prefetch = 0 : i64, scratch_operands = 0 : i64, tpu.core_type = #tpu.core_type<tc>, window_params = [{transform_indices = @transform_0, window_bounds = array<i64: 2, 128>}, {pipeline_mode = #tpu.pipeline_mode<synchronous>, transform_indices = @transform_1, window_bounds = array<i64: 128, 1024>}, {pipeline_mode = #tpu.pipeline_mode<synchronous>, transform_indices = @transform_2, window_bounds = array<i64: 1, 1024>}, {pipeline_mode = #tpu.pipeline_mode<synchronous>, transform_indices = @transform_3, window_bounds = array<i64: 1024, 512>}, {pipeline_mode = #tpu.pipeline_mode<synchronous>, transform_indices = @transform_4, window_bounds = array<i64: 1, 512>}, {pipeline_mode = #tpu.pipeline_mode<synchronous>, transform_indices = @transform_5, window_bounds = array<i64: 512, 128>}, {pipeline_mode = #tpu.pipeline_mode<synchronous>, transform_indices = @transform_6, window_bounds = array<i64: 1, 128>}, {transform_indices = @transform_7, window_bounds = array<i64: 2, 128>}]} {
    %c0 = arith.constant 0 : index
    %c0_0 = arith.constant 0 : index
    %0 = vector.load %arg1[%c0, %c0_0] : memref<2x128xbf16, #tpu.memory_space<vmem>>, vector<2x128xbf16>
    %c0_1 = arith.constant 0 : index
    %c0_2 = arith.constant 0 : index
    %1 = vector.load %arg2[%c0_1, %c0_2] : memref<128x1024xbf16, #tpu.memory_space<vmem>>, vector<128x1024xbf16>
    %cst = arith.constant dense<0.000000e+00> : vector<2x1024xf32>
    %2 = tpu.matmul %0, %1, %cst {dimension_numbers = #tpu.dot_dimension_numbers<[1], [0], [0], [1], [0, 0, 1, 1], [], []>} : vector<2x128xbf16>, vector<128x1024xbf16>, vector<2x1024xf32> -> vector<2x1024xf32>
    %c0_3 = arith.constant 0 : index
    %c0_4 = arith.constant 0 : index
    %3 = vector.load %arg3[%c0_3, %c0_4] : memref<1x1024xf32, #tpu.memory_space<vmem>>, vector<1x1024xf32>
    %4 = vector.broadcast %3 : vector<1x1024xf32> to vector<2x1024xf32>
    %5 = arith.addf %2, %4 : vector<2x1024xf32>
    %cst_5 = arith.constant 0.000000e+00 : f32
    %6 = vector.broadcast %cst_5 : f32 to vector<2x1024xf32>
    %7 = arith.maximumf %5, %6 : vector<2x1024xf32>
    %8 = arith.truncf %7 : vector<2x1024xf32> to vector<2x1024xbf16>
    %c0_6 = arith.constant 0 : index
    %c0_7 = arith.constant 0 : index
    %9 = vector.load %arg4[%c0_6, %c0_7] : memref<1024x512xbf16, #tpu.memory_space<vmem>>, vector<1024x512xbf16>
    %cst_8 = arith.constant dense<0.000000e+00> : vector<2x512xf32>
    %10 = tpu.matmul %8, %9, %cst_8 {dimension_numbers = #tpu.dot_dimension_numbers<[1], [0], [0], [1], [0, 0, 1, 1], [], []>} : vector<2x1024xbf16>, vector<1024x512xbf16>, vector<2x512xf32> -> vector<2x512xf32>
    %c0_9 = arith.constant 0 : index
    %c0_10 = arith.constant 0 : index
    %11 = vector.load %arg5[%c0_9, %c0_10] : memref<1x512xf32, #tpu.memory_space<vmem>>, vector<1x512xf32>
    %12 = vector.broadcast %11 : vector<1x512xf32> to vector<2x512xf32>
    %13 = arith.addf %10, %12 : vector<2x512xf32>
    %cst_11 = arith.constant 0.000000e+00 : f32
    %14 = vector.broadcast %cst_11 : f32 to vector<2x512xf32>
    %15 = arith.maximumf %13, %14 : vector<2x512xf32>
    %16 = arith.truncf %15 : vector<2x512xf32> to vector<2x512xbf16>
    %c0_12 = arith.constant 0 : index
    %c0_13 = arith.constant 0 : index
    %17 = vector.load %arg6[%c0_12, %c0_13] : memref<512x128xbf16, #tpu.memory_space<vmem>>, vector<512x128xbf16>
    %cst_14 = arith.constant dense<0.000000e+00> : vector<2x128xf32>
    %18 = tpu.matmul %16, %17, %cst_14 {dimension_numbers = #tpu.dot_dimension_numbers<[1], [0], [0], [1], [0, 0, 1, 1], [], []>} : vector<2x512xbf16>, vector<512x128xbf16>, vector<2x128xf32> -> vector<2x128xf32>
    %c0_15 = arith.constant 0 : index
    %c0_16 = arith.constant 0 : index
    %19 = vector.load %arg7[%c0_15, %c0_16] : memref<1x128xf32, #tpu.memory_space<vmem>>, vector<1x128xf32>
    %20 = vector.broadcast %19 : vector<1x128xf32> to vector<2x128xf32>
    %21 = arith.addf %18, %20 : vector<2x128xf32>
    %c0_17 = arith.constant 0 : index
    %c0_18 = arith.constant 0 : index
    %22 = vector.load %arg8[%c0_17, %c0_18] : memref<2x128xf32, #tpu.memory_space<vmem>>, vector<2x128xf32>
    tpu.vector_store %arg8[%c0_17, %c0_18], %21 {strides = array<i32>} : memref<2x128xf32, #tpu.memory_space<vmem>>, vector<2x128xf32>,
    return
  }
  func.func @transform_0(%arg0: i32) -> (i32, i32) {
    %c0_i32 = arith.constant 0 : i32
    %c0_i32_0 = arith.constant 0 : i32
    return %arg0, %c0_i32 : i32, i32
  }
  func.func @transform_1(%arg0: i32) -> (i32, i32) {
    %c0_i32 = arith.constant 0 : i32
    %c0_i32_0 = arith.constant 0 : i32
    %c0_i32_1 = arith.constant 0 : i32
    return %c0_i32, %c0_i32_0 : i32, i32
  }
  func.func @transform_2(%arg0: i32) -> (i32, i32) {
    %c0_i32 = arith.constant 0 : i32
    %c0_i32_0 = arith.constant 0 : i32
    %c0_i32_1 = arith.constant 0 : i32
    return %c0_i32, %c0_i32_0 : i32, i32
  }
  func.func @transform_3(%arg0: i32) -> (i32, i32) {
    %c0_i32 = arith.constant 0 : i32
    %c0_i32_0 = arith.constant 0 : i32
    %c0_i32_1 = arith.constant 0 : i32
    return %c0_i32, %c0_i32_0 : i32, i32
  }
  func.func @transform_4(%arg0: i32) -> (i32, i32) {
    %c0_i32 = arith.constant 0 : i32
    %c0_i32_0 = arith.constant 0 : i32
    %c0_i32_1 = arith.constant 0 : i32
    return %c0_i32, %c0_i32_0 : i32, i32
  }
  func.func @transform_5(%arg0: i32) -> (i32, i32) {
    %c0_i32 = arith.constant 0 : i32
    %c0_i32_0 = arith.constant 0 : i32
    %c0_i32_1 = arith.constant 0 : i32
    return %c0_i32, %c0_i32_0 : i32, i32
  }
  func.func @transform_6(%arg0: i32) -> (i32, i32) {
    %c0_i32 = arith.constant 0 : i32
    %c0_i32_0 = arith.constant 0 : i32
    %c0_i32_1 = arith.constant 0 : i32
    return %c0_i32, %c0_i32_0 : i32, i32
  }
  func.func @transform_7(%arg0: i32) -> (i32, i32) {
    %c0_i32 = arith.constant 0 : i32
    %c0_i32_0 = arith.constant 0 : i32
    return %arg0, %c0_i32 : i32, i32
  }
}

</mosaic_0001>

<llo_original>
// kernel: forward.4
$region0: #{forward.4}
  #allocation0 [shape = 'u32[]', space=smem, size = 0x4, offset = 0x4, fixed_abs, tag = 'smem constant byte address 0x4 - core index']
  #allocation1 [shape = 'u32[144,128]{1,0:T(1,128)}', space=vmem, size = 0x12000, scoped, tag = 'internal scratch']
  %s0 = inlined_call_operand.vmem [shape: bf16[128,256], index: 0, kind: input, shape index: {}]
  %s1 = inlined_call_operand.vmem [shape: bf16[256,128], index: 1, kind: input, shape index: {}]
  %s2 = inlined_call_operand.vmem [shape: f32[1,128], index: 2, kind: input, shape index: {}]
  %s3 = inlined_call_operand.vmem [shape: bf16[128,128], index: 3, kind: output, shape index: {}]
  %s4 = sld [smem:[#allocation0]]
  $region22: #{forward.4} parent=0
    _
  %s6 = ssub.s32 1, %s4
  %s7 = scalar_select 0, %s6, %s4
  // Predicated region
  $region2: #{forward.4} parent=0 // pred_check
    _
  $region3: #{forward.4} parent=0 // pred_check_branch
    %9 = sbr.rel (0) target = $region5
  $region4: #{forward.4} parent=0 // pred_region
    _
  $region5: #{forward.4} parent=0 // pred_fallthru
    _
  // Predicated region
  $region6: #{forward.4} parent=0 // pred_check
    _
  $region7: #{forward.4} parent=0 // pred_check_branch
    %11 = sbr.rel (0) target = $region9
  $region8: #{forward.4} parent=0 // pred_region
    _
  $region9: #{forward.4} parent=0 // pred_fallthru
    _
  // Predicated region
  $region10: #{forward.4} parent=0 // pred_check
    _
  $region11: #{forward.4} parent=0 // pred_check_branch
    %13 = sbr.rel (0) target = $region13
  $region12: #{forward.4} parent=0 // pred_region
    _
  $region13: #{forward.4} parent=0 // pred_fallthru
    _
  %v15 = vld [vmem:[%s0] sm:$0xff]
  %v16 = vld [vmem:[%s0 + $0x8] sm:$0xff]
  %v17 = vld [vmem:[%s0 + $0x10] sm:$0xff]
  %v18 = vld [vmem:[%s0 + $0x18] sm:$0xff]
  %v19 = vld [vmem:[%s0 + $0x20] sm:$0xff]
  %v20 = vld [vmem:[%s0 + $0x28] sm:$0xff]
  %v21 = vld [vmem:[%s0 + $0x30] sm:$0xff]
  %v22 = vld [vmem:[%s0 + $0x38] sm:$0xff]
  %v23 = vld [vmem:[%s0 + $0x40] sm:$0xff]
  %v24 = vld [vmem:[%s0 + $0x48] sm:$0xff]
  %v25 = vld [vmem:[%s0 + $0x50] sm:$0xff]
  %v26 = vld [vmem:[%s0 + $0x58] sm:$0xff]
  %v27 = vld [vmem:[%s0 + $0x60] sm:$0xff]
  %v28 = vld [vmem:[%s0 + $0x68] sm:$0xff]
  %v29 = vld [vmem:[%s0 + $0x70] sm:$0xff]
  %v30 = vld [vmem:[%s0 + $0x78] sm:$0xff]
  %v31 = vld [vmem:[%s1] sm:$0xf]
  %v32 = vld [vmem:[%s1 + $0x4] sm:$0xf]
  %v33 = vld [vmem:[%s1 + $0x8] sm:$0xf]
  %v34 = vld [vmem:[%s1 + $0xc] sm:$0xf]
  %v35 = vld [vmem:[%s1 + $0x10] sm:$0xf]
  %v36 = vld [vmem:[%s1 + $0x14] sm:$0xf]
  %v37 = vld [vmem:[%s1 + $0x18] sm:$0xf]
  %v38 = vld [vmem:[%s1 + $0x1c] sm:$0xf]
  %v39 = vld [vmem:[%s1 + $0x20] sm:$0xf]
  %v40 = vld [vmem:[%s1 + $0x24] sm:$0xf]
  %v41 = vld [vmem:[%s1 + $0x28] sm:$0xf]
  %v42 = vld [vmem:[%s1 + $0x2c] sm:$0xf]
  %v43 = vld [vmem:[%s1 + $0x30] sm:$0xf]
  %v44 = vld [vmem:[%s1 + $0x34] sm:$0xf]
  %v45 = vld [vmem:[%s1 + $0x38] sm:$0xf]
  %v46 = vld [vmem:[%s1 + $0x3c] sm:$0xf]
  %v47 = vld [vmem:[%s1 + $0x40] sm:$0xf]
  %v48 = vld [vmem:[%s1 + $0x44] sm:$0xf]
  %v49 = vld [vmem:[%s1 + $0x48] sm:$0xf]
  %v50 = vld [vmem:[%s1 + $0x4c] sm:$0xf]
  %v51 = vld [vmem:[%s1 + $0x50] sm:$0xf]
  %v52 = vld [vmem:[%s1 + $0x54] sm:$0xf]
  %v53 = vld [vmem:[%s1 + $0x58] sm:$0xf]
  %v54 = vld [vmem:[%s1 + $0x5c] sm:$0xf]
  %v55 = vld [vmem:[%s1 + $0x60] sm:$0xf]
  %v56 = vld [vmem:[%s1 + $0x64] sm:$0xf]
  %v57 = vld [vmem:[%s1 + $0x68] sm:$0xf]
  %v58 = vld [vmem:[%s1 + $0x6c] sm:$0xf]
  %v59 = vld [vmem:[%s1 + $0x70] sm:$0xf]
  %v60 = vld [vmem:[%s1 + $0x74] sm:$0xf]
  %v61 = vld [vmem:[%s1 + $0x78] sm:$0xf]
  %v62 = vld [vmem:[%s1 + $0x7c] sm:$0xf]
  %v63 = vld [vmem:[%s2] sm:$0x1]
  %v65 = vlaneseq
  %v66 = vshrl.u32 %v65, 7
  %v67 = vsub.s32 0, %v66
  %v68 = vrot.slane %v63, %v67
  %v86 = vunpack.c.l.b16 %v15
  %v87 = vunpack.c.h.b16 %v15
  %v88 = vunpack.c.l.b16 %v16
  %v89 = vunpack.c.h.b16 %v16
  %v90 = vunpack.c.l.b16 %v17
  %v91 = vunpack.c.h.b16 %v17
  %v92 = vunpack.c.l.b16 %v18
  %v93 = vunpack.c.h.b16 %v18
  %v94 = vunpack.c.l.b16 %v19
  %v95 = vunpack.c.h.b16 %v19
  %v96 = vunpack.c.l.b16 %v20
  %v97 = vunpack.c.h.b16 %v20
  %v98 = vunpack.c.l.b16 %v21
  %v99 = vunpack.c.h.b16 %v21
  %v100 = vunpack.c.l.b16 %v22
  %v101 = vunpack.c.h.b16 %v22
  %v102 = vunpack.c.l.b16 %v23
  %v103 = vunpack.c.h.b16 %v23
  %v104 = vunpack.c.l.b16 %v24
  %v105 = vunpack.c.h.b16 %v24
  %v106 = vunpack.c.l.b16 %v25
  %v107 = vunpack.c.h.b16 %v25
  %v108 = vunpack.c.l.b16 %v26
  %v109 = vunpack.c.h.b16 %v26
  %v110 = vunpack.c.l.b16 %v27
  %v111 = vunpack.c.h.b16 %v27
  %v112 = vunpack.c.l.b16 %v28
  %v113 = vunpack.c.h.b16 %v28
  %v114 = vunpack.c.l.b16 %v29
  %v115 = vunpack.c.h.b16 %v29
  %v116 = vunpack.c.l.b16 %v30
  %v117 = vunpack.c.h.b16 %v30
  %v118 = vpack.c.b16 %v88, %v86
  %v119 = vpack.c.b16 %v89, %v87
  %v120 = vpack.c.b16 %v92, %v90
  %v121 = vpack.c.b16 %v93, %v91
  %v122 = vpack.c.b16 %v96, %v94
  %v123 = vpack.c.b16 %v97, %v95
  %v124 = vpack.c.b16 %v100, %v98
  %v125 = vpack.c.b16 %v101, %v99
  %v126 = vpack.c.b16 %v104, %v102
  %v127 = vpack.c.b16 %v105, %v103
  %v128 = vpack.c.b16 %v108, %v106
  %v129 = vpack.c.b16 %v109, %v107
  %v130 = vpack.c.b16 %v112, %v110
  %v131 = vpack.c.b16 %v113, %v111
  %v132 = vpack.c.b16 %v116, %v114
  %v133 = vpack.c.b16 %v117, %v115
  %v182 = vunpack.c.l.b16 %v31
  %v183 = vunpack.c.l.b16 %v32
  %v184 = vunpack.c.l.b16 %v33
  %v185 = vunpack.c.l.b16 %v34
  %v186 = vunpack.c.l.b16 %v35
  %v187 = vunpack.c.l.b16 %v36
  %v188 = vunpack.c.l.b16 %v37
  %v189 = vunpack.c.l.b16 %v38
  %v190 = vunpack.c.l.b16 %v39
  %v191 = vunpack.c.l.b16 %v40
  %v192 = vunpack.c.l.b16 %v41
  %v193 = vunpack.c.l.b16 %v42
  %v194 = vunpack.c.l.b16 %v43
  %v195 = vunpack.c.l.b16 %v44
  %v196 = vunpack.c.l.b16 %v45
  %v197 = vunpack.c.l.b16 %v46
  %v198 = vunpack.c.l.b16 %v47
  %v199 = vunpack.c.l.b16 %v48
  %v200 = vunpack.c.l.b16 %v49
  %v201 = vunpack.c.l.b16 %v50
  %v202 = vunpack.c.l.b16 %v51
  %v203 = vunpack.c.l.b16 %v52
  %v204 = vunpack.c.l.b16 %v53
  %v205 = vunpack.c.l.b16 %v54
  %v206 = vunpack.c.l.b16 %v55
  %v207 = vunpack.c.l.b16 %v56
  %v208 = vunpack.c.l.b16 %v57
  %v209 = vunpack.c.l.b16 %v58
  %v210 = vunpack.c.l.b16 %v59
  %v211 = vunpack.c.l.b16 %v60
  %v212 = vunpack.c.l.b16 %v61
  %v213 = vunpack.c.l.b16 %v62
  %v214 = vpack.c.b16 %v183, %v182
  %v215 = vpack.c.b16 %v185, %v184
  %v216 = vpack.c.b16 %v187, %v186
  %v217 = vpack.c.b16 %v189, %v188
  %v218 = vpack.c.b16 %v191, %v190
  %v219 = vpack.c.b16 %v193, %v192
  %v220 = vpack.c.b16 %v195, %v194
  %v221 = vpack.c.b16 %v197, %v196
  %v222 = vpack.c.b16 %v199, %v198
  %v223 = vpack.c.b16 %v201, %v200
  %v224 = vpack.c.b16 %v203, %v202
  %v225 = vpack.c.b16 %v205, %v204
  %v226 = vpack.c.b16 %v207, %v206
  %v227 = vpack.c.b16 %v209, %v208
  %v228 = vpack.c.b16 %v211, %v210
  %v229 = vpack.c.b16 %v213, %v212
  %246 = vmatprep.subr.bf16.mxu0 0
  %247 = vmatpush1.bf16.msra.mxu0 %v214
  %248 = vmatprep.subr.bf16.mxu0 0
  %249 = vmatpush1.bf16.msra.mxu0 %v215
  %250 = vmatprep.subr.bf16.mxu0 0
  %251 = vmatpush1.bf16.msra.mxu0 %v216
  %252 = vmatprep.subr.bf16.mxu0 0
  %253 = vmatpush1.bf16.msra.mxu0 %v217
  %254 = vmatprep.subr.bf16.mxu0 0
  %255 = vmatpush1.bf16.msra.mxu0 %v218
  %256 = vmatprep.subr.bf16.mxu0 0
  %257 = vmatpush1.bf16.msra.mxu0 %v219
  %258 = vmatprep.subr.bf16.mxu0 0
  %259 = vmatpush1.bf16.msra.mxu0 %v220
  %260 = vmatprep.subr.bf16.mxu0 0
  %261 = vmatpush1.bf16.msra.mxu0 %v221
  %262 = vmatprep.subr.bf16.mxu0 0
  %263 = vmatpush1.bf16.msra.mxu0 %v222
  %264 = vmatprep.subr.bf16.mxu0 0
  %265 = vmatpush1.bf16.msra.mxu0 %v223
  %266 = vmatprep.subr.bf16.mxu0 0
  %267 = vmatpush1.bf16.msra.mxu0 %v224
  %268 = vmatprep.subr.bf16.mxu0 0
  %269 = vmatpush1.bf16.msra.mxu0 %v225
  %270 = vmatprep.subr.bf16.mxu0 0
  %271 = vmatpush1.bf16.msra.mxu0 %v226
  %272 = vmatprep.subr.bf16.mxu0 0
  %273 = vmatpush1.bf16.msra.mxu0 %v227
  %274 = vmatprep.subr.bf16.mxu0 0
  %275 = vmatpush1.bf16.msra.mxu0 %v228
  %276 = vmatprep.subr.bf16.mxu0 0
  %277 = vmatpush1.bf16.msra.mxu0 %v229
  %278 = vmatprep.mubr.bf16.mxu0 %v119
  %279 = vmatmul.mubr.bf16.gmra.mrb[0].mxu0 %v118
  %v280 = vpop.f32.mrb[0].mxu0
  %v281 = vadd.f32 %v68, %v280
  %v282 = vpop.f32.mrb[0].mxu0
  %v283 = vpop.f32.mrb[0].mxu0
  %v284 = vadd.f32 %v68, %v283
  %v285 = vpop.f32.mrb[0].mxu0
  %286 = vmatprep.mubr.bf16.mxu0 %v121
  %287 = vmatmul.mubr.bf16.gmra.mrb[0].mxu0 %v120
  %v288 = vpop.f32.mrb[0].mxu0
  %v289 = vadd.f32 %v68, %v288
  %v290 = vpop.f32.mrb[0].mxu0
  %v291 = vpop.f32.mrb[0].mxu0
  %v292 = vadd.f32 %v68, %v291
  %v293 = vpop.f32.mrb[0].mxu0
  %294 = vmatprep.mubr.bf16.mxu0 %v123
  %295 = vmatmul.mubr.bf16.gmra.mrb[0].mxu0 %v122
  %v296 = vpop.f32.mrb[0].mxu0
  %v297 = vadd.f32 %v68, %v296
  %v298 = vpop.f32.mrb[0].mxu0
  %v299 = vpop.f32.mrb[0].mxu0
  %v300 = vadd.f32 %v68, %v299
  %v301 = vpop.f32.mrb[0].mxu0
  %302 = vmatprep.mubr.bf16.mxu0 %v125
  %303 = vmatmul.mubr.bf16.gmra.mrb[0].mxu0 %v124
  %v304 = vpop.f32.mrb[0].mxu0
  %v305 = vadd.f32 %v68, %v304
  %v306 = vpop.f32.mrb[0].mxu0
  %v307 = vpop.f32.mrb[0].mxu0
  %v308 = vadd.f32 %v68, %v307
  %v309 = vpop.f32.mrb[0].mxu0
  %310 = vmatprep.mubr.bf16.mxu0 %v127
  %311 = vmatmul.mubr.bf16.gmra.mrb[0].mxu0 %v126
  %v312 = vpop.f32.mrb[0].mxu0
  %v313 = vadd.f32 %v68, %v312
  %v314 = vpop.f32.mrb[0].mxu0
  %v315 = vpop.f32.mrb[0].mxu0
  %v316 = vadd.f32 %v68, %v315
  %v317 = vpop.f32.mrb[0].mxu0
  %318 = vmatprep.mubr.bf16.mxu0 %v129
  %319 = vmatmul.mubr.bf16.gmra.mrb[0].mxu0 %v128
  %v320 = vpop.f32.mrb[0].mxu0
  %v321 = vadd.f32 %v68, %v320
  %v322 = vpop.f32.mrb[0].mxu0
  %v323 = vpop.f32.mrb[0].mxu0
  %v324 = vadd.f32 %v68, %v323
  %v325 = vpop.f32.mrb[0].mxu0
  %326 = vmatprep.mubr.bf16.mxu0 %v131
  %327 = vmatmul.mubr.bf16.gmra.mrb[0].mxu0 %v130
  %v328 = vpop.f32.mrb[0].mxu0
  %v329 = vadd.f32 %v68, %v328
  %v330 = vpop.f32.mrb[0].mxu0
  %v331 = vpop.f32.mrb[0].mxu0
  %v332 = vadd.f32 %v68, %v331
  %v333 = vpop.f32.mrb[0].mxu0
  %334 = vmatprep.mubr.bf16.mxu0 %v133
  %335 = vmatmul.mubr.bf16.gmra.mrb[0].mxu0 %v132
  %v336 = vpop.f32.mrb[0].mxu0
  %v337 = vadd.f32 %v68, %v336
  %v338 = vpop.f32.mrb[0].mxu0
  %v339 = vpop.f32.mrb[0].mxu0
  %v340 = vadd.f32 %v68, %v339
  %v341 = vpop.f32.mrb[0].mxu0
  %342 = vdwg.mxu0
  %v343 = vmax.f32 %v281, 0.0
  %v344 = vmax.f32 %v284, 0.0
  %v345 = vmax.f32 %v289, 0.0
  %v346 = vmax.f32 %v292, 0.0
  %v347 = vmax.f32 %v297, 0.0
  %v348 = vmax.f32 %v300, 0.0
  %v349 = vmax.f32 %v305, 0.0
  %v350 = vmax.f32 %v308, 0.0
  %v351 = vmax.f32 %v313, 0.0
  %v352 = vmax.f32 %v316, 0.0
  %v353 = vmax.f32 %v321, 0.0
  %v354 = vmax.f32 %v324, 0.0
  %v355 = vmax.f32 %v329, 0.0
  %v356 = vmax.f32 %v332, 0.0
  %v357 = vmax.f32 %v337, 0.0
  %v358 = vmax.f32 %v340, 0.0
  %v359 = vpack.c.bf16 %v344, %v343
  %v360 = vpack.c.bf16 %v346, %v345
  %v361 = vpack.c.bf16 %v348, %v347
  %v362 = vpack.c.bf16 %v350, %v349
  %v363 = vpack.c.bf16 %v352, %v351
  %v364 = vpack.c.bf16 %v354, %v353
  %v365 = vpack.c.bf16 %v356, %v355
  %v366 = vpack.c.bf16 %v358, %v357
  %v375 = vunpack.c.l.b16 %v359
  %v376 = vunpack.c.h.b16 %v359
  %v377 = vunpack.c.l.b16 %v360
  %v378 = vunpack.c.h.b16 %v360
  %v379 = vunpack.c.l.b16 %v361
  %v380 = vunpack.c.h.b16 %v361
  %v381 = vunpack.c.l.b16 %v362
  %v382 = vunpack.c.h.b16 %v362
  %v383 = vunpack.c.l.b16 %v363
  %v384 = vunpack.c.h.b16 %v363
  %v385 = vunpack.c.l.b16 %v364
  %v386 = vunpack.c.h.b16 %v364
  %v387 = vunpack.c.l.b16 %v365
  %v388 = vunpack.c.h.b16 %v365
  %v389 = vunpack.c.l.b16 %v366
  %v390 = vunpack.c.h.b16 %v366
  %v391 = vpack.c.b16 %v375, %v375
  %v392 = vpack.c.b16 %v376, %v376
  %v393 = vpack.c.b16 %v377, %v377
  %v394 = vpack.c.b16 %v378, %v378
  %v395 = vpack.c.b16 %v379, %v379
  %v396 = vpack.c.b16 %v380, %v380
  %v397 = vpack.c.b16 %v381, %v381
  %v398 = vpack.c.b16 %v382, %v382
  %v399 = vpack.c.b16 %v383, %v383
  %v400 = vpack.c.b16 %v384, %v384
  %v401 = vpack.c.b16 %v385, %v385
  %v402 = vpack.c.b16 %v386, %v386
  %v403 = vpack.c.b16 %v387, %v387
  %v404 = vpack.c.b16 %v388, %v388
  %v405 = vpack.c.b16 %v389, %v389
  %v406 = vpack.c.b16 %v390, %v390
  %423 = vst [vmem:[%s3] sm:$0xf] %v391
  %424 = vst [vmem:[%s3 + $0x4] sm:$0xf] %v392
  %425 = vst [vmem:[%s3 + $0x8] sm:$0xf] %v393
  %426 = vst [vmem:[%s3 + $0xc] sm:$0xf] %v394
  %427 = vst [vmem:[%s3 + $0x10] sm:$0xf] %v395
  %428 = vst [vmem:[%s3 + $0x14] sm:$0xf] %v396
  %429 = vst [vmem:[%s3 + $0x18] sm:$0xf] %v397
  %430 = vst [vmem:[%s3 + $0x1c] sm:$0xf] %v398
  %431 = vst [vmem:[%s3 + $0x20] sm:$0xf] %v399
  %432 = vst [vmem:[%s3 + $0x24] sm:$0xf] %v400
  %433 = vst [vmem:[%s3 + $0x28] sm:$0xf] %v401
  %434 = vst [vmem:[%s3 + $0x2c] sm:$0xf] %v402
  %435 = vst [vmem:[%s3 + $0x30] sm:$0xf] %v403
  %436 = vst [vmem:[%s3 + $0x34] sm:$0xf] %v404
  %437 = vst [vmem:[%s3 + $0x38] sm:$0xf] %v405
  %438 = vst [vmem:[%s3 + $0x3c] sm:$0xf] %v406
  // Predicated region
  $region14: #{forward.4} parent=0 // pred_check
    _
  $region15: #{forward.4} parent=0 // pred_check_branch
    %440 = sbr.rel (0) target = $region17
  $region16: #{forward.4} parent=0 // pred_region
    _
  $region17: #{forward.4} parent=0 // pred_fallthru
    _
  // Predicated region
  $region18: #{forward.4} parent=0 // pred_check
    _
  $region19: #{forward.4} parent=0 // pred_check_branch
    %442 = sbr.rel (0) target = $region21
  $region20: #{forward.4} parent=0 // pred_region
    _
  $region21: #{forward.4} parent=0 // pred_fallthru
    _

// kernel: forward.6
$region0: #{forward.6}
  #allocation0 [shape = 'u32[]', space=smem, size = 0x4, offset = 0x4, fixed_abs, tag = 'smem constant byte address 0x4 - core index']
  #allocation1 [shape = 'u32[144,128]{1,0:T(1,128)}', space=vmem, size = 0x12000, scoped, tag = 'internal scratch']
  #allocation2 [shape = 'f32[2,128]{1,0:T(2,128)}', space=vmem, size = 0x400, scoped, tag = 'scratch operand']
  %s0 = inlined_call_operand.vmem [shape: bf16[2,1152], index: 0, kind: input, shape index: {}]
  %s1 = inlined_call_operand.vmem [shape: bf16[1152,128], index: 1, kind: input, shape index: {}]
  %s2 = inlined_call_operand.vmem [shape: f32[1,128], index: 2, kind: input, shape index: {}]
  %s3 = inlined_call_operand.vmem [shape: bf16[2,128], index: 3, kind: output, shape index: {}]
  %s4 = sld [smem:[#allocation0]]
  $region53: #{forward.6} parent=0
    _
  %s6 = ssub.s32 1, %s4
  %s7 = scalar_select 0, %s6, %s4
  loop: start=0, step=1, limit=5
  $region2: #{forward.6} parent=0 // loop_pre_header
    _
  $region3: #{forward.6} parent=0 // loop_header
    %s9 = sphi 0, %s13
    %p10 = scmp.ge.s32.totalorder %s9, 5
    %s16 = sphi 0, %s35
    %s17 = sphi 0, %s31
    %s18 = sphi 0, %s27
    %s19 = sphi 0, %s16
    %s20 = sphi 0, %s17
    %s21 = sphi 0, %s18
    %s22 = sphi 0, %s19
    %s23 = sphi 0, %s20
    %s24 = sphi 0, %s21
    %s40 = sphi 0, %s42
    %s43 = sphi 0, %s40
    %s44 = sphi 0, %s43
    %s60 = sphi 0, %s44
    %s68 = sphi 0, %s70
    %s71 = sphi 0, %s68
    %s72 = sphi 0, %s71
    %s88 = sphi 0, %s72
    %s94 = sphi 0, %s96
    %s97 = sphi 0, %s94
    %s98 = sphi 0, %s97
    %s114 = sphi 0, %s98
    %s122 = sphi 0, %s124
    %s125 = sphi 0, %s122
    %s126 = sphi 0, %s125
    %s142 = sphi 0, %s126
  $region4: #{forward.6} parent=0 // loop_header_branch
    %12 = sbr.rel (%p10) target = $region8
  $region5: #{forward.6} parent=0 // loop_body
    %s14 = ssub.s32 %s9, 1
    %s15 = ssub.s32 %s9, 2
    %s25 = sadd.s32 1, %s18
    %p26 = scmp.ge.s32.totalorder %s25, 3
    %s27 = scalar_select %p26, 0, %s25
    %s28 = sadd.s32 1, %s17
    %s29 = scalar_select %p26, %s28, %s17
    %p30 = scmp.ge.s32.totalorder %s29, 1
    %s31 = scalar_select %p30, 0, %s29
    %s32 = sadd.s32 1, %s16
    %s33 = scalar_select %p30, %s32, %s16
    %p34 = scmp.ge.s32.totalorder %s33, 1
    %s35 = scalar_select %p34, 0, %s33
    %s36 = ssub.s32 %s16, %s35
    %s37 = ssub.s32 %s18, %s27
    %s38 = sor.u32 %s36, %s37
    %p39 = scmp.eq.s32.totalorder %s38, 0
    %s41 = sadd.s32 %s40, 1
    %s42 = scalar_select %p39, %s40, %s41
    %p45 = pneg %p39
    %p46 = scmp.eq.s32.totalorder %s9, 2
    %p47 = por %p45, %p46
    %p48 = scmp.ne.s32.totalorder %s40, %s43
    %p49 = scmp.eq.s32.totalorder %s9, 0
    %p50 = por %p48, %p49
    %p51 = scmp.ne.s32.totalorder %s40, %s43
    %p52 = scmp.eq.s32.totalorder %s14, 2
    %p53 = por %p51, %p52
    %p54 = scmp.ne.s32.totalorder %s43, %s44
    %p55 = scmp.eq.s32.totalorder %s14, 0
    %p56 = por %p54, %p55
    %p57 = scmp.ne.s32.totalorder %s43, %s44
    %p58 = scmp.eq.s32.totalorder %s15, 2
    %p59 = por %p57, %p58
    %p61 = scmp.ne.s32.totalorder %s44, %s60
    %p62 = scmp.eq.s32.totalorder %s15, 0
    %p63 = por %p61, %p62
    %s64 = ssub.s32 %s18, %s27
    %s65 = ssub.s32 %s17, %s31
    %s66 = sor.u32 %s64, %s65
    %p67 = scmp.eq.s32.totalorder %s66, 0
    %s69 = sadd.s32 %s68, 1
    %s70 = scalar_select %p67, %s68, %s69
    %p73 = pneg %p67
    %p74 = scmp.eq.s32.totalorder %s9, 2
    %p75 = por %p73, %p74
    %p76 = scmp.ne.s32.totalorder %s68, %s71
    %p77 = scmp.eq.s32.totalorder %s9, 0
    %p78 = por %p76, %p77
    %p79 = scmp.ne.s32.totalorder %s68, %s71
    %p80 = scmp.eq.s32.totalorder %s14, 2
    %p81 = por %p79, %p80
    %p82 = scmp.ne.s32.totalorder %s71, %s72
    %p83 = scmp.eq.s32.totalorder %s14, 0
    %p84 = por %p82, %p83
    %p85 = scmp.ne.s32.totalorder %s71, %s72
    %p86 = scmp.eq.s32.totalorder %s15, 2
    %p87 = por %p85, %p86
    %p89 = scmp.ne.s32.totalorder %s72, %s88
    %p90 = scmp.eq.s32.totalorder %s15, 0
    %p91 = por %p89, %p90
    %s92 = ssub.s32 %s17, %s31
    %p93 = scmp.eq.s32.totalorder %s92, 0
    %s95 = sadd.s32 %s94, 1
    %s96 = scalar_select %p93, %s94, %s95
    %p99 = pneg %p93
    %p100 = scmp.eq.s32.totalorder %s9, 2
    %p101 = por %p99, %p100
    %p102 = scmp.ne.s32.totalorder %s94, %s97
    %p103 = scmp.eq.s32.totalorder %s9, 0
    %p104 = por %p102, %p103
    %p105 = scmp.ne.s32.totalorder %s94, %s97
    %p106 = scmp.eq.s32.totalorder %s14, 2
    %p107 = por %p105, %p106
    %p108 = scmp.ne.s32.totalorder %s97, %s98
    %p109 = scmp.eq.s32.totalorder %s14, 0
    %p110 = por %p108, %p109
    %p111 = scmp.ne.s32.totalorder %s97, %s98
    %p112 = scmp.eq.s32.totalorder %s15, 2
    %p113 = por %p111, %p112
    %p115 = scmp.ne.s32.totalorder %s98, %s114
    %p116 = scmp.eq.s32.totalorder %s15, 0
    %p117 = por %p115, %p116
    %s118 = ssub.s32 %s16, %s35
    %s119 = ssub.s32 %s17, %s31
    %s120 = sor.u32 %s118, %s119
    %p121 = scmp.eq.s32.totalorder %s120, 0
    %s123 = sadd.s32 %s122, 1
    %s124 = scalar_select %p121, %s122, %s123
    %p127 = pneg %p121
    %p128 = scmp.eq.s32.totalorder %s9, 2
    %p129 = por %p127, %p128
    %p130 = scmp.ne.s32.totalorder %s122, %s125
    %p131 = scmp.eq.s32.totalorder %s9, 0
    %p132 = por %p130, %p131
    %p133 = scmp.ne.s32.totalorder %s122, %s125
    %p134 = scmp.eq.s32.totalorder %s14, 2
    %p135 = por %p133, %p134
    %p136 = scmp.ne.s32.totalorder %s125, %s126
    %p137 = scmp.eq.s32.totalorder %s14, 0
    %p138 = por %p136, %p137
    %p139 = scmp.ne.s32.totalorder %s125, %s126
    %p140 = scmp.eq.s32.totalorder %s15, 2
    %p141 = por %p139, %p140
    %p143 = scmp.ne.s32.totalorder %s126, %s142
    %p144 = scmp.eq.s32.totalorder %s15, 0
    %p145 = por %p143, %p144
    %p146 = scmp.le.s32.totalorder 1, %s9
    %p147 = scmp.lt.s32.totalorder %s9, 4
    %p148 = pnand %p146, %p147
    %p149 = pneg %p148
    // Predicated region
    $region9: #{forward.6} parent=5 // pred_check
      _
    $region10: #{forward.6} parent=5 // pred_check_branch
      %151 = sbr.rel (%p148) target = $region12
    $region11: #{forward.6} parent=5 // pred_region
      %s152 = ssub.s32 %s9, 1
      // Predicated region
      $region13: #{forward.6} parent=11 // pred_check
        %p153 = pneg %p110
      $region14: #{forward.6} parent=11 // pred_check_branch
        %155 = sbr.rel (%p153) target = $region16
      $region15: #{forward.6} parent=11 // pred_region
        %p156 = scmp.lt.s32.totalorder %s20, 0
        %s157 = scalar_select %p156, %s20, 0
        %s158 = scalar_lea.vmem %s2, %s157
      $region16: #{forward.6} parent=11 // pred_fallthru
        _
    $region12: #{forward.6} parent=5 // pred_fallthru
      _
    %p159 = scmp.lt.s32.totalorder %s9, 3
    // Predicated region
    $region17: #{forward.6} parent=5 // pred_check
      %p160 = pneg %p159
    $region18: #{forward.6} parent=5 // pred_check_branch
      %162 = sbr.rel (%p160) target = $region20
    $region19: #{forward.6} parent=5 // pred_region
      // Predicated region
      $region21: #{forward.6} parent=19 // pred_check
        %p163 = pneg %p50
      $region22: #{forward.6} parent=19 // pred_check_branch
        %165 = sbr.rel (%p163) target = $region24
      $region23: #{forward.6} parent=19 // pred_region
        %s166 = smul.u32 3, %s18
        %p167 = scmp.lt.s32.totalorder %s16, 0
        %s168 = scalar_select %p167, %s16, 0
        %p169 = scmp.lt.s32.totalorder %s166, 8
        %s170 = scalar_select %p169, %s166, 8
        %s171 = smul.addr %s168, 9
        %s172 = sadd.s32 %s170, %s171
        %s173 = scalar_lea.vmem %s0, %s172
        %s174 = smul.u32 3, %s18
      $region24: #{forward.6} parent=19 // pred_fallthru
        _
      // Predicated region
      $region25: #{forward.6} parent=19 // pred_check
        %p175 = pneg %p78
      $region26: #{forward.6} parent=19 // pred_check_branch
        %177 = sbr.rel (%p175) target = $region28
      $region27: #{forward.6} parent=19 // pred_region
        %s178 = smul.u32 48, %s18
        %p179 = scmp.lt.s32.totalorder %s178, 143
        %s180 = scalar_select %p179, %s178, 143
        %p181 = scmp.lt.s32.totalorder %s17, 0
        %s182 = scalar_select %p181, %s17, 0
        %s183 = sadd.s32 %s182, %s180
        %s184 = smul.addr %s183, 4
        %s185 = scalar_lea.vmem %s1, %s184
        %s186 = smul.u32 48, %s18
      $region28: #{forward.6} parent=19 // pred_fallthru
        _
    $region20: #{forward.6} parent=5 // pred_fallthru
      _
    %p187 = scmp.le.s32.totalorder 1, %s9
    %p188 = scmp.lt.s32.totalorder %s9, 4
    %p189 = pnand %p187, %p188
    %p190 = pneg %p189
    // Predicated region
    $region29: #{forward.6} parent=5 // pred_check
      _
    $region30: #{forward.6} parent=5 // pred_check_branch
      %192 = sbr.rel (%p189) target = $region32
    $region31: #{forward.6} parent=5 // pred_region
      %s193 = ssub.s32 %s9, 1
      %s194 = smul.u32 3, %s21
      %p195 = scmp.lt.s32.totalorder %s19, 0
      %s196 = scalar_select %p195, %s19, 0
      %p197 = scmp.lt.s32.totalorder %s194, 8
      %s198 = scalar_select %p197, %s194, 8
      %s199 = smul.addr %s196, 9
      %s200 = sadd.s32 %s198, %s199
      %s201 = scalar_lea.vmem %s0, %s200
      %p202 = pneg %p56
      %p203 = pneg %p53
      %s204 = smul.u32 48, %s21
      %p205 = scmp.lt.s32.totalorder %s204, 143
      %s206 = scalar_select %p205, %s204, 143
      %p207 = scmp.lt.s32.totalorder %s20, 0
      %s208 = scalar_select %p207, %s20, 0
      %s209 = sadd.s32 %s208, %s206
      %s210 = smul.addr %s209, 4
      %s211 = scalar_lea.vmem %s1, %s210
      %p212 = pneg %p84
      %p213 = pneg %p81
      %p214 = scmp.lt.s32.totalorder %s20, 0
      %s215 = scalar_select %p214, %s20, 0
      %s216 = scalar_lea.vmem %s2, %s215
      %p217 = pneg %p110
      %p218 = pneg %p107
      %p219 = pneg %p138
      %p220 = pneg %p135
      %p221 = scmp.lt.s32.totalorder %s19, 0
      %s222 = scalar_select %p221, %s19, 0
      %p223 = scmp.lt.s32.totalorder %s20, 0
      %s224 = scalar_select %p223, %s20, 0
      %s225 = sadd.s32 %s224, %s222
      %s226 = scalar_lea.vmem %s3, %s225
      %s227 = smul.u32 3, %s21
      %p228 = scmp.lt.s32.totalorder %s19, 0
      %s229 = scalar_select %p228, %s19, 0
      %p230 = scmp.lt.s32.totalorder %s227, 8
      %s231 = scalar_select %p230, %s227, 8
      %s232 = smul.addr %s229, 9
      %s233 = sadd.s32 %s231, %s232
      %s234 = scalar_lea.vmem %s0, %s233
      %s235 = smul.u32 3, %s21
      %s236 = smul.u32 48, %s21
      %p237 = scmp.lt.s32.totalorder %s236, 143
      %s238 = scalar_select %p237, %s236, 143
      %p239 = scmp.lt.s32.totalorder %s20, 0
      %s240 = scalar_select %p239, %s20, 0
      %s241 = sadd.s32 %s240, %s238
      %s242 = smul.addr %s241, 4
      %s243 = scalar_lea.vmem %s1, %s242
      %s244 = smul.u32 48, %s21
      %p245 = scmp.lt.s32.totalorder %s20, 0
      %s246 = scalar_select %p245, %s20, 0
      %s247 = scalar_lea.vmem %s2, %s246
      %p248 = scmp.lt.s32.totalorder %s19, 0
      %s249 = scalar_select %p248, %s19, 0
      %p250 = scmp.lt.s32.totalorder %s20, 0
      %s251 = scalar_select %p250, %s20, 0
      %s252 = sadd.s32 %s251, %s249
      %s253 = scalar_lea.vmem %s3, %s252
      %p255 = scmp.eq.s32.totalorder %s21, 0
      // Predicated region
      $region33: #{forward.6} parent=31 // pred_check
        %p256 = pneg %p255
      $region34: #{forward.6} parent=31 // pred_check_branch
        %258 = sbr.rel (%p256) target = $region36
      $region35: #{forward.6} parent=31 // pred_region
        %259 = vst [vmem:[#allocation2] sm:$0x3] 0.0
      $region36: #{forward.6} parent=31 // pred_fallthru
        _
      %v260 = vld [vmem:[#allocation2] sm:$0x3]
      %v261 = vld [vmem:[%s234] sm:$0x7]
      %v262 = vld [vmem:[%s243] sm:$0xf]
      %v263 = vld [vmem:[%s243 + $0x4] sm:$0xf]
      %v264 = vld [vmem:[%s243 + $0x8] sm:$0xf]
      %v265 = vld [vmem:[%s243 + $0xc] sm:$0xf]
      %v266 = vld [vmem:[%s243 + $0x10] sm:$0xf]
      %v267 = vld [vmem:[%s243 + $0x14] sm:$0xf]
      %v268 = vld [vmem:[%s243 + $0x18] sm:$0xf]
      %v269 = vld [vmem:[%s243 + $0x1c] sm:$0xf]
      %v270 = vld [vmem:[%s243 + $0x20] sm:$0xf]
      %v271 = vld [vmem:[%s243 + $0x24] sm:$0xf]
      %v272 = vld [vmem:[%s243 + $0x28] sm:$0xf]
      %v273 = vld [vmem:[%s243 + $0x2c] sm:$0xf]
      %v274 = vld [vmem:[%s243 + $0x30] sm:$0xf]
      %v275 = vld [vmem:[%s243 + $0x34] sm:$0xf]
      %v276 = vld [vmem:[%s243 + $0x38] sm:$0xf]
      %v277 = vld [vmem:[%s243 + $0x3c] sm:$0xf]
      %v278 = vld [vmem:[%s243 + $0x40] sm:$0xf]
      %v279 = vld [vmem:[%s243 + $0x44] sm:$0xf]
      %v280 = vld [vmem:[%s243 + $0x48] sm:$0xf]
      %v281 = vld [vmem:[%s243 + $0x4c] sm:$0xf]
      %v282 = vld [vmem:[%s243 + $0x50] sm:$0xf]
      %v283 = vld [vmem:[%s243 + $0x54] sm:$0xf]
      %v284 = vld [vmem:[%s243 + $0x58] sm:$0xf]
      %v285 = vld [vmem:[%s243 + $0x5c] sm:$0xf]
      %v286 = vld [vmem:[%s243 + $0x60] sm:$0xf]
      %v287 = vld [vmem:[%s243 + $0x64] sm:$0xf]
      %v288 = vld [vmem:[%s243 + $0x68] sm:$0xf]
      %v289 = vld [vmem:[%s243 + $0x6c] sm:$0xf]
      %v290 = vld [vmem:[%s243 + $0x70] sm:$0xf]
      %v291 = vld [vmem:[%s243 + $0x74] sm:$0xf]
      %v292 = vld [vmem:[%s243 + $0x78] sm:$0xf]
      %v293 = vld [vmem:[%s243 + $0x7c] sm:$0xf]
      %v294 = vld [vmem:[%s243 + $0x80] sm:$0xf]
      %v295 = vld [vmem:[%s243 + $0x84] sm:$0xf]
      %v296 = vld [vmem:[%s243 + $0x88] sm:$0xf]
      %v297 = vld [vmem:[%s243 + $0x8c] sm:$0xf]
      %v298 = vld [vmem:[%s243 + $0x90] sm:$0xf]
      %v299 = vld [vmem:[%s243 + $0x94] sm:$0xf]
      %v300 = vld [vmem:[%s243 + $0x98] sm:$0xf]
      %v301 = vld [vmem:[%s243 + $0x9c] sm:$0xf]
      %v302 = vld [vmem:[%s243 + $0xa0] sm:$0xf]
      %v303 = vld [vmem:[%s243 + $0xa4] sm:$0xf]
      %v304 = vld [vmem:[%s243 + $0xa8] sm:$0xf]
      %v305 = vld [vmem:[%s243 + $0xac] sm:$0xf]
      %v306 = vld [vmem:[%s243 + $0xb0] sm:$0xf]
      %v307 = vld [vmem:[%s243 + $0xb4] sm:$0xf]
      %v308 = vld [vmem:[%s243 + $0xb8] sm:$0xf]
      %v309 = vld [vmem:[%s243 + $0xbc] sm:$0xf]
      %v312 = vunpack.c.l.s4 1966171168
      %v313 = vunpack.c.0.s8 %v312
      %v314 = vlaneseq
      %v315 = vshrl.u32 %v314, 7
      %v316 = vsub.s32 %v313, %v315
      %v317 = vrot.slane %v261, %v316
      %v318 = vcombine.high %v317, %v317
      %v320 = vunpack.c.l.s4 1966171168
      %v321 = vunpack.c.0.s8 %v320
      %v322 = vlaneseq
      %v323 = vshrl.u32 %v322, 7
      %v324 = vsub.s32 %v321, %v323
      %v325 = vrot.slane %v317, %v324
      %v327 = vunpack.c.l.s4 1966171168
      %v328 = vunpack.c.0.s8 %v327
      %v329 = vlaneseq
      %v330 = vshrl.u32 %v329, 7
      %v331 = vsub.s32 %v328, %v330
      %v332 = vrot.slane %v318, %v331
      %v333 = vcombine.high %v325, %v325
      %v385 = vunpack.c.l.b16 %v262
      %v386 = vunpack.c.l.b16 %v263
      %v387 = vunpack.c.l.b16 %v264
      %v388 = vunpack.c.l.b16 %v265
      %v389 = vunpack.c.l.b16 %v266
      %v390 = vunpack.c.l.b16 %v267
      %v391 = vunpack.c.l.b16 %v268
      %v392 = vunpack.c.l.b16 %v269
      %v393 = vunpack.c.l.b16 %v270
      %v394 = vunpack.c.l.b16 %v271
      %v395 = vunpack.c.l.b16 %v272
      %v396 = vunpack.c.l.b16 %v273
      %v397 = vunpack.c.l.b16 %v274
      %v398 = vunpack.c.l.b16 %v275
      %v399 = vunpack.c.l.b16 %v276
      %v400 = vunpack.c.l.b16 %v277
      %v401 = vunpack.c.l.b16 %v278
      %v402 = vunpack.c.l.b16 %v279
      %v403 = vunpack.c.l.b16 %v280
      %v404 = vunpack.c.l.b16 %v281
      %v405 = vunpack.c.l.b16 %v282
      %v406 = vunpack.c.l.b16 %v283
      %v407 = vunpack.c.l.b16 %v284
      %v408 = vunpack.c.l.b16 %v285
      %v409 = vunpack.c.l.b16 %v286
      %v410 = vunpack.c.l.b16 %v287
      %v411 = vunpack.c.l.b16 %v288
      %v412 = vunpack.c.l.b16 %v289
      %v413 = vunpack.c.l.b16 %v290
      %v414 = vunpack.c.l.b16 %v291
      %v415 = vunpack.c.l.b16 %v292
      %v416 = vunpack.c.l.b16 %v293
      %v417 = vunpack.c.l.b16 %v294
      %v418 = vunpack.c.l.b16 %v295
      %v419 = vunpack.c.l.b16 %v296
      %v420 = vunpack.c.l.b16 %v297
      %v421 = vunpack.c.l.b16 %v298
      %v422 = vunpack.c.l.b16 %v299
      %v423 = vunpack.c.l.b16 %v300
      %v424 = vunpack.c.l.b16 %v301
      %v425 = vunpack.c.l.b16 %v302
      %v426 = vunpack.c.l.b16 %v303
      %v427 = vunpack.c.l.b16 %v304
      %v428 = vunpack.c.l.b16 %v305
      %v429 = vunpack.c.l.b16 %v306
      %v430 = vunpack.c.l.b16 %v307
      %v431 = vunpack.c.l.b16 %v308
      %v432 = vunpack.c.l.b16 %v309
      %v433 = vpack.c.b16 %v386, %v385
      %v434 = vpack.c.b16 %v388, %v387
      %v435 = vpack.c.b16 %v390, %v389
      %v436 = vpack.c.b16 %v392, %v391
      %v437 = vpack.c.b16 %v394, %v393
      %v438 = vpack.c.b16 %v396, %v395
      %v439 = vpack.c.b16 %v398, %v397
      %v440 = vpack.c.b16 %v400, %v399
      %v441 = vpack.c.b16 %v402, %v401
      %v442 = vpack.c.b16 %v404, %v403
      %v443 = vpack.c.b16 %v406, %v405
      %v444 = vpack.c.b16 %v408, %v407
      %v445 = vpack.c.b16 %v410, %v409
      %v446 = vpack.c.b16 %v412, %v411
      %v447 = vpack.c.b16 %v414, %v413
      %v448 = vpack.c.b16 %v416, %v415
      %v449 = vpack.c.b16 %v418, %v417
      %v450 = vpack.c.b16 %v420, %v419
      %v451 = vpack.c.b16 %v422, %v421
      %v452 = vpack.c.b16 %v424, %v423
      %v453 = vpack.c.b16 %v426, %v425
      %v454 = vpack.c.b16 %v428, %v427
      %v455 = vpack.c.b16 %v430, %v429
      %v456 = vpack.c.b16 %v432, %v431
      %481 = vmatprep.subr.bf16.mxu0 0
      %482 = vmatpush1.bf16.msra.mxu0 %v433
      %483 = vmatprep.subr.bf16.mxu0 0
      %484 = vmatpush1.bf16.msra.mxu0 %v434
      %485 = vmatprep.subr.bf16.mxu0 0
      %486 = vmatpush1.bf16.msra.mxu0 %v435
      %487 = vmatprep.subr.bf16.mxu0 0
      %488 = vmatpush1.bf16.msra.mxu0 %v436
      %489 = vmatprep.subr.bf16.mxu0 0
      %490 = vmatpush1.bf16.msra.mxu0 %v437
      %491 = vmatprep.subr.bf16.mxu0 0
      %492 = vmatpush1.bf16.msra.mxu0 %v438
      %493 = vmatprep.subr.bf16.mxu0 0
      %494 = vmatpush1.bf16.msra.mxu0 %v439
      %495 = vmatprep.subr.bf16.mxu0 0
      %496 = vmatpush1.bf16.msra.mxu0 %v440
      %497 = vmatprep.subr.bf16.mxu0 0
      %498 = vmatpush1.bf16.msra.mxu0 %v441
      %499 = vmatprep.subr.bf16.mxu0 0
      %500 = vmatpush1.bf16.msra.mxu0 %v442
      %501 = vmatprep.subr.bf16.mxu0 0
      %502 = vmatpush1.bf16.msra.mxu0 %v443
      %503 = vmatprep.subr.bf16.mxu0 0
      %504 = vmatpush1.bf16.msra.mxu0 %v444
      %505 = vmatprep.subr.bf16.mxu0 0
      %506 = vmatpush1.bf16.msra.mxu0 %v445
      %507 = vmatprep.subr.bf16.mxu0 0
      %508 = vmatpush1.bf16.msra.mxu0 %v446
      %509 = vmatprep.subr.bf16.mxu0 0
      %510 = vmatpush1.bf16.msra.mxu0 %v447
      %511 = vmatprep.subr.bf16.mxu0 0
      %512 = vmatpush1.bf16.msra.mxu0 %v448
      %513 = vmatprep.mubr.bf16.mxu0 %v332
      %514 = vmatmul.mubr.bf16.gmra.mrb[0].mxu0 %v325
      %v515 = vpop.f32.mrb[0].mxu0
      %v516 = vadd.f32 0.0, %v515
      %v517 = vpop.f32.mrb[0].mxu0
      %v518 = vpop.f32.mrb[0].mxu0
      %v519 = vpop.f32.mrb[0].mxu0
      %520 = vdwg.mxu0
      %521 = vmatprep.subr.bf16.mxu0 0
      %522 = vmatpush1.bf16.msra.mxu0 %v449
      %523 = vmatprep.subr.bf16.mxu0 0
      %524 = vmatpush1.bf16.msra.mxu0 %v450
      %525 = vmatprep.subr.bf16.mxu0 0
      %526 = vmatpush1.bf16.msra.mxu0 %v451
      %527 = vmatprep.subr.bf16.mxu0 0
      %528 = vmatpush1.bf16.msra.mxu0 %v452
      %529 = vmatprep.subr.bf16.mxu0 0
      %530 = vmatpush1.bf16.msra.mxu0 %v453
      %531 = vmatprep.subr.bf16.mxu0 0
      %532 = vmatpush1.bf16.msra.mxu0 %v454
      %533 = vmatprep.subr.bf16.mxu0 0
      %534 = vmatpush1.bf16.msra.mxu0 %v455
      %535 = vmatprep.subr.bf16.mxu0 0
      %536 = vmatpush1.bf16.msra.mxu0 %v456
      %537 = vmatprep.subr.bf16.mxu0 0
      %538 = vmatpush1.bf16.msra.mxu0 0
      %539 = vmatprep.subr.bf16.mxu0 0
      %540 = vmatpush1.bf16.msra.mxu0 0
      %541 = vmatprep.subr.bf16.mxu0 0
      %542 = vmatpush1.bf16.msra.mxu0 0
      %543 = vmatprep.subr.bf16.mxu0 0
      %544 = vmatpush1.bf16.msra.mxu0 0
      %545 = vmatprep.subr.bf16.mxu0 0
      %546 = vmatpush1.bf16.msra.mxu0 0
      %547 = vmatprep.subr.bf16.mxu0 0
      %548 = vmatpush1.bf16.msra.mxu0 0
      %549 = vmatprep.subr.bf16.mxu0 0
      %550 = vmatpush1.bf16.msra.mxu0 0
      %551 = vmatprep.subr.bf16.mxu0 0
      %552 = vmatpush1.bf16.msra.mxu0 0
      %553 = vmatprep.mubr.bf16.mxu0 0
      %554 = vmatmul.mubr.bf16.gmra.mrb[0].mxu0 %v333
      %v555 = vpop.f32.mrb[0].mxu0
      %v556 = vadd.f32 %v516, %v555
      %v557 = vpop.f32.mrb[0].mxu0
      %v558 = vpop.f32.mrb[0].mxu0
      %v559 = vpop.f32.mrb[0].mxu0
      %560 = vdwg.mxu0
      %v561 = vadd.f32 %v260, %v556
      %562 = vst [vmem:[#allocation2] sm:$0x3] %v561
      %p563 = scmp.eq.s32.totalorder %s21, 2
      // Predicated region
      $region37: #{forward.6} parent=31 // pred_check
        %p564 = pneg %p563
      $region38: #{forward.6} parent=31 // pred_check_branch
        %566 = sbr.rel (%p564) target = $region40
      $region39: #{forward.6} parent=31 // pred_region
        %v567 = vld [vmem:[#allocation2] sm:$0x3]
        %v568 = vld [vmem:[%s247] sm:$0x1]
        %v570 = vlaneseq
        %v571 = vshrl.u32 %v570, 7
        %v572 = vsub.s32 0, %v571
        %v573 = vrot.slane %v568, %v572
        %v575 = vadd.f32 %v567, %v573
        %v576 = vmax.f32 %v575, 0.0
        %v577 = vpack.c.bf16 %v576, %v576
        %578 = vst [vmem:[%s253] sm:$0x1] %v577
      $region40: #{forward.6} parent=31 // pred_fallthru
        _
      %p579 = scmp.lt.s32.totalorder %s19, 0
      %s580 = scalar_select %p579, %s19, 0
      %p581 = scmp.lt.s32.totalorder %s20, 0
      %s582 = scalar_select %p581, %s20, 0
      %s583 = sadd.s32 %s582, %s580
      %s584 = scalar_lea.vmem %s3, %s583
      // Predicated region
      $region41: #{forward.6} parent=31 // pred_check
        %p585 = pneg %p135
      $region42: #{forward.6} parent=31 // pred_check_branch
        %587 = sbr.rel (%p585) target = $region44
      $region43: #{forward.6} parent=31 // pred_region
        _
      $region44: #{forward.6} parent=31 // pred_fallthru
        _
      // Predicated region
      $region45: #{forward.6} parent=31 // pred_check
        %p588 = pneg %p135
      $region46: #{forward.6} parent=31 // pred_check_branch
        %590 = sbr.rel (%p588) target = $region48
      $region47: #{forward.6} parent=31 // pred_region
        %p591 = scmp.lt.s32.totalorder %s19, 0
        %s592 = scalar_select %p591, %s19, 0
        %p593 = scmp.lt.s32.totalorder %s20, 0
        %s594 = scalar_select %p593, %s20, 0
        %s595 = sadd.s32 %s594, %s592
        %s596 = scalar_lea.vmem %s3, %s595
      $region48: #{forward.6} parent=31 // pred_fallthru
        _
    $region32: #{forward.6} parent=5 // pred_fallthru
      _
    %p597 = scmp.le.s32.totalorder 2, %s9
    // Predicated region
    $region49: #{forward.6} parent=5 // pred_check
      %p598 = pneg %p597
    $region50: #{forward.6} parent=5 // pred_check_branch
      %600 = sbr.rel (%p598) target = $region52
    $region51: #{forward.6} parent=5 // pred_region
      %s601 = ssub.s32 %s9, 2
    $region52: #{forward.6} parent=5 // pred_fallthru
      _
  $region6: #{forward.6} parent=0 // loop_footer
    %s13 = sadd.s32 1, %s9
  $region7: #{forward.6} parent=0 // loop_footer_branch
    %8 = sbr.rel target = $region3
  $region8: #{forward.6} parent=0 // loop_exit
    _

// kernel: forward.5
$region0: #{forward.5}
  #allocation0 [shape = 'u32[]', space=smem, size = 0x4, offset = 0x4, fixed_abs, tag = 'smem constant byte address 0x4 - core index']
  #allocation1 [shape = 'u32[144,128]{1,0:T(1,128)}', space=vmem, size = 0x12000, scoped, tag = 'internal scratch']
  #allocation2 [shape = 'f32[18,128]{1,0:T(8,128)}', space=vmem, size = 0x3000, scoped, tag = 'scratch operand']
  %s0 = inlined_call_operand.vmem [shape: bf16[18,2048], index: 0, kind: input, shape index: {}]
  %s1 = inlined_call_operand.vmem [shape: bf16[2048,128], index: 1, kind: input, shape index: {}]
  %s2 = inlined_call_operand.vmem [shape: f32[1,128], index: 2, kind: input, shape index: {}]
  %s3 = inlined_call_operand.vmem [shape: bf16[18,128], index: 3, kind: output, shape index: {}]
  %s4 = sld [smem:[#allocation0]]
  $region76: #{forward.5} parent=0
    _
  %s6 = ssub.s32 1, %s4
  %s7 = scalar_select 0, %s6, %s4
  $region1: #{forward.5} parent=0
    #allocation3 [shape = 'u8[49152]{0}', space=vmem, size = 0xc000, scoped, tag = 'input window, operand 0']
    loop: start=0, step=1, limit=6
    $region2: #{forward.5} parent=1 // loop_pre_header
      _
    $region3: #{forward.5} parent=1 // loop_header
      %s9 = sphi 0, %s13
      %p10 = scmp.ge.s32.totalorder %s9, 6
      %s16 = sphi 0, %s35
      %s17 = sphi 0, %s31
      %s18 = sphi 0, %s27
      %s19 = sphi 0, %s16
      %s20 = sphi 0, %s17
      %s21 = sphi 0, %s18
      %s22 = sphi 0, %s19
      %s23 = sphi 0, %s20
      %s24 = sphi 0, %s21
      %s40 = sphi 0, %s42
      %s43 = sphi 0, %s40
      %s44 = sphi 0, %s43
      %s60 = sphi 0, %s44
      %s68 = sphi 0, %s70
      %s71 = sphi 0, %s68
      %s72 = sphi 0, %s71
      %s88 = sphi 0, %s72
      %s94 = sphi 0, %s96
      %s97 = sphi 0, %s94
      %s98 = sphi 0, %s97
      %s114 = sphi 0, %s98
      %s122 = sphi 0, %s124
      %s125 = sphi 0, %s122
      %s126 = sphi 0, %s125
      %s142 = sphi 0, %s126
    $region4: #{forward.5} parent=1 // loop_header_branch
      %12 = sbr.rel (%p10) target = $region8
    $region5: #{forward.5} parent=1 // loop_body
      %s14 = ssub.s32 %s9, 1
      %s15 = ssub.s32 %s9, 2
      %s25 = sadd.s32 1, %s18
      %p26 = scmp.ge.s32.totalorder %s25, 4
      %s27 = scalar_select %p26, 0, %s25
      %s28 = sadd.s32 1, %s17
      %s29 = scalar_select %p26, %s28, %s17
      %p30 = scmp.ge.s32.totalorder %s29, 1
      %s31 = scalar_select %p30, 0, %s29
      %s32 = sadd.s32 1, %s16
      %s33 = scalar_select %p30, %s32, %s16
      %p34 = scmp.ge.s32.totalorder %s33, 1
      %s35 = scalar_select %p34, 0, %s33
      %s36 = ssub.s32 %s16, %s35
      %s37 = ssub.s32 %s18, %s27
      %s38 = sor.u32 %s36, %s37
      %p39 = scmp.eq.s32.totalorder %s38, 0
      %s41 = sadd.s32 %s40, 1
      %s42 = scalar_select %p39, %s40, %s41
      %p45 = pneg %p39
      %p46 = scmp.eq.s32.totalorder %s9, 3
      %p47 = por %p45, %p46
      %p48 = scmp.ne.s32.totalorder %s40, %s43
      %p49 = scmp.eq.s32.totalorder %s9, 0
      %p50 = por %p48, %p49
      %p51 = scmp.ne.s32.totalorder %s40, %s43
      %p52 = scmp.eq.s32.totalorder %s14, 3
      %p53 = por %p51, %p52
      %p54 = scmp.ne.s32.totalorder %s43, %s44
      %p55 = scmp.eq.s32.totalorder %s14, 0
      %p56 = por %p54, %p55
      %p57 = scmp.ne.s32.totalorder %s43, %s44
      %p58 = scmp.eq.s32.totalorder %s15, 3
      %p59 = por %p57, %p58
      %p61 = scmp.ne.s32.totalorder %s44, %s60
      %p62 = scmp.eq.s32.totalorder %s15, 0
      %p63 = por %p61, %p62
      %s64 = ssub.s32 %s18, %s27
      %s65 = ssub.s32 %s17, %s31
      %s66 = sor.u32 %s64, %s65
      %p67 = scmp.eq.s32.totalorder %s66, 0
      %s69 = sadd.s32 %s68, 1
      %s70 = scalar_select %p67, %s68, %s69
      %p73 = pneg %p67
      %p74 = scmp.eq.s32.totalorder %s9, 3
      %p75 = por %p73, %p74
      %p76 = scmp.ne.s32.totalorder %s68, %s71
      %p77 = scmp.eq.s32.totalorder %s9, 0
      %p78 = por %p76, %p77
      %p79 = scmp.ne.s32.totalorder %s68, %s71
      %p80 = scmp.eq.s32.totalorder %s14, 3
      %p81 = por %p79, %p80
      %p82 = scmp.ne.s32.totalorder %s71, %s72
      %p83 = scmp.eq.s32.totalorder %s14, 0
      %p84 = por %p82, %p83
      %p85 = scmp.ne.s32.totalorder %s71, %s72
      %p86 = scmp.eq.s32.totalorder %s15, 3
      %p87 = por %p85, %p86
      %p89 = scmp.ne.s32.totalorder %s72, %s88
      %p90 = scmp.eq.s32.totalorder %s15, 0
      %p91 = por %p89, %p90
      %s92 = ssub.s32 %s17, %s31
      %p93 = scmp.eq.s32.totalorder %s92, 0
      %s95 = sadd.s32 %s94, 1
      %s96 = scalar_select %p93, %s94, %s95
      %p99 = pneg %p93
      %p100 = scmp.eq.s32.totalorder %s9, 3
      %p101 = por %p99, %p100
      %p102 = scmp.ne.s32.totalorder %s94, %s97
      %p103 = scmp.eq.s32.totalorder %s9, 0
      %p104 = por %p102, %p103
      %p105 = scmp.ne.s32.totalorder %s94, %s97
      %p106 = scmp.eq.s32.totalorder %s14, 3
      %p107 = por %p105, %p106
      %p108 = scmp.ne.s32.totalorder %s97, %s98
      %p109 = scmp.eq.s32.totalorder %s14, 0
      %p110 = por %p108, %p109
      %p111 = scmp.ne.s32.totalorder %s97, %s98
      %p112 = scmp.eq.s32.totalorder %s15, 3
      %p113 = por %p111, %p112
      %p115 = scmp.ne.s32.totalorder %s98, %s114
      %p116 = scmp.eq.s32.totalorder %s15, 0
      %p117 = por %p115, %p116
      %s118 = ssub.s32 %s16, %s35
      %s119 = ssub.s32 %s17, %s31
      %s120 = sor.u32 %s118, %s119
      %p121 = scmp.eq.s32.totalorder %s120, 0
      %s123 = sadd.s32 %s122, 1
      %s124 = scalar_select %p121, %s122, %s123
      %p127 = pneg %p121
      %p128 = scmp.eq.s32.totalorder %s9, 3
      %p129 = por %p127, %p128
      %p130 = scmp.ne.s32.totalorder %s122, %s125
      %p131 = scmp.eq.s32.totalorder %s9, 0
      %p132 = por %p130, %p131
      %p133 = scmp.ne.s32.totalorder %s122, %s125
      %p134 = scmp.eq.s32.totalorder %s14, 3
      %p135 = por %p133, %p134
      %p136 = scmp.ne.s32.totalorder %s125, %s126
      %p137 = scmp.eq.s32.totalorder %s14, 0
      %p138 = por %p136, %p137
      %p139 = scmp.ne.s32.totalorder %s125, %s126
      %p140 = scmp.eq.s32.totalorder %s15, 3
      %p141 = por %p139, %p140
      %p143 = scmp.ne.s32.totalorder %s126, %s142
      %p144 = scmp.eq.s32.totalorder %s15, 0
      %p145 = por %p143, %p144
      %p146 = scmp.le.s32.totalorder 1, %s9
      %p147 = scmp.lt.s32.totalorder %s9, 5
      %p148 = pnand %p146, %p147
      %p149 = pneg %p148
      // Predicated region
      $region9: #{forward.5} parent=5 // pred_check
        _
      $region10: #{forward.5} parent=5 // pred_check_branch
        %151 = sbr.rel (%p148) target = $region12
      $region11: #{forward.5} parent=5 // pred_region
        %s152 = ssub.s32 %s9, 1
        // Predicated region
        $region13: #{forward.5} parent=11 // pred_check
          %p153 = pneg %p110
        $region14: #{forward.5} parent=11 // pred_check_branch
          %155 = sbr.rel (%p153) target = $region16
        $region15: #{forward.5} parent=11 // pred_region
          %p156 = scmp.lt.s32.totalorder %s20, 0
          %s157 = scalar_select %p156, %s20, 0
          %s158 = scalar_lea.vmem %s2, %s157
        $region16: #{forward.5} parent=11 // pred_fallthru
          _
      $region12: #{forward.5} parent=5 // pred_fallthru
        _
      %p159 = scmp.lt.s32.totalorder %s9, 4
      // Predicated region
      $region17: #{forward.5} parent=5 // pred_check
        %p160 = pneg %p159
      $region18: #{forward.5} parent=5 // pred_check_branch
        %162 = sbr.rel (%p160) target = $region20
      $region19: #{forward.5} parent=5 // pred_region
        // Predicated region
        $region21: #{forward.5} parent=19 // pred_check
          %p163 = pneg %p50
        $region22: #{forward.5} parent=19 // pred_check_branch
          %165 = sbr.rel (%p163) target = $region24
        $region23: #{forward.5} parent=19 // pred_region
          %s166 = sand.u32 %s40, 1
          %s167 = sand.u32 %s40, 1
          %s168 = smul.addr %s167, 48
          %s169 = scalar_lea.vmem [#allocation3], %s168
          %s170 = smul.u32 3, %s16
          %s171 = smul.u32 4, %s18
          %s172 = smul.addr %s170, 16
          %s173 = sadd.s32 %s171, %s172
          %s174 = smul.addr %s173, 4
          %s175 = scalar_lea.vmem %s0, %s174
          // Predicated region
          $region25: #{forward.5} parent=23 // pred_check
            _
          $region26: #{forward.5} parent=23 // pred_check_branch
            %177 = sbr.rel (0) target = $region28
          $region27: #{forward.5} parent=23 // pred_region
            // Predicated region
            $region29: #{forward.5} parent=27 // pred_check
              _
            $region30: #{forward.5} parent=27 // pred_check_branch
              %179 = sbr.rel (0) target = $region32
            $region31: #{forward.5} parent=27 // pred_region
              loop: start=0, step=1, limit=1
              $region33: #{forward.5} parent=31 // loop_pre_header
                _
              $region34: #{forward.5} parent=31 // loop_header
                %s181 = sphi 0, %s185
                %p182 = scmp.ge.s32.totalorder %s181, 1
                %s186 = sphi %s175, %s175
                %s187 = sphi %s169, %s169
              $region35: #{forward.5} parent=31 // loop_header_branch
                %184 = sbr.rel (%p182) target = $region39
              $region36: #{forward.5} parent=31 // loop_body
                %v188 = vld [vmem:[%s186] sm:$0xff]
                %189 = vst [vmem:[%s187] sm:$0xff] %v188
                %v190 = vld [vmem:[%s186 + $0x8] sm:$0xff]
                %191 = vst [vmem:[%s187 + $0x8] sm:$0xff] %v190
                %v192 = vld [vmem:[%s186 + $0x40] sm:$0xff]
                %193 = vst [vmem:[%s187 + $0x10] sm:$0xff] %v192
                %v194 = vld [vmem:[%s186 + $0x48] sm:$0xff]
                %195 = vst [vmem:[%s187 + $0x18] sm:$0xff] %v194
                %v196 = vld [vmem:[%s186 + $0x80] sm:$0xff]
                %197 = vst [vmem:[%s187 + $0x20] sm:$0xff] %v196
                %v198 = vld [vmem:[%s186 + $0x88] sm:$0xff]
                %199 = vst [vmem:[%s187 + $0x28] sm:$0xff] %v198
              $region37: #{forward.5} parent=31 // loop_footer
                %s185 = sadd.s32 1, %s181
              $region38: #{forward.5} parent=31 // loop_footer_branch
                %180 = sbr.rel target = $region34
              $region39: #{forward.5} parent=31 // loop_exit
                _
            $region32: #{forward.5} parent=27 // pred_fallthru
              _
            // Predicated region
            $region40: #{forward.5} parent=27 // pred_check
              _
            $region41: #{forward.5} parent=27 // pred_check_branch
              %201 = sbr.rel target = $region43
            $region42: #{forward.5} parent=27 // pred_region
              _
            $region43: #{forward.5} parent=27 // pred_fallthru
              _
          $region28: #{forward.5} parent=23 // pred_fallthru
            _
          %202 = vnop
        $region24: #{forward.5} parent=19 // pred_fallthru
          _
        // Predicated region
        $region44: #{forward.5} parent=19 // pred_check
          %p203 = pneg %p78
        $region45: #{forward.5} parent=19 // pred_check_branch
          %205 = sbr.rel (%p203) target = $region47
        $region46: #{forward.5} parent=19 // pred_region
          %s206 = smul.u32 64, %s18
          %p207 = scmp.lt.s32.totalorder %s206, 255
          %s208 = scalar_select %p207, %s206, 255
          %p209 = scmp.lt.s32.totalorder %s17, 0
          %s210 = scalar_select %p209, %s17, 0
          %s211 = sadd.s32 %s210, %s208
          %s212 = smul.addr %s211, 4
          %s213 = scalar_lea.vmem %s1, %s212
          %s214 = smul.u32 64, %s18
        $region47: #{forward.5} parent=19 // pred_fallthru
          _
      $region20: #{forward.5} parent=5 // pred_fallthru
        _
      %p215 = scmp.le.s32.totalorder 1, %s9
      %p216 = scmp.lt.s32.totalorder %s9, 5
      %p217 = pnand %p215, %p216
      %p218 = pneg %p217
      // Predicated region
      $region48: #{forward.5} parent=5 // pred_check
        _
      $region49: #{forward.5} parent=5 // pred_check_branch
        %220 = sbr.rel (%p217) target = $region51
      $region50: #{forward.5} parent=5 // pred_region
        %s221 = ssub.s32 %s9, 1
        %s222 = sand.u32 %s43, 1
        %s223 = sand.u32 %s43, 1
        %s224 = smul.addr %s223, 48
        %s225 = scalar_lea.vmem [#allocation3], %s224
        // Predicated region
        $region52: #{forward.5} parent=50 // pred_check
          %p226 = pneg %p56
        $region53: #{forward.5} parent=50 // pred_check_branch
          %228 = sbr.rel (%p226) target = $region55
        $region54: #{forward.5} parent=50 // pred_region
          _
        $region55: #{forward.5} parent=50 // pred_fallthru
          _
        %s229 = sand.u32 %s43, 1
        %s230 = sand.u32 %s43, 1
        %s231 = smul.addr %s230, 48
        %s232 = scalar_lea.vmem [#allocation3], %s231
        %p233 = pneg %p56
        %p234 = pneg %p53
        %s235 = smul.u32 64, %s21
        %p236 = scmp.lt.s32.totalorder %s235, 255
        %s237 = scalar_select %p236, %s235, 255
        %p238 = scmp.lt.s32.totalorder %s20, 0
        %s239 = scalar_select %p238, %s20, 0
        %s240 = sadd.s32 %s239, %s237
        %s241 = smul.addr %s240, 4
        %s242 = scalar_lea.vmem %s1, %s241
        %p243 = pneg %p84
        %p244 = pneg %p81
        %p245 = scmp.lt.s32.totalorder %s20, 0
        %s246 = scalar_select %p245, %s20, 0
        %s247 = scalar_lea.vmem %s2, %s246
        %p248 = pneg %p110
        %p249 = pneg %p107
        %p250 = pneg %p138
        %p251 = pneg %p135
        %s252 = smul.u32 3, %s19
        %p253 = scmp.lt.s32.totalorder %s252, 2
        %s254 = scalar_select %p253, %s252, 2
        %p255 = scmp.lt.s32.totalorder %s20, 0
        %s256 = scalar_select %p255, %s20, 0
        %s257 = sadd.s32 %s256, %s254
        %s258 = smul.addr %s257, 4
        %s259 = scalar_lea.vmem %s3, %s258
        %s260 = smul.u32 3, %s19
        %s261 = smul.u32 4, %s21
        %s262 = smul.u32 64, %s21
        %p263 = scmp.lt.s32.totalorder %s262, 255
        %s264 = scalar_select %p263, %s262, 255
        %p265 = scmp.lt.s32.totalorder %s20, 0
        %s266 = scalar_select %p265, %s20, 0
        %s267 = sadd.s32 %s266, %s264
        %s268 = smul.addr %s267, 4
        %s269 = scalar_lea.vmem %s1, %s268
        %s270 = smul.u32 64, %s21
        %p271 = scmp.lt.s32.totalorder %s20, 0
        %s272 = scalar_select %p271, %s20, 0
        %s273 = scalar_lea.vmem %s2, %s272
        %s274 = smul.u32 3, %s19
        %p275 = scmp.lt.s32.totalorder %s274, 2
        %s276 = scalar_select %p275, %s274, 2
        %p277 = scmp.lt.s32.totalorder %s20, 0
        %s278 = scalar_select %p277, %s20, 0
        %s279 = sadd.s32 %s278, %s276
        %s280 = smul.addr %s279, 4
        %s281 = scalar_lea.vmem %s3, %s280
        %s282 = smul.u32 3, %s19
        %p284 = scmp.eq.s32.totalorder %s21, 0
        // Predicated region
        $region56: #{forward.5} parent=50 // pred_check
          %p285 = pneg %p284
        $region57: #{forward.5} parent=50 // pred_check_branch
          %287 = sbr.rel (%p285) target = $region59
        $region58: #{forward.5} parent=50 // pred_region
          %288 = vst [vmem:[#allocation2] sm:$0xff] 0.0
          %289 = vst [vmem:[#allocation2 + $0x8] sm:$0xff] 0.0
          %290 = vst [vmem:[#allocation2 + $0x10] sm:$0x3] 0.0
        $region59: #{forward.5} parent=50 // pred_fallthru
          _
        %v291 = vld [vmem:[#allocation2] sm:$0xff]
        %v292 = vld [vmem:[#allocation2 + $0x8] sm:$0xff]
        %v293 = vld [vmem:[#allocation2 + $0x10] sm:$0x3]
        %v294 = vld [vmem:[%s225] sm:$0xff]
        %v295 = vld [vmem:[%s225 + $0x8] sm:$0xff]
        %v296 = vld [vmem:[%s225 + $0x10] sm:$0xff]
        %v297 = vld [vmem:[%s225 + $0x18] sm:$0xff]
        %v298 = vld [vmem:[%s225 + $0x20] sm:$0x11]
        %v299 = vld [vmem:[%s225 + $0x28] sm:$0x11]
        %v300 = vld [vmem:[%s269] sm:$0xf]
        %v301 = vld [vmem:[%s269 + $0x4] sm:$0xf]
        %v302 = vld [vmem:[%s269 + $0x8] sm:$0xf]
        %v303 = vld [vmem:[%s269 + $0xc] sm:$0xf]
        %v304 = vld [vmem:[%s269 + $0x10] sm:$0xf]
        %v305 = vld [vmem:[%s269 + $0x14] sm:$0xf]
        %v306 = vld [vmem:[%s269 + $0x18] sm:$0xf]
        %v307 = vld [vmem:[%s269 + $0x1c] sm:$0xf]
        %v308 = vld [vmem:[%s269 + $0x20] sm:$0xf]
        %v309 = vld [vmem:[%s269 + $0x24] sm:$0xf]
        %v310 = vld [vmem:[%s269 + $0x28] sm:$0xf]
        %v311 = vld [vmem:[%s269 + $0x2c] sm:$0xf]
        %v312 = vld [vmem:[%s269 + $0x30] sm:$0xf]
        %v313 = vld [vmem:[%s269 + $0x34] sm:$0xf]
        %v314 = vld [vmem:[%s269 + $0x38] sm:$0xf]
        %v315 = vld [vmem:[%s269 + $0x3c] sm:$0xf]
        %v316 = vld [vmem:[%s269 + $0x40] sm:$0xf]
        %v317 = vld [vmem:[%s269 + $0x44] sm:$0xf]
        %v318 = vld [vmem:[%s269 + $0x48] sm:$0xf]
        %v319 = vld [vmem:[%s269 + $0x4c] sm:$0xf]
        %v320 = vld [vmem:[%s269 + $0x50] sm:$0xf]
        %v321 = vld [vmem:[%s269 + $0x54] sm:$0xf]
        %v322 = vld [vmem:[%s269 + $0x58] sm:$0xf]
        %v323 = vld [vmem:[%s269 + $0x5c] sm:$0xf]
        %v324 = vld [vmem:[%s269 + $0x60] sm:$0xf]
        %v325 = vld [vmem:[%s269 + $0x64] sm:$0xf]
        %v326 = vld [vmem:[%s269 + $0x68] sm:$0xf]
        %v327 = vld [vmem:[%s269 + $0x6c] sm:$0xf]
        %v328 = vld [vmem:[%s269 + $0x70] sm:$0xf]
        %v329 = vld [vmem:[%s269 + $0x74] sm:$0xf]
        %v330 = vld [vmem:[%s269 + $0x78] sm:$0xf]
        %v331 = vld [vmem:[%s269 + $0x7c] sm:$0xf]
        %v332 = vld [vmem:[%s269 + $0x80] sm:$0xf]
        %v333 = vld [vmem:[%s269 + $0x84] sm:$0xf]
        %v334 = vld [vmem:[%s269 + $0x88] sm:$0xf]
        %v335 = vld [vmem:[%s269 + $0x8c] sm:$0xf]
        %v336 = vld [vmem:[%s269 + $0x90] sm:$0xf]
        %v337 = vld [vmem:[%s269 + $0x94] sm:$0xf]
        %v338 = vld [vmem:[%s269 + $0x98] sm:$0xf]
        %v339 = vld [vmem:[%s269 + $0x9c] sm:$0xf]
        %v340 = vld [vmem:[%s269 + $0xa0] sm:$0xf]
        %v341 = vld [vmem:[%s269 + $0xa4] sm:$0xf]
        %v342 = vld [vmem:[%s269 + $0xa8] sm:$0xf]
        %v343 = vld [vmem:[%s269 + $0xac] sm:$0xf]
        %v344 = vld [vmem:[%s269 + $0xb0] sm:$0xf]
        %v345 = vld [vmem:[%s269 + $0xb4] sm:$0xf]
        %v346 = vld [vmem:[%s269 + $0xb8] sm:$0xf]
        %v347 = vld [vmem:[%s269 + $0xbc] sm:$0xf]
        %v348 = vld [vmem:[%s269 + $0xc0] sm:$0xf]
        %v349 = vld [vmem:[%s269 + $0xc4] sm:$0xf]
        %v350 = vld [vmem:[%s269 + $0xc8] sm:$0xf]
        %v351 = vld [vmem:[%s269 + $0xcc] sm:$0xf]
        %v352 = vld [vmem:[%s269 + $0xd0] sm:$0xf]
        %v353 = vld [vmem:[%s269 + $0xd4] sm:$0xf]
        %v354 = vld [vmem:[%s269 + $0xd8] sm:$0xf]
        %v355 = vld [vmem:[%s269 + $0xdc] sm:$0xf]
        %v356 = vld [vmem:[%s269 + $0xe0] sm:$0xf]
        %v357 = vld [vmem:[%s269 + $0xe4] sm:$0xf]
        %v358 = vld [vmem:[%s269 + $0xe8] sm:$0xf]
        %v359 = vld [vmem:[%s269 + $0xec] sm:$0xf]
        %v360 = vld [vmem:[%s269 + $0xf0] sm:$0xf]
        %v361 = vld [vmem:[%s269 + $0xf4] sm:$0xf]
        %v362 = vld [vmem:[%s269 + $0xf8] sm:$0xf]
        %v363 = vld [vmem:[%s269 + $0xfc] sm:$0xf]
        %v370 = vunpack.c.l.b16 %v294
        %v371 = vunpack.c.h.b16 %v294
        %v372 = vunpack.c.l.b16 %v295
        %v373 = vunpack.c.h.b16 %v295
        %v374 = vunpack.c.l.b16 %v296
        %v375 = vunpack.c.h.b16 %v296
        %v376 = vunpack.c.l.b16 %v297
        %v377 = vunpack.c.h.b16 %v297
        %v378 = vunpack.c.l.b16 %v298
        %v379 = vunpack.c.h.b16 %v298
        %v380 = vunpack.c.l.b16 %v299
        %v381 = vunpack.c.h.b16 %v299
        %v382 = vpack.c.b16 %v374, %v370
        %v383 = vpack.c.b16 %v375, %v371
        %v384 = vpack.c.b16 %v376, %v372
        %v385 = vpack.c.b16 %v377, %v373
        %v386 = vpack.c.b16 %v378, %v378
        %v387 = vpack.c.b16 %v379, %v379
        %v388 = vpack.c.b16 %v380, %v380
        %v389 = vpack.c.b16 %v381, %v381
        %v462 = vunpack.c.l.b16 %v300
        %v463 = vunpack.c.l.b16 %v301
        %v464 = vunpack.c.l.b16 %v302
        %v465 = vunpack.c.l.b16 %v303
        %v466 = vunpack.c.l.b16 %v304
        %v467 = vunpack.c.l.b16 %v305
        %v468 = vunpack.c.l.b16 %v306
        %v469 = vunpack.c.l.b16 %v307
        %v470 = vunpack.c.l.b16 %v308
        %v471 = vunpack.c.l.b16 %v309
        %v472 = vunpack.c.l.b16 %v310
        %v473 = vunpack.c.l.b16 %v311
        %v474 = vunpack.c.l.b16 %v312
        %v475 = vunpack.c.l.b16 %v313
        %v476 = vunpack.c.l.b16 %v314
        %v477 = vunpack.c.l.b16 %v315
        %v478 = vunpack.c.l.b16 %v316
        %v479 = vunpack.c.l.b16 %v317
        %v480 = vunpack.c.l.b16 %v318
        %v481 = vunpack.c.l.b16 %v319
        %v482 = vunpack.c.l.b16 %v320
        %v483 = vunpack.c.l.b16 %v321
        %v484 = vunpack.c.l.b16 %v322
        %v485 = vunpack.c.l.b16 %v323
        %v486 = vunpack.c.l.b16 %v324
        %v487 = vunpack.c.l.b16 %v325
        %v488 = vunpack.c.l.b16 %v326
        %v489 = vunpack.c.l.b16 %v327
        %v490 = vunpack.c.l.b16 %v328
        %v491 = vunpack.c.l.b16 %v329
        %v492 = vunpack.c.l.b16 %v330
        %v493 = vunpack.c.l.b16 %v331
        %v494 = vunpack.c.l.b16 %v332
        %v495 = vunpack.c.l.b16 %v333
        %v496 = vunpack.c.l.b16 %v334
        %v497 = vunpack.c.l.b16 %v335
        %v498 = vunpack.c.l.b16 %v336
        %v499 = vunpack.c.l.b16 %v337
        %v500 = vunpack.c.l.b16 %v338
        %v501 = vunpack.c.l.b16 %v339
        %v502 = vunpack.c.l.b16 %v340
        %v503 = vunpack.c.l.b16 %v341
        %v504 = vunpack.c.l.b16 %v342
        %v505 = vunpack.c.l.b16 %v343
        %v506 = vunpack.c.l.b16 %v344
        %v507 = vunpack.c.l.b16 %v345
        %v508 = vunpack.c.l.b16 %v346
        %v509 = vunpack.c.l.b16 %v347
        %v510 = vunpack.c.l.b16 %v348
        %v511 = vunpack.c.l.b16 %v349
        %v512 = vunpack.c.l.b16 %v350
        %v513 = vunpack.c.l.b16 %v351
        %v514 = vunpack.c.l.b16 %v352
        %v515 = vunpack.c.l.b16 %v353
        %v516 = vunpack.c.l.b16 %v354
        %v517 = vunpack.c.l.b16 %v355
        %v518 = vunpack.c.l.b16 %v356
        %v519 = vunpack.c.l.b16 %v357
        %v520 = vunpack.c.l.b16 %v358
        %v521 = vunpack.c.l.b16 %v359
        %v522 = vunpack.c.l.b16 %v360
        %v523 = vunpack.c.l.b16 %v361
        %v524 = vunpack.c.l.b16 %v362
        %v525 = vunpack.c.l.b16 %v363
        %v526 = vpack.c.b16 %v463, %v462
        %v527 = vpack.c.b16 %v465, %v464
        %v528 = vpack.c.b16 %v467, %v466
        %v529 = vpack.c.b16 %v469, %v468
        %v530 = vpack.c.b16 %v471, %v470
        %v531 = vpack.c.b16 %v473, %v472
        %v532 = vpack.c.b16 %v475, %v474
        %v533 = vpack.c.b16 %v477, %v476
        %v534 = vpack.c.b16 %v479, %v478
        %v535 = vpack.c.b16 %v481, %v480
        %v536 = vpack.c.b16 %v483, %v482
        %v537 = vpack.c.b16 %v485, %v484
        %v538 = vpack.c.b16 %v487, %v486
        %v539 = vpack.c.b16 %v489, %v488
        %v540 = vpack.c.b16 %v491, %v490
        %v541 = vpack.c.b16 %v493, %v492
        %v542 = vpack.c.b16 %v495, %v494
        %v543 = vpack.c.b16 %v497, %v496
        %v544 = vpack.c.b16 %v499, %v498
        %v545 = vpack.c.b16 %v501, %v500
        %v546 = vpack.c.b16 %v503, %v502
        %v547 = vpack.c.b16 %v505, %v504
        %v548 = vpack.c.b16 %v507, %v506
        %v549 = vpack.c.b16 %v509, %v508
        %v550 = vpack.c.b16 %v511, %v510
        %v551 = vpack.c.b16 %v513, %v512
        %v552 = vpack.c.b16 %v515, %v514
        %v553 = vpack.c.b16 %v517, %v516
        %v554 = vpack.c.b16 %v519, %v518
        %v555 = vpack.c.b16 %v521, %v520
        %v556 = vpack.c.b16 %v523, %v522
        %v557 = vpack.c.b16 %v525, %v524
        %590 = vmatprep.subr.bf16.mxu0 0
        %591 = vmatpush1.bf16.msra.mxu0 %v526
        %592 = vmatprep.subr.bf16.mxu0 0
        %593 = vmatpush1.bf16.msra.mxu0 %v527
        %594 = vmatprep.subr.bf16.mxu0 0
        %595 = vmatpush1.bf16.msra.mxu0 %v528
        %596 = vmatprep.subr.bf16.mxu0 0
        %597 = vmatpush1.bf16.msra.mxu0 %v529
        %598 = vmatprep.subr.bf16.mxu0 0
        %599 = vmatpush1.bf16.msra.mxu0 %v530
        %600 = vmatprep.subr.bf16.mxu0 0
        %601 = vmatpush1.bf16.msra.mxu0 %v531
        %602 = vmatprep.subr.bf16.mxu0 0
        %603 = vmatpush1.bf16.msra.mxu0 %v532
        %604 = vmatprep.subr.bf16.mxu0 0
        %605 = vmatpush1.bf16.msra.mxu0 %v533
        %606 = vmatprep.subr.bf16.mxu0 0
        %607 = vmatpush1.bf16.msra.mxu0 %v534
        %608 = vmatprep.subr.bf16.mxu0 0
        %609 = vmatpush1.bf16.msra.mxu0 %v535
        %610 = vmatprep.subr.bf16.mxu0 0
        %611 = vmatpush1.bf16.msra.mxu0 %v536
        %612 = vmatprep.subr.bf16.mxu0 0
        %613 = vmatpush1.bf16.msra.mxu0 %v537
        %614 = vmatprep.subr.bf16.mxu0 0
        %615 = vmatpush1.bf16.msra.mxu0 %v538
        %616 = vmatprep.subr.bf16.mxu0 0
        %617 = vmatpush1.bf16.msra.mxu0 %v539
        %618 = vmatprep.subr.bf16.mxu0 0
        %619 = vmatpush1.bf16.msra.mxu0 %v540
        %620 = vmatprep.subr.bf16.mxu0 0
        %621 = vmatpush1.bf16.msra.mxu0 %v541
        %622 = vmatprep.mubr.bf16.mxu0 %v383
        %623 = vmatmul.mubr.bf16.gmra.mrb[0].mxu0 %v382
        %v624 = vpop.f32.mrb[0].mxu0
        %v625 = vadd.f32 0.0, %v624
        %v626 = vpop.f32.mrb[0].mxu0
        %v627 = vpop.f32.mrb[0].mxu0
        %v628 = vadd.f32 0.0, %v627
        %v629 = vpop.f32.mrb[0].mxu0
        %630 = vmatprep.mubr.bf16.mxu0 %v387
        %631 = vmatmul.mubr.bf16.gmra.mrb[0].mxu0 %v386
        %v632 = vpop.f32.mrb[0].mxu0
        %v633 = vadd.f32 0.0, %v632
        %v634 = vpop.f32.mrb[0].mxu0
        %v635 = vpop.f32.mrb[0].mxu0
        %v636 = vpop.f32.mrb[0].mxu0
        %637 = vdwg.mxu0
        %638 = vmatprep.subr.bf16.mxu0 0
        %639 = vmatpush1.bf16.msra.mxu0 %v542
        %640 = vmatprep.subr.bf16.mxu0 0
        %641 = vmatpush1.bf16.msra.mxu0 %v543
        %642 = vmatprep.subr.bf16.mxu0 0
        %643 = vmatpush1.bf16.msra.mxu0 %v544
        %644 = vmatprep.subr.bf16.mxu0 0
        %645 = vmatpush1.bf16.msra.mxu0 %v545
        %646 = vmatprep.subr.bf16.mxu0 0
        %647 = vmatpush1.bf16.msra.mxu0 %v546
        %648 = vmatprep.subr.bf16.mxu0 0
        %649 = vmatpush1.bf16.msra.mxu0 %v547
        %650 = vmatprep.subr.bf16.mxu0 0
        %651 = vmatpush1.bf16.msra.mxu0 %v548
        %652 = vmatprep.subr.bf16.mxu0 0
        %653 = vmatpush1.bf16.msra.mxu0 %v549
        %654 = vmatprep.subr.bf16.mxu0 0
        %655 = vmatpush1.bf16.msra.mxu0 %v550
        %656 = vmatprep.subr.bf16.mxu0 0
        %657 = vmatpush1.bf16.msra.mxu0 %v551
        %658 = vmatprep.subr.bf16.mxu0 0
        %659 = vmatpush1.bf16.msra.mxu0 %v552
        %660 = vmatprep.subr.bf16.mxu0 0
        %661 = vmatpush1.bf16.msra.mxu0 %v553
        %662 = vmatprep.subr.bf16.mxu0 0
        %663 = vmatpush1.bf16.msra.mxu0 %v554
        %664 = vmatprep.subr.bf16.mxu0 0
        %665 = vmatpush1.bf16.msra.mxu0 %v555
        %666 = vmatprep.subr.bf16.mxu0 0
        %667 = vmatpush1.bf16.msra.mxu0 %v556
        %668 = vmatprep.subr.bf16.mxu0 0
        %669 = vmatpush1.bf16.msra.mxu0 %v557
        %670 = vmatprep.mubr.bf16.mxu0 %v385
        %671 = vmatmul.mubr.bf16.gmra.mrb[0].mxu0 %v384
        %v672 = vpop.f32.mrb[0].mxu0
        %v673 = vadd.f32 %v625, %v672
        %v674 = vpop.f32.mrb[0].mxu0
        %v675 = vpop.f32.mrb[0].mxu0
        %v676 = vadd.f32 %v628, %v675
        %v677 = vpop.f32.mrb[0].mxu0
        %678 = vmatprep.mubr.bf16.mxu0 %v389
        %679 = vmatmul.mubr.bf16.gmra.mrb[0].mxu0 %v388
        %v680 = vpop.f32.mrb[0].mxu0
        %v681 = vadd.f32 %v633, %v680
        %v682 = vpop.f32.mrb[0].mxu0
        %v683 = vpop.f32.mrb[0].mxu0
        %v684 = vpop.f32.mrb[0].mxu0
        %685 = vdwg.mxu0
        %v686 = vadd.f32 %v291, %v673
        %v687 = vadd.f32 %v292, %v676
        %v688 = vadd.f32 %v293, %v681
        %689 = vst [vmem:[#allocation2] sm:$0xff] %v686
        %690 = vst [vmem:[#allocation2 + $0x8] sm:$0xff] %v687
        %691 = vst [vmem:[#allocation2 + $0x10] sm:$0x3] %v688
        %p692 = scmp.eq.s32.totalorder %s21, 3
        // Predicated region
        $region60: #{forward.5} parent=50 // pred_check
          %p693 = pneg %p692
        $region61: #{forward.5} parent=50 // pred_check_branch
          %695 = sbr.rel (%p693) target = $region63
        $region62: #{forward.5} parent=50 // pred_region
          %v696 = vld [vmem:[#allocation2] sm:$0xff]
          %v697 = vld [vmem:[#allocation2 + $0x8] sm:$0xff]
          %v698 = vld [vmem:[#allocation2 + $0x10] sm:$0x3]
          %v699 = vld [vmem:[%s273] sm:$0x1]
          %v701 = vlaneseq
          %v702 = vshrl.u32 %v701, 7
          %v703 = vsub.s32 0, %v702
          %v704 = vrot.slane %v699, %v703
          %v706 = vadd.f32 %v696, %v704
          %v707 = vadd.f32 %v697, %v704
          %v708 = vadd.f32 %v698, %v704
          %v709 = vmax.f32 %v706, 0.0
          %v710 = vmax.f32 %v707, 0.0
          %v711 = vmax.f32 %v708, 0.0
          %v712 = vpack.c.bf16 %v710, %v709
          %v713 = vpack.c.bf16 %v711, %v711
          %v716 = vunpack.c.l.b16 %v712
          %v717 = vunpack.c.h.b16 %v712
          %v718 = vunpack.c.l.b16 %v713
          %v719 = vpack.c.b16 %v716, %v716
          %v720 = vpack.c.b16 %v717, %v717
          %v721 = vpack.c.b16 %v718, %v718
          %725 = vst [vmem:[%s281] sm:$0xf] %v719
          %726 = vst [vmem:[%s281 + $0x4] sm:$0xf] %v720
          %727 = vst [vmem:[%s281 + $0x8] sm:$0x1] %v721
        $region63: #{forward.5} parent=50 // pred_fallthru
          _
        %s728 = smul.u32 3, %s19
        %p729 = scmp.lt.s32.totalorder %s728, 2
        %s730 = scalar_select %p729, %s728, 2
        %p731 = scmp.lt.s32.totalorder %s20, 0
        %s732 = scalar_select %p731, %s20, 0
        %s733 = sadd.s32 %s732, %s730
        %s734 = smul.addr %s733, 4
        %s735 = scalar_lea.vmem %s3, %s734
        // Predicated region
        $region64: #{forward.5} parent=50 // pred_check
          %p736 = pneg %p135
        $region65: #{forward.5} parent=50 // pred_check_branch
          %738 = sbr.rel (%p736) target = $region67
        $region66: #{forward.5} parent=50 // pred_region
          %s739 = smul.u32 3, %s19
        $region67: #{forward.5} parent=50 // pred_fallthru
          _
        // Predicated region
        $region68: #{forward.5} parent=50 // pred_check
          %p740 = pneg %p135
        $region69: #{forward.5} parent=50 // pred_check_branch
          %742 = sbr.rel (%p740) target = $region71
        $region70: #{forward.5} parent=50 // pred_region
          %s743 = smul.u32 3, %s19
          %p744 = scmp.lt.s32.totalorder %s743, 2
          %s745 = scalar_select %p744, %s743, 2
          %p746 = scmp.lt.s32.totalorder %s20, 0
          %s747 = scalar_select %p746, %s20, 0
          %s748 = sadd.s32 %s747, %s745
          %s749 = smul.addr %s748, 4
          %s750 = scalar_lea.vmem %s3, %s749
        $region71: #{forward.5} parent=50 // pred_fallthru
          _
      $region51: #{forward.5} parent=5 // pred_fallthru
        _
      %p751 = scmp.le.s32.totalorder 2, %s9
      // Predicated region
      $region72: #{forward.5} parent=5 // pred_check
        %p752 = pneg %p751
      $region73: #{forward.5} parent=5 // pred_check_branch
        %754 = sbr.rel (%p752) target = $region75
      $region74: #{forward.5} parent=5 // pred_region
        %s755 = ssub.s32 %s9, 2
      $region75: #{forward.5} parent=5 // pred_fallthru
        _
    $region6: #{forward.5} parent=1 // loop_footer
      %s13 = sadd.s32 1, %s9
    $region7: #{forward.5} parent=1 // loop_footer_branch
      %8 = sbr.rel target = $region3
    $region8: #{forward.5} parent=1 // loop_exit
      _

// kernel: forward.7
$region0: #{forward.7}
  #allocation0 [shape = 'u32[]', space=smem, size = 0x4, offset = 0x4, fixed_abs, tag = 'smem constant byte address 0x4 - core index']
  #allocation1 [shape = 'u32[144,128]{1,0:T(1,128)}', space=vmem, size = 0x12000, scoped, tag = 'internal scratch']
  %s0 = inlined_call_operand.vmem [shape: bf16[2,128], index: 0, kind: input, shape index: {}]
  %s1 = inlined_call_operand.vmem [shape: bf16[128,1024], index: 1, kind: input, shape index: {}]
  %s2 = inlined_call_operand.vmem [shape: f32[1,1024], index: 2, kind: input, shape index: {}]
  %s3 = inlined_call_operand.vmem [shape: bf16[1024,512], index: 3, kind: input, shape index: {}]
  %s4 = inlined_call_operand.vmem [shape: f32[1,512], index: 4, kind: input, shape index: {}]
  %s5 = inlined_call_operand.vmem [shape: bf16[512,128], index: 5, kind: input, shape index: {}]
  %s6 = inlined_call_operand.vmem [shape: f32[1,128], index: 6, kind: input, shape index: {}]
  %s7 = inlined_call_operand.vmem [shape: f32[2,128], index: 7, kind: output, shape index: {}]
  %s8 = sld [smem:[#allocation0]]
  $region38: #{forward.7} parent=0
    _
  %s10 = ssub.s32 1, %s8
  %s11 = scalar_select 0, %s10, %s8
  // Predicated region
  $region2: #{forward.7} parent=0 // pred_check
    _
  $region3: #{forward.7} parent=0 // pred_check_branch
    %13 = sbr.rel (0) target = $region5
  $region4: #{forward.7} parent=0 // pred_region
    _
  $region5: #{forward.7} parent=0 // pred_fallthru
    _
  // Predicated region
  $region6: #{forward.7} parent=0 // pred_check
    _
  $region7: #{forward.7} parent=0 // pred_check_branch
    %15 = sbr.rel (0) target = $region9
  $region8: #{forward.7} parent=0 // pred_region
    _
  $region9: #{forward.7} parent=0 // pred_fallthru
    _
  // Predicated region
  $region10: #{forward.7} parent=0 // pred_check
    _
  $region11: #{forward.7} parent=0 // pred_check_branch
    %17 = sbr.rel (0) target = $region13
  $region12: #{forward.7} parent=0 // pred_region
    _
  $region13: #{forward.7} parent=0 // pred_fallthru
    _
  // Predicated region
  $region14: #{forward.7} parent=0 // pred_check
    _
  $region15: #{forward.7} parent=0 // pred_check_branch
    %19 = sbr.rel (0) target = $region17
  $region16: #{forward.7} parent=0 // pred_region
    _
  $region17: #{forward.7} parent=0 // pred_fallthru
    _
  // Predicated region
  $region18: #{forward.7} parent=0 // pred_check
    _
  $region19: #{forward.7} parent=0 // pred_check_branch
    %21 = sbr.rel (0) target = $region21
  $region20: #{forward.7} parent=0 // pred_region
    _
  $region21: #{forward.7} parent=0 // pred_fallthru
    _
  // Predicated region
  $region22: #{forward.7} parent=0 // pred_check
    _
  $region23: #{forward.7} parent=0 // pred_check_branch
    %23 = sbr.rel (0) target = $region25
  $region24: #{forward.7} parent=0 // pred_region
    _
  $region25: #{forward.7} parent=0 // pred_fallthru
    _
  // Predicated region
  $region26: #{forward.7} parent=0 // pred_check
    _
  $region27: #{forward.7} parent=0 // pred_check_branch
    %25 = sbr.rel (0) target = $region29
  $region28: #{forward.7} parent=0 // pred_region
    _
  $region29: #{forward.7} parent=0 // pred_fallthru
    _
  %v27 = vld [vmem:[%s0] sm:$0x1]
  %v28 = vld [vmem:[%s1] sm:$0xff]
  %v29 = vld [vmem:[%s1 + $0x8] sm:$0xff]
  %v30 = vld [vmem:[%s1 + $0x10] sm:$0xff]
  %v31 = vld [vmem:[%s1 + $0x18] sm:$0xff]
  %v32 = vld [vmem:[%s1 + $0x20] sm:$0xff]
  %v33 = vld [vmem:[%s1 + $0x28] sm:$0xff]
  %v34 = vld [vmem:[%s1 + $0x30] sm:$0xff]
  %v35 = vld [vmem:[%s1 + $0x38] sm:$0xff]
  %v36 = vld [vmem:[%s1 + $0x40] sm:$0xff]
  %v37 = vld [vmem:[%s1 + $0x48] sm:$0xff]
  %v38 = vld [vmem:[%s1 + $0x50] sm:$0xff]
  %v39 = vld [vmem:[%s1 + $0x58] sm:$0xff]
  %v40 = vld [vmem:[%s1 + $0x60] sm:$0xff]
  %v41 = vld [vmem:[%s1 + $0x68] sm:$0xff]
  %v42 = vld [vmem:[%s1 + $0x70] sm:$0xff]
  %v43 = vld [vmem:[%s1 + $0x78] sm:$0xff]
  %v44 = vld [vmem:[%s1 + $0x80] sm:$0xff]
  %v45 = vld [vmem:[%s1 + $0x88] sm:$0xff]
  %v46 = vld [vmem:[%s1 + $0x90] sm:$0xff]
  %v47 = vld [vmem:[%s1 + $0x98] sm:$0xff]
  %v48 = vld [vmem:[%s1 + $0xa0] sm:$0xff]
  %v49 = vld [vmem:[%s1 + $0xa8] sm:$0xff]
  %v50 = vld [vmem:[%s1 + $0xb0] sm:$0xff]
  %v51 = vld [vmem:[%s1 + $0xb8] sm:$0xff]
  %v52 = vld [vmem:[%s1 + $0xc0] sm:$0xff]
  %v53 = vld [vmem:[%s1 + $0xc8] sm:$0xff]
  %v54 = vld [vmem:[%s1 + $0xd0] sm:$0xff]
  %v55 = vld [vmem:[%s1 + $0xd8] sm:$0xff]
  %v56 = vld [vmem:[%s1 + $0xe0] sm:$0xff]
  %v57 = vld [vmem:[%s1 + $0xe8] sm:$0xff]
  %v58 = vld [vmem:[%s1 + $0xf0] sm:$0xff]
  %v59 = vld [vmem:[%s1 + $0xf8] sm:$0xff]
  %v60 = vld [vmem:[%s1 + $0x100] sm:$0xff]
  %v61 = vld [vmem:[%s1 + $0x108] sm:$0xff]
  %v62 = vld [vmem:[%s1 + $0x110] sm:$0xff]
  %v63 = vld [vmem:[%s1 + $0x118] sm:$0xff]
  %v64 = vld [vmem:[%s1 + $0x120] sm:$0xff]
  %v65 = vld [vmem:[%s1 + $0x128] sm:$0xff]
  %v66 = vld [vmem:[%s1 + $0x130] sm:$0xff]
  %v67 = vld [vmem:[%s1 + $0x138] sm:$0xff]
  %v68 = vld [vmem:[%s1 + $0x140] sm:$0xff]
  %v69 = vld [vmem:[%s1 + $0x148] sm:$0xff]
  %v70 = vld [vmem:[%s1 + $0x150] sm:$0xff]
  %v71 = vld [vmem:[%s1 + $0x158] sm:$0xff]
  %v72 = vld [vmem:[%s1 + $0x160] sm:$0xff]
  %v73 = vld [vmem:[%s1 + $0x168] sm:$0xff]
  %v74 = vld [vmem:[%s1 + $0x170] sm:$0xff]
  %v75 = vld [vmem:[%s1 + $0x178] sm:$0xff]
  %v76 = vld [vmem:[%s1 + $0x180] sm:$0xff]
  %v77 = vld [vmem:[%s1 + $0x188] sm:$0xff]
  %v78 = vld [vmem:[%s1 + $0x190] sm:$0xff]
  %v79 = vld [vmem:[%s1 + $0x198] sm:$0xff]
  %v80 = vld [vmem:[%s1 + $0x1a0] sm:$0xff]
  %v81 = vld [vmem:[%s1 + $0x1a8] sm:$0xff]
  %v82 = vld [vmem:[%s1 + $0x1b0] sm:$0xff]
  %v83 = vld [vmem:[%s1 + $0x1b8] sm:$0xff]
  %v84 = vld [vmem:[%s1 + $0x1c0] sm:$0xff]
  %v85 = vld [vmem:[%s1 + $0x1c8] sm:$0xff]
  %v86 = vld [vmem:[%s1 + $0x1d0] sm:$0xff]
  %v87 = vld [vmem:[%s1 + $0x1d8] sm:$0xff]
  %v88 = vld [vmem:[%s1 + $0x1e0] sm:$0xff]
  %v89 = vld [vmem:[%s1 + $0x1e8] sm:$0xff]
  %v90 = vld [vmem:[%s1 + $0x1f0] sm:$0xff]
  %v91 = vld [vmem:[%s1 + $0x1f8] sm:$0xff]
  %v92 = vld [vmem:[%s2] sm:$0xff]
  %v94 = vlaneseq
  %v95 = vshrl.u32 %v94, 7
  %v96 = vsub.s32 0, %v95
  %v97 = vrot.slane %v92, %v96
  %v98 = vlaneseq
  %v99 = vshrl.u32 %v98, 7
  %v100 = vsub.s32 1, %v99
  %v101 = vrot.slane %v92, %v100
  %v102 = vlaneseq
  %v103 = vshrl.u32 %v102, 7
  %v104 = vsub.s32 2, %v103
  %v105 = vrot.slane %v92, %v104
  %v106 = vlaneseq
  %v107 = vshrl.u32 %v106, 7
  %v108 = vsub.s32 3, %v107
  %v109 = vrot.slane %v92, %v108
  %v110 = vlaneseq
  %v111 = vshrl.u32 %v110, 7
  %v112 = vsub.s32 4, %v111
  %v113 = vrot.slane %v92, %v112
  %v114 = vlaneseq
  %v115 = vshrl.u32 %v114, 7
  %v116 = vsub.s32 5, %v115
  %v117 = vrot.slane %v92, %v116
  %v118 = vlaneseq
  %v119 = vshrl.u32 %v118, 7
  %v120 = vsub.s32 6, %v119
  %v121 = vrot.slane %v92, %v120
  %v122 = vlaneseq
  %v123 = vshrl.u32 %v122, 7
  %v124 = vsub.s32 7, %v123
  %v125 = vrot.slane %v92, %v124
  %v198 = vunpack.c.l.b16 %v28
  %v199 = vunpack.c.h.b16 %v28
  %v200 = vunpack.c.l.b16 %v29
  %v201 = vunpack.c.h.b16 %v29
  %v202 = vunpack.c.l.b16 %v30
  %v203 = vunpack.c.h.b16 %v30
  %v204 = vunpack.c.l.b16 %v31
  %v205 = vunpack.c.h.b16 %v31
  %v206 = vunpack.c.l.b16 %v32
  %v207 = vunpack.c.h.b16 %v32
  %v208 = vunpack.c.l.b16 %v33
  %v209 = vunpack.c.h.b16 %v33
  %v210 = vunpack.c.l.b16 %v34
  %v211 = vunpack.c.h.b16 %v34
  %v212 = vunpack.c.l.b16 %v35
  %v213 = vunpack.c.h.b16 %v35
  %v214 = vunpack.c.l.b16 %v36
  %v215 = vunpack.c.h.b16 %v36
  %v216 = vunpack.c.l.b16 %v37
  %v217 = vunpack.c.h.b16 %v37
  %v218 = vunpack.c.l.b16 %v38
  %v219 = vunpack.c.h.b16 %v38
  %v220 = vunpack.c.l.b16 %v39
  %v221 = vunpack.c.h.b16 %v39
  %v222 = vunpack.c.l.b16 %v40
  %v223 = vunpack.c.h.b16 %v40
  %v224 = vunpack.c.l.b16 %v41
  %v225 = vunpack.c.h.b16 %v41
  %v226 = vunpack.c.l.b16 %v42
  %v227 = vunpack.c.h.b16 %v42
  %v228 = vunpack.c.l.b16 %v43
  %v229 = vunpack.c.h.b16 %v43
  %v230 = vunpack.c.l.b16 %v44
  %v231 = vunpack.c.h.b16 %v44
  %v232 = vunpack.c.l.b16 %v45
  %v233 = vunpack.c.h.b16 %v45
  %v234 = vunpack.c.l.b16 %v46
  %v235 = vunpack.c.h.b16 %v46
  %v236 = vunpack.c.l.b16 %v47
  %v237 = vunpack.c.h.b16 %v47
  %v238 = vunpack.c.l.b16 %v48
  %v239 = vunpack.c.h.b16 %v48
  %v240 = vunpack.c.l.b16 %v49
  %v241 = vunpack.c.h.b16 %v49
  %v242 = vunpack.c.l.b16 %v50
  %v243 = vunpack.c.h.b16 %v50
  %v244 = vunpack.c.l.b16 %v51
  %v245 = vunpack.c.h.b16 %v51
  %v246 = vunpack.c.l.b16 %v52
  %v247 = vunpack.c.h.b16 %v52
  %v248 = vunpack.c.l.b16 %v53
  %v249 = vunpack.c.h.b16 %v53
  %v250 = vunpack.c.l.b16 %v54
  %v251 = vunpack.c.h.b16 %v54
  %v252 = vunpack.c.l.b16 %v55
  %v253 = vunpack.c.h.b16 %v55
  %v254 = vunpack.c.l.b16 %v56
  %v255 = vunpack.c.h.b16 %v56
  %v256 = vunpack.c.l.b16 %v57
  %v257 = vunpack.c.h.b16 %v57
  %v258 = vunpack.c.l.b16 %v58
  %v259 = vunpack.c.h.b16 %v58
  %v260 = vunpack.c.l.b16 %v59
  %v261 = vunpack.c.h.b16 %v59
  %v262 = vunpack.c.l.b16 %v60
  %v263 = vunpack.c.h.b16 %v60
  %v264 = vunpack.c.l.b16 %v61
  %v265 = vunpack.c.h.b16 %v61
  %v266 = vunpack.c.l.b16 %v62
  %v267 = vunpack.c.h.b16 %v62
  %v268 = vunpack.c.l.b16 %v63
  %v269 = vunpack.c.h.b16 %v63
  %v270 = vunpack.c.l.b16 %v64
  %v271 = vunpack.c.h.b16 %v64
  %v272 = vunpack.c.l.b16 %v65
  %v273 = vunpack.c.h.b16 %v65
  %v274 = vunpack.c.l.b16 %v66
  %v275 = vunpack.c.h.b16 %v66
  %v276 = vunpack.c.l.b16 %v67
  %v277 = vunpack.c.h.b16 %v67
  %v278 = vunpack.c.l.b16 %v68
  %v279 = vunpack.c.h.b16 %v68
  %v280 = vunpack.c.l.b16 %v69
  %v281 = vunpack.c.h.b16 %v69
  %v282 = vunpack.c.l.b16 %v70
  %v283 = vunpack.c.h.b16 %v70
  %v284 = vunpack.c.l.b16 %v71
  %v285 = vunpack.c.h.b16 %v71
  %v286 = vunpack.c.l.b16 %v72
  %v287 = vunpack.c.h.b16 %v72
  %v288 = vunpack.c.l.b16 %v73
  %v289 = vunpack.c.h.b16 %v73
  %v290 = vunpack.c.l.b16 %v74
  %v291 = vunpack.c.h.b16 %v74
  %v292 = vunpack.c.l.b16 %v75
  %v293 = vunpack.c.h.b16 %v75
  %v294 = vunpack.c.l.b16 %v76
  %v295 = vunpack.c.h.b16 %v76
  %v296 = vunpack.c.l.b16 %v77
  %v297 = vunpack.c.h.b16 %v77
  %v298 = vunpack.c.l.b16 %v78
  %v299 = vunpack.c.h.b16 %v78
  %v300 = vunpack.c.l.b16 %v79
  %v301 = vunpack.c.h.b16 %v79
  %v302 = vunpack.c.l.b16 %v80
  %v303 = vunpack.c.h.b16 %v80
  %v304 = vunpack.c.l.b16 %v81
  %v305 = vunpack.c.h.b16 %v81
  %v306 = vunpack.c.l.b16 %v82
  %v307 = vunpack.c.h.b16 %v82
  %v308 = vunpack.c.l.b16 %v83
  %v309 = vunpack.c.h.b16 %v83
  %v310 = vunpack.c.l.b16 %v84
  %v311 = vunpack.c.h.b16 %v84
  %v312 = vunpack.c.l.b16 %v85
  %v313 = vunpack.c.h.b16 %v85
  %v314 = vunpack.c.l.b16 %v86
  %v315 = vunpack.c.h.b16 %v86
  %v316 = vunpack.c.l.b16 %v87
  %v317 = vunpack.c.h.b16 %v87
  %v318 = vunpack.c.l.b16 %v88
  %v319 = vunpack.c.h.b16 %v88
  %v320 = vunpack.c.l.b16 %v89
  %v321 = vunpack.c.h.b16 %v89
  %v322 = vunpack.c.l.b16 %v90
  %v323 = vunpack.c.h.b16 %v90
  %v324 = vunpack.c.l.b16 %v91
  %v325 = vunpack.c.h.b16 %v91
  %v326 = vpack.c.b16 %v206, %v198
  %v327 = vpack.c.b16 %v207, %v199
  %v328 = vpack.c.b16 %v208, %v200
  %v329 = vpack.c.b16 %v209, %v201
  %v330 = vpack.c.b16 %v210, %v202
  %v331 = vpack.c.b16 %v211, %v203
  %v332 = vpack.c.b16 %v212, %v204
  %v333 = vpack.c.b16 %v213, %v205
  %v334 = vpack.c.b16 %v222, %v214
  %v335 = vpack.c.b16 %v223, %v215
  %v336 = vpack.c.b16 %v224, %v216
  %v337 = vpack.c.b16 %v225, %v217
  %v338 = vpack.c.b16 %v226, %v218
  %v339 = vpack.c.b16 %v227, %v219
  %v340 = vpack.c.b16 %v228, %v220
  %v341 = vpack.c.b16 %v229, %v221
  %v342 = vpack.c.b16 %v238, %v230
  %v343 = vpack.c.b16 %v239, %v231
  %v344 = vpack.c.b16 %v240, %v232
  %v345 = vpack.c.b16 %v241, %v233
  %v346 = vpack.c.b16 %v242, %v234
  %v347 = vpack.c.b16 %v243, %v235
  %v348 = vpack.c.b16 %v244, %v236
  %v349 = vpack.c.b16 %v245, %v237
  %v350 = vpack.c.b16 %v254, %v246
  %v351 = vpack.c.b16 %v255, %v247
  %v352 = vpack.c.b16 %v256, %v248
  %v353 = vpack.c.b16 %v257, %v249
  %v354 = vpack.c.b16 %v258, %v250
  %v355 = vpack.c.b16 %v259, %v251
  %v356 = vpack.c.b16 %v260, %v252
  %v357 = vpack.c.b16 %v261, %v253
  %v358 = vpack.c.b16 %v270, %v262
  %v359 = vpack.c.b16 %v271, %v263
  %v360 = vpack.c.b16 %v272, %v264
  %v361 = vpack.c.b16 %v273, %v265
  %v362 = vpack.c.b16 %v274, %v266
  %v363 = vpack.c.b16 %v275, %v267
  %v364 = vpack.c.b16 %v276, %v268
  %v365 = vpack.c.b16 %v277, %v269
  %v366 = vpack.c.b16 %v286, %v278
  %v367 = vpack.c.b16 %v287, %v279
  %v368 = vpack.c.b16 %v288, %v280
  %v369 = vpack.c.b16 %v289, %v281
  %v370 = vpack.c.b16 %v290, %v282
  %v371 = vpack.c.b16 %v291, %v283
  %v372 = vpack.c.b16 %v292, %v284
  %v373 = vpack.c.b16 %v293, %v285
  %v374 = vpack.c.b16 %v302, %v294
  %v375 = vpack.c.b16 %v303, %v295
  %v376 = vpack.c.b16 %v304, %v296
  %v377 = vpack.c.b16 %v305, %v297
  %v378 = vpack.c.b16 %v306, %v298
  %v379 = vpack.c.b16 %v307, %v299
  %v380 = vpack.c.b16 %v308, %v300
  %v381 = vpack.c.b16 %v309, %v301
  %v382 = vpack.c.b16 %v318, %v310
  %v383 = vpack.c.b16 %v319, %v311
  %v384 = vpack.c.b16 %v320, %v312
  %v385 = vpack.c.b16 %v321, %v313
  %v386 = vpack.c.b16 %v322, %v314
  %v387 = vpack.c.b16 %v323, %v315
  %v388 = vpack.c.b16 %v324, %v316
  %v389 = vpack.c.b16 %v325, %v317
  %454 = vmatprep.subr.bf16.mxu0 %v327
  %455 = vmatpush1.bf16.msra.mxu0 %v326
  %456 = vmatprep.subr.bf16.mxu0 %v335
  %457 = vmatpush1.bf16.msra.mxu0 %v334
  %458 = vmatprep.subr.bf16.mxu0 %v343
  %459 = vmatpush1.bf16.msra.mxu0 %v342
  %460 = vmatprep.subr.bf16.mxu0 %v351
  %461 = vmatpush1.bf16.msra.mxu0 %v350
  %462 = vmatprep.subr.bf16.mxu0 %v359
  %463 = vmatpush1.bf16.msra.mxu0 %v358
  %464 = vmatprep.subr.bf16.mxu0 %v367
  %465 = vmatpush1.bf16.msra.mxu0 %v366
  %466 = vmatprep.subr.bf16.mxu0 %v375
  %467 = vmatpush1.bf16.msra.mxu0 %v374
  %468 = vmatprep.subr.bf16.mxu0 %v383
  %469 = vmatpush1.bf16.msra.mxu0 %v382
  %470 = vmatprep.subr.bf16.mxu0 0
  %471 = vmatpush1.bf16.msra.mxu0 0
  %472 = vmatprep.subr.bf16.mxu0 0
  %473 = vmatpush1.bf16.msra.mxu0 0
  %474 = vmatprep.subr.bf16.mxu0 0
  %475 = vmatpush1.bf16.msra.mxu0 0
  %476 = vmatprep.subr.bf16.mxu0 0
  %477 = vmatpush1.bf16.msra.mxu0 0
  %478 = vmatprep.subr.bf16.mxu0 0
  %479 = vmatpush1.bf16.msra.mxu0 0
  %480 = vmatprep.subr.bf16.mxu0 0
  %481 = vmatpush1.bf16.msra.mxu0 0
  %482 = vmatprep.subr.bf16.mxu0 0
  %483 = vmatpush1.bf16.msra.mxu0 0
  %484 = vmatprep.subr.bf16.mxu0 0
  %485 = vmatpush1.bf16.msra.mxu0 0
  %486 = vmatprep.mubr.bf16.mxu0 0
  %487 = vmatmul.mubr.bf16.gmra.mrb[0].mxu0 %v27
  %v488 = vpop.f32.mrb[0].mxu0
  %v489 = vadd.f32 %v97, %v488
  %v490 = vpop.f32.mrb[0].mxu0
  %v491 = vadd.f32 %v101, %v490
  %v492 = vpop.f32.mrb[0].mxu0
  %v493 = vpop.f32.mrb[0].mxu0
  %494 = vdwg.mxu0
  %495 = vmatprep.subr.bf16.mxu0 %v329
  %496 = vmatpush1.bf16.msra.mxu0 %v328
  %497 = vmatprep.subr.bf16.mxu0 %v337
  %498 = vmatpush1.bf16.msra.mxu0 %v336
  %499 = vmatprep.subr.bf16.mxu0 %v345
  %500 = vmatpush1.bf16.msra.mxu0 %v344
  %501 = vmatprep.subr.bf16.mxu0 %v353
  %502 = vmatpush1.bf16.msra.mxu0 %v352
  %503 = vmatprep.subr.bf16.mxu0 %v361
  %504 = vmatpush1.bf16.msra.mxu0 %v360
  %505 = vmatprep.subr.bf16.mxu0 %v369
  %506 = vmatpush1.bf16.msra.mxu0 %v368
  %507 = vmatprep.subr.bf16.mxu0 %v377
  %508 = vmatpush1.bf16.msra.mxu0 %v376
  %509 = vmatprep.subr.bf16.mxu0 %v385
  %510 = vmatpush1.bf16.msra.mxu0 %v384
  %511 = vmatprep.subr.bf16.mxu0 0
  %512 = vmatpush1.bf16.msra.mxu0 0
  %513 = vmatprep.subr.bf16.mxu0 0
  %514 = vmatpush1.bf16.msra.mxu0 0
  %515 = vmatprep.subr.bf16.mxu0 0
  %516 = vmatpush1.bf16.msra.mxu0 0
  %517 = vmatprep.subr.bf16.mxu0 0
  %518 = vmatpush1.bf16.msra.mxu0 0
  %519 = vmatprep.subr.bf16.mxu0 0
  %520 = vmatpush1.bf16.msra.mxu0 0
  %521 = vmatprep.subr.bf16.mxu0 0
  %522 = vmatpush1.bf16.msra.mxu0 0
  %523 = vmatprep.subr.bf16.mxu0 0
  %524 = vmatpush1.bf16.msra.mxu0 0
  %525 = vmatprep.subr.bf16.mxu0 0
  %526 = vmatpush1.bf16.msra.mxu0 0
  %527 = vmatprep.mubr.bf16.mxu0 0
  %528 = vmatmul.mubr.bf16.gmra.mrb[0].mxu0 %v27
  %v529 = vpop.f32.mrb[0].mxu0
  %v530 = vadd.f32 %v105, %v529
  %v531 = vpop.f32.mrb[0].mxu0
  %v532 = vadd.f32 %v109, %v531
  %v533 = vpop.f32.mrb[0].mxu0
  %v534 = vpop.f32.mrb[0].mxu0
  %535 = vdwg.mxu0
  %536 = vmatprep.subr.bf16.mxu0 %v331
  %537 = vmatpush1.bf16.msra.mxu0 %v330
  %538 = vmatprep.subr.bf16.mxu0 %v339
  %539 = vmatpush1.bf16.msra.mxu0 %v338
  %540 = vmatprep.subr.bf16.mxu0 %v347
  %541 = vmatpush1.bf16.msra.mxu0 %v346
  %542 = vmatprep.subr.bf16.mxu0 %v355
  %543 = vmatpush1.bf16.msra.mxu0 %v354
  %544 = vmatprep.subr.bf16.mxu0 %v363
  %545 = vmatpush1.bf16.msra.mxu0 %v362
  %546 = vmatprep.subr.bf16.mxu0 %v371
  %547 = vmatpush1.bf16.msra.mxu0 %v370
  %548 = vmatprep.subr.bf16.mxu0 %v379
  %549 = vmatpush1.bf16.msra.mxu0 %v378
  %550 = vmatprep.subr.bf16.mxu0 %v387
  %551 = vmatpush1.bf16.msra.mxu0 %v386
  %552 = vmatprep.subr.bf16.mxu0 0
  %553 = vmatpush1.bf16.msra.mxu0 0
  %554 = vmatprep.subr.bf16.mxu0 0
  %555 = vmatpush1.bf16.msra.mxu0 0
  %556 = vmatprep.subr.bf16.mxu0 0
  %557 = vmatpush1.bf16.msra.mxu0 0
  %558 = vmatprep.subr.bf16.mxu0 0
  %559 = vmatpush1.bf16.msra.mxu0 0
  %560 = vmatprep.subr.bf16.mxu0 0
  %561 = vmatpush1.bf16.msra.mxu0 0
  %562 = vmatprep.subr.bf16.mxu0 0
  %563 = vmatpush1.bf16.msra.mxu0 0
  %564 = vmatprep.subr.bf16.mxu0 0
  %565 = vmatpush1.bf16.msra.mxu0 0
  %566 = vmatprep.subr.bf16.mxu0 0
  %567 = vmatpush1.bf16.msra.mxu0 0
  %568 = vmatprep.mubr.bf16.mxu0 0
  %569 = vmatmul.mubr.bf16.gmra.mrb[0].mxu0 %v27
  %v570 = vpop.f32.mrb[0].mxu0
  %v571 = vadd.f32 %v113, %v570
  %v572 = vpop.f32.mrb[0].mxu0
  %v573 = vadd.f32 %v117, %v572
  %v574 = vpop.f32.mrb[0].mxu0
  %v575 = vpop.f32.mrb[0].mxu0
  %576 = vdwg.mxu0
  %577 = vmatprep.subr.bf16.mxu0 %v333
  %578 = vmatpush1.bf16.msra.mxu0 %v332
  %579 = vmatprep.subr.bf16.mxu0 %v341
  %580 = vmatpush1.bf16.msra.mxu0 %v340
  %581 = vmatprep.subr.bf16.mxu0 %v349
  %582 = vmatpush1.bf16.msra.mxu0 %v348
  %583 = vmatprep.subr.bf16.mxu0 %v357
  %584 = vmatpush1.bf16.msra.mxu0 %v356
  %585 = vmatprep.subr.bf16.mxu0 %v365
  %586 = vmatpush1.bf16.msra.mxu0 %v364
  %587 = vmatprep.subr.bf16.mxu0 %v373
  %588 = vmatpush1.bf16.msra.mxu0 %v372
  %589 = vmatprep.subr.bf16.mxu0 %v381
  %590 = vmatpush1.bf16.msra.mxu0 %v380
  %591 = vmatprep.subr.bf16.mxu0 %v389
  %592 = vmatpush1.bf16.msra.mxu0 %v388
  %593 = vmatprep.subr.bf16.mxu0 0
  %594 = vmatpush1.bf16.msra.mxu0 0
  %595 = vmatprep.subr.bf16.mxu0 0
  %596 = vmatpush1.bf16.msra.mxu0 0
  %597 = vmatprep.subr.bf16.mxu0 0
  %598 = vmatpush1.bf16.msra.mxu0 0
  %599 = vmatprep.subr.bf16.mxu0 0
  %600 = vmatpush1.bf16.msra.mxu0 0
  %601 = vmatprep.subr.bf16.mxu0 0
  %602 = vmatpush1.bf16.msra.mxu0 0
  %603 = vmatprep.subr.bf16.mxu0 0
  %604 = vmatpush1.bf16.msra.mxu0 0
  %605 = vmatprep.subr.bf16.mxu0 0
  %606 = vmatpush1.bf16.msra.mxu0 0
  %607 = vmatprep.subr.bf16.mxu0 0
  %608 = vmatpush1.bf16.msra.mxu0 0
  %609 = vmatprep.mubr.bf16.mxu0 0
  %610 = vmatmul.mubr.bf16.gmra.mrb[0].mxu0 %v27
  %v611 = vpop.f32.mrb[0].mxu0
  %v612 = vadd.f32 %v121, %v611
  %v613 = vpop.f32.mrb[0].mxu0
  %v614 = vadd.f32 %v125, %v613
  %v615 = vpop.f32.mrb[0].mxu0
  %v616 = vpop.f32.mrb[0].mxu0
  %617 = vdwg.mxu0
  %v618 = vmax.f32 %v489, 0.0
  %v619 = vmax.f32 %v491, 0.0
  %v620 = vmax.f32 %v530, 0.0
  %v621 = vmax.f32 %v532, 0.0
  %v622 = vmax.f32 %v571, 0.0
  %v623 = vmax.f32 %v573, 0.0
  %v624 = vmax.f32 %v612, 0.0
  %v625 = vmax.f32 %v614, 0.0
  %v626 = vpack.c.bf16 %v618, %v618
  %v627 = vpack.c.bf16 %v619, %v619
  %v628 = vpack.c.bf16 %v620, %v620
  %v629 = vpack.c.bf16 %v621, %v621
  %v630 = vpack.c.bf16 %v622, %v622
  %v631 = vpack.c.bf16 %v623, %v623
  %v632 = vpack.c.bf16 %v624, %v624
  %v633 = vpack.c.bf16 %v625, %v625
  %v634 = vld [vmem:[%s3] sm:$0xff]
  %v635 = vld [vmem:[%s3 + $0x8] sm:$0xff]
  %v636 = vld [vmem:[%s3 + $0x10] sm:$0xff]
  %v637 = vld [vmem:[%s3 + $0x18] sm:$0xff]
  %v638 = vld [vmem:[%s3 + $0x20] sm:$0xff]
  %v639 = vld [vmem:[%s3 + $0x28] sm:$0xff]
  %v640 = vld [vmem:[%s3 + $0x30] sm:$0xff]
  %v641 = vld [vmem:[%s3 + $0x38] sm:$0xff]
  %v642 = vld [vmem:[%s3 + $0x40] sm:$0xff]
  %v643 = vld [vmem:[%s3 + $0x48] sm:$0xff]
  %v644 = vld [vmem:[%s3 + $0x50] sm:$0xff]
  %v645 = vld [vmem:[%s3 + $0x58] sm:$0xff]
  %v646 = vld [vmem:[%s3 + $0x60] sm:$0xff]
  %v647 = vld [vmem:[%s3 + $0x68] sm:$0xff]
  %v648 = vld [vmem:[%s3 + $0x70] sm:$0xff]
  %v649 = vld [vmem:[%s3 + $0x78] sm:$0xff]
  %v650 = vld [vmem:[%s3 + $0x80] sm:$0xff]
  %v651 = vld [vmem:[%s3 + $0x88] sm:$0xff]
  %v652 = vld [vmem:[%s3 + $0x90] sm:$0xff]
  %v653 = vld [vmem:[%s3 + $0x98] sm:$0xff]
  %v654 = vld [vmem:[%s3 + $0xa0] sm:$0xff]
  %v655 = vld [vmem:[%s3 + $0xa8] sm:$0xff]
  %v656 = vld [vmem:[%s3 + $0xb0] sm:$0xff]
  %v657 = vld [vmem:[%s3 + $0xb8] sm:$0xff]
  %v658 = vld [vmem:[%s3 + $0xc0] sm:$0xff]
  %v659 = vld [vmem:[%s3 + $0xc8] sm:$0xff]
  %v660 = vld [vmem:[%s3 + $0xd0] sm:$0xff]
  %v661 = vld [vmem:[%s3 + $0xd8] sm:$0xff]
  %v662 = vld [vmem:[%s3 + $0xe0] sm:$0xff]
  %v663 = vld [vmem:[%s3 + $0xe8] sm:$0xff]
  %v664 = vld [vmem:[%s3 + $0xf0] sm:$0xff]
  %v665 = vld [vmem:[%s3 + $0xf8] sm:$0xff]
  %v666 = vld [vmem:[%s3 + $0x100] sm:$0xff]
  %v667 = vld [vmem:[%s3 + $0x108] sm:$0xff]
  %v668 = vld [vmem:[%s3 + $0x110] sm:$0xff]
  %v669 = vld [vmem:[%s3 + $0x118] sm:$0xff]
  %v670 = vld [vmem:[%s3 + $0x120] sm:$0xff]
  %v671 = vld [vmem:[%s3 + $0x128] sm:$0xff]
  %v672 = vld [vmem:[%s3 + $0x130] sm:$0xff]
  %v673 = vld [vmem:[%s3 + $0x138] sm:$0xff]
  %v674 = vld [vmem:[%s3 + $0x140] sm:$0xff]
  %v675 = vld [vmem:[%s3 + $0x148] sm:$0xff]
  %v676 = vld [vmem:[%s3 + $0x150] sm:$0xff]
  %v677 = vld [vmem:[%s3 + $0x158] sm:$0xff]
  %v678 = vld [vmem:[%s3 + $0x160] sm:$0xff]
  %v679 = vld [vmem:[%s3 + $0x168] sm:$0xff]
  %v680 = vld [vmem:[%s3 + $0x170] sm:$0xff]
  %v681 = vld [vmem:[%s3 + $0x178] sm:$0xff]
  %v682 = vld [vmem:[%s3 + $0x180] sm:$0xff]
  %v683 = vld [vmem:[%s3 + $0x188] sm:$0xff]
  %v684 = vld [vmem:[%s3 + $0x190] sm:$0xff]
  %v685 = vld [vmem:[%s3 + $0x198] sm:$0xff]
  %v686 = vld [vmem:[%s3 + $0x1a0] sm:$0xff]
  %v687 = vld [vmem:[%s3 + $0x1a8] sm:$0xff]
  %v688 = vld [vmem:[%s3 + $0x1b0] sm:$0xff]
  %v689 = vld [vmem:[%s3 + $0x1b8] sm:$0xff]
  %v690 = vld [vmem:[%s3 + $0x1c0] sm:$0xff]
  %v691 = vld [vmem:[%s3 + $0x1c8] sm:$0xff]
  %v692 = vld [vmem:[%s3 + $0x1d0] sm:$0xff]
  %v693 = vld [vmem:[%s3 + $0x1d8] sm:$0xff]
  %v694 = vld [vmem:[%s3 + $0x1e0] sm:$0xff]
  %v695 = vld [vmem:[%s3 + $0x1e8] sm:$0xff]
  %v696 = vld [vmem:[%s3 + $0x1f0] sm:$0xff]
  %v697 = vld [vmem:[%s3 + $0x1f8] sm:$0xff]
  %v698 = vld [vmem:[%s3 + $0x200] sm:$0xff]
  %v699 = vld [vmem:[%s3 + $0x208] sm:$0xff]
  %v700 = vld [vmem:[%s3 + $0x210] sm:$0xff]
  %v701 = vld [vmem:[%s3 + $0x218] sm:$0xff]
  %v702 = vld [vmem:[%s3 + $0x220] sm:$0xff]
  %v703 = vld [vmem:[%s3 + $0x228] sm:$0xff]
  %v704 = vld [vmem:[%s3 + $0x230] sm:$0xff]
  %v705 = vld [vmem:[%s3 + $0x238] sm:$0xff]
  %v706 = vld [vmem:[%s3 + $0x240] sm:$0xff]
  %v707 = vld [vmem:[%s3 + $0x248] sm:$0xff]
  %v708 = vld [vmem:[%s3 + $0x250] sm:$0xff]
  %v709 = vld [vmem:[%s3 + $0x258] sm:$0xff]
  %v710 = vld [vmem:[%s3 + $0x260] sm:$0xff]
  %v711 = vld [vmem:[%s3 + $0x268] sm:$0xff]
  %v712 = vld [vmem:[%s3 + $0x270] sm:$0xff]
  %v713 = vld [vmem:[%s3 + $0x278] sm:$0xff]
  %v714 = vld [vmem:[%s3 + $0x280] sm:$0xff]
  %v715 = vld [vmem:[%s3 + $0x288] sm:$0xff]
  %v716 = vld [vmem:[%s3 + $0x290] sm:$0xff]
  %v717 = vld [vmem:[%s3 + $0x298] sm:$0xff]
  %v718 = vld [vmem:[%s3 + $0x2a0] sm:$0xff]
  %v719 = vld [vmem:[%s3 + $0x2a8] sm:$0xff]
  %v720 = vld [vmem:[%s3 + $0x2b0] sm:$0xff]
  %v721 = vld [vmem:[%s3 + $0x2b8] sm:$0xff]
  %v722 = vld [vmem:[%s3 + $0x2c0] sm:$0xff]
  %v723 = vld [vmem:[%s3 + $0x2c8] sm:$0xff]
  %v724 = vld [vmem:[%s3 + $0x2d0] sm:$0xff]
  %v725 = vld [vmem:[%s3 + $0x2d8] sm:$0xff]
  %v726 = vld [vmem:[%s3 + $0x2e0] sm:$0xff]
  %v727 = vld [vmem:[%s3 + $0x2e8] sm:$0xff]
  %v728 = vld [vmem:[%s3 + $0x2f0] sm:$0xff]
  %v729 = vld [vmem:[%s3 + $0x2f8] sm:$0xff]
  %v730 = vld [vmem:[%s3 + $0x300] sm:$0xff]
  %v731 = vld [vmem:[%s3 + $0x308] sm:$0xff]
  %v732 = vld [vmem:[%s3 + $0x310] sm:$0xff]
  %v733 = vld [vmem:[%s3 + $0x318] sm:$0xff]
  %v734 = vld [vmem:[%s3 + $0x320] sm:$0xff]
  %v735 = vld [vmem:[%s3 + $0x328] sm:$0xff]
  %v736 = vld [vmem:[%s3 + $0x330] sm:$0xff]
  %v737 = vld [vmem:[%s3 + $0x338] sm:$0xff]
  %v738 = vld [vmem:[%s3 + $0x340] sm:$0xff]
  %v739 = vld [vmem:[%s3 + $0x348] sm:$0xff]
  %v740 = vld [vmem:[%s3 + $0x350] sm:$0xff]
  %v741 = vld [vmem:[%s3 + $0x358] sm:$0xff]
  %v742 = vld [vmem:[%s3 + $0x360] sm:$0xff]
  %v743 = vld [vmem:[%s3 + $0x368] sm:$0xff]
  %v744 = vld [vmem:[%s3 + $0x370] sm:$0xff]
  %v745 = vld [vmem:[%s3 + $0x378] sm:$0xff]
  %v746 = vld [vmem:[%s3 + $0x380] sm:$0xff]
  %v747 = vld [vmem:[%s3 + $0x388] sm:$0xff]
  %v748 = vld [vmem:[%s3 + $0x390] sm:$0xff]
  %v749 = vld [vmem:[%s3 + $0x398] sm:$0xff]
  %v750 = vld [vmem:[%s3 + $0x3a0] sm:$0xff]
  %v751 = vld [vmem:[%s3 + $0x3a8] sm:$0xff]
  %v752 = vld [vmem:[%s3 + $0x3b0] sm:$0xff]
  %v753 = vld [vmem:[%s3 + $0x3b8] sm:$0xff]
  %v754 = vld [vmem:[%s3 + $0x3c0] sm:$0xff]
  %v755 = vld [vmem:[%s3 + $0x3c8] sm:$0xff]
  %v756 = vld [vmem:[%s3 + $0x3d0] sm:$0xff]
  %v757 = vld [vmem:[%s3 + $0x3d8] sm:$0xff]
  %v758 = vld [vmem:[%s3 + $0x3e0] sm:$0xff]
  %v759 = vld [vmem:[%s3 + $0x3e8] sm:$0xff]
  %v760 = vld [vmem:[%s3 + $0x3f0] sm:$0xff]
  %v761 = vld [vmem:[%s3 + $0x3f8] sm:$0xff]
  %v762 = vld [vmem:[%s3 + $0x400] sm:$0xff]
  %v763 = vld [vmem:[%s3 + $0x408] sm:$0xff]
  %v764 = vld [vmem:[%s3 + $0x410] sm:$0xff]
  %v765 = vld [vmem:[%s3 + $0x418] sm:$0xff]
  %v766 = vld [vmem:[%s3 + $0x420] sm:$0xff]
  %v767 = vld [vmem:[%s3 + $0x428] sm:$0xff]
  %v768 = vld [vmem:[%s3 + $0x430] sm:$0xff]
  %v769 = vld [vmem:[%s3 + $0x438] sm:$0xff]
  %v770 = vld [vmem:[%s3 + $0x440] sm:$0xff]
  %v771 = vld [vmem:[%s3 + $0x448] sm:$0xff]
  %v772 = vld [vmem:[%s3 + $0x450] sm:$0xff]
  %v773 = vld [vmem:[%s3 + $0x458] sm:$0xff]
  %v774 = vld [vmem:[%s3 + $0x460] sm:$0xff]
  %v775 = vld [vmem:[%s3 + $0x468] sm:$0xff]
  %v776 = vld [vmem:[%s3 + $0x470] sm:$0xff]
  %v777 = vld [vmem:[%s3 + $0x478] sm:$0xff]
  %v778 = vld [vmem:[%s3 + $0x480] sm:$0xff]
  %v779 = vld [vmem:[%s3 + $0x488] sm:$0xff]
  %v780 = vld [vmem:[%s3 + $0x490] sm:$0xff]
  %v781 = vld [vmem:[%s3 + $0x498] sm:$0xff]
  %v782 = vld [vmem:[%s3 + $0x4a0] sm:$0xff]
  %v783 = vld [vmem:[%s3 + $0x4a8] sm:$0xff]
  %v784 = vld [vmem:[%s3 + $0x4b0] sm:$0xff]
  %v785 = vld [vmem:[%s3 + $0x4b8] sm:$0xff]
  %v786 = vld [vmem:[%s3 + $0x4c0] sm:$0xff]
  %v787 = vld [vmem:[%s3 + $0x4c8] sm:$0xff]
  %v788 = vld [vmem:[%s3 + $0x4d0] sm:$0xff]
  %v789 = vld [vmem:[%s3 + $0x4d8] sm:$0xff]
  %v790 = vld [vmem:[%s3 + $0x4e0] sm:$0xff]
  %v791 = vld [vmem:[%s3 + $0x4e8] sm:$0xff]
  %v792 = vld [vmem:[%s3 + $0x4f0] sm:$0xff]
  %v793 = vld [vmem:[%s3 + $0x4f8] sm:$0xff]
  %v794 = vld [vmem:[%s3 + $0x500] sm:$0xff]
  %v795 = vld [vmem:[%s3 + $0x508] sm:$0xff]
  %v796 = vld [vmem:[%s3 + $0x510] sm:$0xff]
  %v797 = vld [vmem:[%s3 + $0x518] sm:$0xff]
  %v798 = vld [vmem:[%s3 + $0x520] sm:$0xff]
  %v799 = vld [vmem:[%s3 + $0x528] sm:$0xff]
  %v800 = vld [vmem:[%s3 + $0x530] sm:$0xff]
  %v801 = vld [vmem:[%s3 + $0x538] sm:$0xff]
  %v802 = vld [vmem:[%s3 + $0x540] sm:$0xff]
  %v803 = vld [vmem:[%s3 + $0x548] sm:$0xff]
  %v804 = vld [vmem:[%s3 + $0x550] sm:$0xff]
  %v805 = vld [vmem:[%s3 + $0x558] sm:$0xff]
  %v806 = vld [vmem:[%s3 + $0x560] sm:$0xff]
  %v807 = vld [vmem:[%s3 + $0x568] sm:$0xff]
  %v808 = vld [vmem:[%s3 + $0x570] sm:$0xff]
  %v809 = vld [vmem:[%s3 + $0x578] sm:$0xff]
  %v810 = vld [vmem:[%s3 + $0x580] sm:$0xff]
  %v811 = vld [vmem:[%s3 + $0x588] sm:$0xff]
  %v812 = vld [vmem:[%s3 + $0x590] sm:$0xff]
  %v813 = vld [vmem:[%s3 + $0x598] sm:$0xff]
  %v814 = vld [vmem:[%s3 + $0x5a0] sm:$0xff]
  %v815 = vld [vmem:[%s3 + $0x5a8] sm:$0xff]
  %v816 = vld [vmem:[%s3 + $0x5b0] sm:$0xff]
  %v817 = vld [vmem:[%s3 + $0x5b8] sm:$0xff]
  %v818 = vld [vmem:[%s3 + $0x5c0] sm:$0xff]
  %v819 = vld [vmem:[%s3 + $0x5c8] sm:$0xff]
  %v820 = vld [vmem:[%s3 + $0x5d0] sm:$0xff]
  %v821 = vld [vmem:[%s3 + $0x5d8] sm:$0xff]
  %v822 = vld [vmem:[%s3 + $0x5e0] sm:$0xff]
  %v823 = vld [vmem:[%s3 + $0x5e8] sm:$0xff]
  %v824 = vld [vmem:[%s3 + $0x5f0] sm:$0xff]
  %v825 = vld [vmem:[%s3 + $0x5f8] sm:$0xff]
  %v826 = vld [vmem:[%s3 + $0x600] sm:$0xff]
  %v827 = vld [vmem:[%s3 + $0x608] sm:$0xff]
  %v828 = vld [vmem:[%s3 + $0x610] sm:$0xff]
  %v829 = vld [vmem:[%s3 + $0x618] sm:$0xff]
  %v830 = vld [vmem:[%s3 + $0x620] sm:$0xff]
  %v831 = vld [vmem:[%s3 + $0x628] sm:$0xff]
  %v832 = vld [vmem:[%s3 + $0x630] sm:$0xff]
  %v833 = vld [vmem:[%s3 + $0x638] sm:$0xff]
  %v834 = vld [vmem:[%s3 + $0x640] sm:$0xff]
  %v835 = vld [vmem:[%s3 + $0x648] sm:$0xff]
  %v836 = vld [vmem:[%s3 + $0x650] sm:$0xff]
  %v837 = vld [vmem:[%s3 + $0x658] sm:$0xff]
  %v838 = vld [vmem:[%s3 + $0x660] sm:$0xff]
  %v839 = vld [vmem:[%s3 + $0x668] sm:$0xff]
  %v840 = vld [vmem:[%s3 + $0x670] sm:$0xff]
  %v841 = vld [vmem:[%s3 + $0x678] sm:$0xff]
  %v842 = vld [vmem:[%s3 + $0x680] sm:$0xff]
  %v843 = vld [vmem:[%s3 + $0x688] sm:$0xff]
  %v844 = vld [vmem:[%s3 + $0x690] sm:$0xff]
  %v845 = vld [vmem:[%s3 + $0x698] sm:$0xff]
  %v846 = vld [vmem:[%s3 + $0x6a0] sm:$0xff]
  %v847 = vld [vmem:[%s3 + $0x6a8] sm:$0xff]
  %v848 = vld [vmem:[%s3 + $0x6b0] sm:$0xff]
  %v849 = vld [vmem:[%s3 + $0x6b8] sm:$0xff]
  %v850 = vld [vmem:[%s3 + $0x6c0] sm:$0xff]
  %v851 = vld [vmem:[%s3 + $0x6c8] sm:$0xff]
  %v852 = vld [vmem:[%s3 + $0x6d0] sm:$0xff]
  %v853 = vld [vmem:[%s3 + $0x6d8] sm:$0xff]
  %v854 = vld [vmem:[%s3 + $0x6e0] sm:$0xff]
  %v855 = vld [vmem:[%s3 + $0x6e8] sm:$0xff]
  %v856 = vld [vmem:[%s3 + $0x6f0] sm:$0xff]
  %v857 = vld [vmem:[%s3 + $0x6f8] sm:$0xff]
  %v858 = vld [vmem:[%s3 + $0x700] sm:$0xff]
  %v859 = vld [vmem:[%s3 + $0x708] sm:$0xff]
  %v860 = vld [vmem:[%s3 + $0x710] sm:$0xff]
  %v861 = vld [vmem:[%s3 + $0x718] sm:$0xff]
  %v862 = vld [vmem:[%s3 + $0x720] sm:$0xff]
  %v863 = vld [vmem:[%s3 + $0x728] sm:$0xff]
  %v864 = vld [vmem:[%s3 + $0x730] sm:$0xff]
  %v865 = vld [vmem:[%s3 + $0x738] sm:$0xff]
  %v866 = vld [vmem:[%s3 + $0x740] sm:$0xff]
  %v867 = vld [vmem:[%s3 + $0x748] sm:$0xff]
  %v868 = vld [vmem:[%s3 + $0x750] sm:$0xff]
  %v869 = vld [vmem:[%s3 + $0x758] sm:$0xff]
  %v870 = vld [vmem:[%s3 + $0x760] sm:$0xff]
  %v871 = vld [vmem:[%s3 + $0x768] sm:$0xff]
  %v872 = vld [vmem:[%s3 + $0x770] sm:$0xff]
  %v873 = vld [vmem:[%s3 + $0x778] sm:$0xff]
  %v874 = vld [vmem:[%s3 + $0x780] sm:$0xff]
  %v875 = vld [vmem:[%s3 + $0x788] sm:$0xff]
  %v876 = vld [vmem:[%s3 + $0x790] sm:$0xff]
  %v877 = vld [vmem:[%s3 + $0x798] sm:$0xff]
  %v878 = vld [vmem:[%s3 + $0x7a0] sm:$0xff]
  %v879 = vld [vmem:[%s3 + $0x7a8] sm:$0xff]
  %v880 = vld [vmem:[%s3 + $0x7b0] sm:$0xff]
  %v881 = vld [vmem:[%s3 + $0x7b8] sm:$0xff]
  %v882 = vld [vmem:[%s3 + $0x7c0] sm:$0xff]
  %v883 = vld [vmem:[%s3 + $0x7c8] sm:$0xff]
  %v884 = vld [vmem:[%s3 + $0x7d0] sm:$0xff]
  %v885 = vld [vmem:[%s3 + $0x7d8] sm:$0xff]
  %v886 = vld [vmem:[%s3 + $0x7e0] sm:$0xff]
  %v887 = vld [vmem:[%s3 + $0x7e8] sm:$0xff]
  %v888 = vld [vmem:[%s3 + $0x7f0] sm:$0xff]
  %v889 = vld [vmem:[%s3 + $0x7f8] sm:$0xff]
  %v890 = vld [vmem:[%s4] sm:$0xf]
  %v892 = vlaneseq
  %v893 = vshrl.u32 %v892, 7
  %v894 = vsub.s32 0, %v893
  %v895 = vrot.slane %v890, %v894
  %v896 = vlaneseq
  %v897 = vshrl.u32 %v896, 7
  %v898 = vsub.s32 1, %v897
  %v899 = vrot.slane %v890, %v898
  %v900 = vlaneseq
  %v901 = vshrl.u32 %v900, 7
  %v902 = vsub.s32 2, %v901
  %v903 = vrot.slane %v890, %v902
  %v904 = vlaneseq
  %v905 = vshrl.u32 %v904, 7
  %v906 = vsub.s32 3, %v905
  %v907 = vrot.slane %v890, %v906
  %v1168 = vunpack.c.l.b16 %v634
  %v1169 = vunpack.c.h.b16 %v634
  %v1170 = vunpack.c.l.b16 %v635
  %v1171 = vunpack.c.h.b16 %v635
  %v1172 = vunpack.c.l.b16 %v636
  %v1173 = vunpack.c.h.b16 %v636
  %v1174 = vunpack.c.l.b16 %v637
  %v1175 = vunpack.c.h.b16 %v637
  %v1176 = vunpack.c.l.b16 %v638
  %v1177 = vunpack.c.h.b16 %v638
  %v1178 = vunpack.c.l.b16 %v639
  %v1179 = vunpack.c.h.b16 %v639
  %v1180 = vunpack.c.l.b16 %v640
  %v1181 = vunpack.c.h.b16 %v640
  %v1182 = vunpack.c.l.b16 %v641
  %v1183 = vunpack.c.h.b16 %v641
  %v1184 = vunpack.c.l.b16 %v642
  %v1185 = vunpack.c.h.b16 %v642
  %v1186 = vunpack.c.l.b16 %v643
  %v1187 = vunpack.c.h.b16 %v643
  %v1188 = vunpack.c.l.b16 %v644
  %v1189 = vunpack.c.h.b16 %v644
  %v1190 = vunpack.c.l.b16 %v645
  %v1191 = vunpack.c.h.b16 %v645
  %v1192 = vunpack.c.l.b16 %v646
  %v1193 = vunpack.c.h.b16 %v646
  %v1194 = vunpack.c.l.b16 %v647
  %v1195 = vunpack.c.h.b16 %v647
  %v1196 = vunpack.c.l.b16 %v648
  %v1197 = vunpack.c.h.b16 %v648
  %v1198 = vunpack.c.l.b16 %v649
  %v1199 = vunpack.c.h.b16 %v649
  %v1200 = vunpack.c.l.b16 %v650
  %v1201 = vunpack.c.h.b16 %v650
  %v1202 = vunpack.c.l.b16 %v651
  %v1203 = vunpack.c.h.b16 %v651
  %v1204 = vunpack.c.l.b16 %v652
  %v1205 = vunpack.c.h.b16 %v652
  %v1206 = vunpack.c.l.b16 %v653
  %v1207 = vunpack.c.h.b16 %v653
  %v1208 = vunpack.c.l.b16 %v654
  %v1209 = vunpack.c.h.b16 %v654
  %v1210 = vunpack.c.l.b16 %v655
  %v1211 = vunpack.c.h.b16 %v655
  %v1212 = vunpack.c.l.b16 %v656
  %v1213 = vunpack.c.h.b16 %v656
  %v1214 = vunpack.c.l.b16 %v657
  %v1215 = vunpack.c.h.b16 %v657
  %v1216 = vunpack.c.l.b16 %v658
  %v1217 = vunpack.c.h.b16 %v658
  %v1218 = vunpack.c.l.b16 %v659
  %v1219 = vunpack.c.h.b16 %v659
  %v1220 = vunpack.c.l.b16 %v660
  %v1221 = vunpack.c.h.b16 %v660
  %v1222 = vunpack.c.l.b16 %v661
  %v1223 = vunpack.c.h.b16 %v661
  %v1224 = vunpack.c.l.b16 %v662
  %v1225 = vunpack.c.h.b16 %v662
  %v1226 = vunpack.c.l.b16 %v663
  %v1227 = vunpack.c.h.b16 %v663
  %v1228 = vunpack.c.l.b16 %v664
  %v1229 = vunpack.c.h.b16 %v664
  %v1230 = vunpack.c.l.b16 %v665
  %v1231 = vunpack.c.h.b16 %v665
  %v1232 = vunpack.c.l.b16 %v666
  %v1233 = vunpack.c.h.b16 %v666
  %v1234 = vunpack.c.l.b16 %v667
  %v1235 = vunpack.c.h.b16 %v667
  %v1236 = vunpack.c.l.b16 %v668
  %v1237 = vunpack.c.h.b16 %v668
  %v1238 = vunpack.c.l.b16 %v669
  %v1239 = vunpack.c.h.b16 %v669
  %v1240 = vunpack.c.l.b16 %v670
  %v1241 = vunpack.c.h.b16 %v670
  %v1242 = vunpack.c.l.b16 %v671
  %v1243 = vunpack.c.h.b16 %v671
  %v1244 = vunpack.c.l.b16 %v672
  %v1245 = vunpack.c.h.b16 %v672
  %v1246 = vunpack.c.l.b16 %v673
  %v1247 = vunpack.c.h.b16 %v673
  %v1248 = vunpack.c.l.b16 %v674
  %v1249 = vunpack.c.h.b16 %v674
  %v1250 = vunpack.c.l.b16 %v675
  %v1251 = vunpack.c.h.b16 %v675
  %v1252 = vunpack.c.l.b16 %v676
  %v1253 = vunpack.c.h.b16 %v676
  %v1254 = vunpack.c.l.b16 %v677
  %v1255 = vunpack.c.h.b16 %v677
  %v1256 = vunpack.c.l.b16 %v678
  %v1257 = vunpack.c.h.b16 %v678
  %v1258 = vunpack.c.l.b16 %v679
  %v1259 = vunpack.c.h.b16 %v679
  %v1260 = vunpack.c.l.b16 %v680
  %v1261 = vunpack.c.h.b16 %v680
  %v1262 = vunpack.c.l.b16 %v681
  %v1263 = vunpack.c.h.b16 %v681
  %v1264 = vunpack.c.l.b16 %v682
  %v1265 = vunpack.c.h.b16 %v682
  %v1266 = vunpack.c.l.b16 %v683
  %v1267 = vunpack.c.h.b16 %v683
  %v1268 = vunpack.c.l.b16 %v684
  %v1269 = vunpack.c.h.b16 %v684
  %v1270 = vunpack.c.l.b16 %v685
  %v1271 = vunpack.c.h.b16 %v685
  %v1272 = vunpack.c.l.b16 %v686
  %v1273 = vunpack.c.h.b16 %v686
  %v1274 = vunpack.c.l.b16 %v687
  %v1275 = vunpack.c.h.b16 %v687
  %v1276 = vunpack.c.l.b16 %v688
  %v1277 = vunpack.c.h.b16 %v688
  %v1278 = vunpack.c.l.b16 %v689
  %v1279 = vunpack.c.h.b16 %v689
  %v1280 = vunpack.c.l.b16 %v690
  %v1281 = vunpack.c.h.b16 %v690
  %v1282 = vunpack.c.l.b16 %v691
  %v1283 = vunpack.c.h.b16 %v691
  %v1284 = vunpack.c.l.b16 %v692
  %v1285 = vunpack.c.h.b16 %v692
  %v1286 = vunpack.c.l.b16 %v693
  %v1287 = vunpack.c.h.b16 %v693
  %v1288 = vunpack.c.l.b16 %v694
  %v1289 = vunpack.c.h.b16 %v694
  %v1290 = vunpack.c.l.b16 %v695
  %v1291 = vunpack.c.h.b16 %v695
  %v1292 = vunpack.c.l.b16 %v696
  %v1293 = vunpack.c.h.b16 %v696
  %v1294 = vunpack.c.l.b16 %v697
  %v1295 = vunpack.c.h.b16 %v697
  %v1296 = vunpack.c.l.b16 %v698
  %v1297 = vunpack.c.h.b16 %v698
  %v1298 = vunpack.c.l.b16 %v699
  %v1299 = vunpack.c.h.b16 %v699
  %v1300 = vunpack.c.l.b16 %v700
  %v1301 = vunpack.c.h.b16 %v700
  %v1302 = vunpack.c.l.b16 %v701
  %v1303 = vunpack.c.h.b16 %v701
  %v1304 = vunpack.c.l.b16 %v702
  %v1305 = vunpack.c.h.b16 %v702
  %v1306 = vunpack.c.l.b16 %v703
  %v1307 = vunpack.c.h.b16 %v703
  %v1308 = vunpack.c.l.b16 %v704
  %v1309 = vunpack.c.h.b16 %v704
  %v1310 = vunpack.c.l.b16 %v705
  %v1311 = vunpack.c.h.b16 %v705
  %v1312 = vunpack.c.l.b16 %v706
  %v1313 = vunpack.c.h.b16 %v706
  %v1314 = vunpack.c.l.b16 %v707
  %v1315 = vunpack.c.h.b16 %v707
  %v1316 = vunpack.c.l.b16 %v708
  %v1317 = vunpack.c.h.b16 %v708
  %v1318 = vunpack.c.l.b16 %v709
  %v1319 = vunpack.c.h.b16 %v709
  %v1320 = vunpack.c.l.b16 %v710
  %v1321 = vunpack.c.h.b16 %v710
  %v1322 = vunpack.c.l.b16 %v711
  %v1323 = vunpack.c.h.b16 %v711
  %v1324 = vunpack.c.l.b16 %v712
  %v1325 = vunpack.c.h.b16 %v712
  %v1326 = vunpack.c.l.b16 %v713
  %v1327 = vunpack.c.h.b16 %v713
  %v1328 = vunpack.c.l.b16 %v714
  %v1329 = vunpack.c.h.b16 %v714
  %v1330 = vunpack.c.l.b16 %v715
  %v1331 = vunpack.c.h.b16 %v715
  %v1332 = vunpack.c.l.b16 %v716
  %v1333 = vunpack.c.h.b16 %v716
  %v1334 = vunpack.c.l.b16 %v717
  %v1335 = vunpack.c.h.b16 %v717
  %v1336 = vunpack.c.l.b16 %v718
  %v1337 = vunpack.c.h.b16 %v718
  %v1338 = vunpack.c.l.b16 %v719
  %v1339 = vunpack.c.h.b16 %v719
  %v1340 = vunpack.c.l.b16 %v720
  %v1341 = vunpack.c.h.b16 %v720
  %v1342 = vunpack.c.l.b16 %v721
  %v1343 = vunpack.c.h.b16 %v721
  %v1344 = vunpack.c.l.b16 %v722
  %v1345 = vunpack.c.h.b16 %v722
  %v1346 = vunpack.c.l.b16 %v723
  %v1347 = vunpack.c.h.b16 %v723
  %v1348 = vunpack.c.l.b16 %v724
  %v1349 = vunpack.c.h.b16 %v724
  %v1350 = vunpack.c.l.b16 %v725
  %v1351 = vunpack.c.h.b16 %v725
  %v1352 = vunpack.c.l.b16 %v726
  %v1353 = vunpack.c.h.b16 %v726
  %v1354 = vunpack.c.l.b16 %v727
  %v1355 = vunpack.c.h.b16 %v727
  %v1356 = vunpack.c.l.b16 %v728
  %v1357 = vunpack.c.h.b16 %v728
  %v1358 = vunpack.c.l.b16 %v729
  %v1359 = vunpack.c.h.b16 %v729
  %v1360 = vunpack.c.l.b16 %v730
  %v1361 = vunpack.c.h.b16 %v730
  %v1362 = vunpack.c.l.b16 %v731
  %v1363 = vunpack.c.h.b16 %v731
  %v1364 = vunpack.c.l.b16 %v732
  %v1365 = vunpack.c.h.b16 %v732
  %v1366 = vunpack.c.l.b16 %v733
  %v1367 = vunpack.c.h.b16 %v733
  %v1368 = vunpack.c.l.b16 %v734
  %v1369 = vunpack.c.h.b16 %v734
  %v1370 = vunpack.c.l.b16 %v735
  %v1371 = vunpack.c.h.b16 %v735
  %v1372 = vunpack.c.l.b16 %v736
  %v1373 = vunpack.c.h.b16 %v736
  %v1374 = vunpack.c.l.b16 %v737
  %v1375 = vunpack.c.h.b16 %v737
  %v1376 = vunpack.c.l.b16 %v738
  %v1377 = vunpack.c.h.b16 %v738
  %v1378 = vunpack.c.l.b16 %v739
  %v1379 = vunpack.c.h.b16 %v739
  %v1380 = vunpack.c.l.b16 %v740
  %v1381 = vunpack.c.h.b16 %v740
  %v1382 = vunpack.c.l.b16 %v741
  %v1383 = vunpack.c.h.b16 %v741
  %v1384 = vunpack.c.l.b16 %v742
  %v1385 = vunpack.c.h.b16 %v742
  %v1386 = vunpack.c.l.b16 %v743
  %v1387 = vunpack.c.h.b16 %v743
  %v1388 = vunpack.c.l.b16 %v744
  %v1389 = vunpack.c.h.b16 %v744
  %v1390 = vunpack.c.l.b16 %v745
  %v1391 = vunpack.c.h.b16 %v745
  %v1392 = vunpack.c.l.b16 %v746
  %v1393 = vunpack.c.h.b16 %v746
  %v1394 = vunpack.c.l.b16 %v747
  %v1395 = vunpack.c.h.b16 %v747
  %v1396 = vunpack.c.l.b16 %v748
  %v1397 = vunpack.c.h.b16 %v748
  %v1398 = vunpack.c.l.b16 %v749
  %v1399 = vunpack.c.h.b16 %v749
  %v1400 = vunpack.c.l.b16 %v750
  %v1401 = vunpack.c.h.b16 %v750
  %v1402 = vunpack.c.l.b16 %v751
  %v1403 = vunpack.c.h.b16 %v751
  %v1404 = vunpack.c.l.b16 %v752
  %v1405 = vunpack.c.h.b16 %v752
  %v1406 = vunpack.c.l.b16 %v753
  %v1407 = vunpack.c.h.b16 %v753
  %v1408 = vunpack.c.l.b16 %v754
  %v1409 = vunpack.c.h.b16 %v754
  %v1410 = vunpack.c.l.b16 %v755
  %v1411 = vunpack.c.h.b16 %v755
  %v1412 = vunpack.c.l.b16 %v756
  %v1413 = vunpack.c.h.b16 %v756
  %v1414 = vunpack.c.l.b16 %v757
  %v1415 = vunpack.c.h.b16 %v757
  %v1416 = vunpack.c.l.b16 %v758
  %v1417 = vunpack.c.h.b16 %v758
  %v1418 = vunpack.c.l.b16 %v759
  %v1419 = vunpack.c.h.b16 %v759
  %v1420 = vunpack.c.l.b16 %v760
  %v1421 = vunpack.c.h.b16 %v760
  %v1422 = vunpack.c.l.b16 %v761
  %v1423 = vunpack.c.h.b16 %v761
  %v1424 = vunpack.c.l.b16 %v762
  %v1425 = vunpack.c.h.b16 %v762
  %v1426 = vunpack.c.l.b16 %v763
  %v1427 = vunpack.c.h.b16 %v763
  %v1428 = vunpack.c.l.b16 %v764
  %v1429 = vunpack.c.h.b16 %v764
  %v1430 = vunpack.c.l.b16 %v765
  %v1431 = vunpack.c.h.b16 %v765
  %v1432 = vunpack.c.l.b16 %v766
  %v1433 = vunpack.c.h.b16 %v766
  %v1434 = vunpack.c.l.b16 %v767
  %v1435 = vunpack.c.h.b16 %v767
  %v1436 = vunpack.c.l.b16 %v768
  %v1437 = vunpack.c.h.b16 %v768
  %v1438 = vunpack.c.l.b16 %v769
  %v1439 = vunpack.c.h.b16 %v769
  %v1440 = vunpack.c.l.b16 %v770
  %v1441 = vunpack.c.h.b16 %v770
  %v1442 = vunpack.c.l.b16 %v771
  %v1443 = vunpack.c.h.b16 %v771
  %v1444 = vunpack.c.l.b16 %v772
  %v1445 = vunpack.c.h.b16 %v772
  %v1446 = vunpack.c.l.b16 %v773
  %v1447 = vunpack.c.h.b16 %v773
  %v1448 = vunpack.c.l.b16 %v774
  %v1449 = vunpack.c.h.b16 %v774
  %v1450 = vunpack.c.l.b16 %v775
  %v1451 = vunpack.c.h.b16 %v775
  %v1452 = vunpack.c.l.b16 %v776
  %v1453 = vunpack.c.h.b16 %v776
  %v1454 = vunpack.c.l.b16 %v777
  %v1455 = vunpack.c.h.b16 %v777
  %v1456 = vunpack.c.l.b16 %v778
  %v1457 = vunpack.c.h.b16 %v778
  %v1458 = vunpack.c.l.b16 %v779
  %v1459 = vunpack.c.h.b16 %v779
  %v1460 = vunpack.c.l.b16 %v780
  %v1461 = vunpack.c.h.b16 %v780
  %v1462 = vunpack.c.l.b16 %v781
  %v1463 = vunpack.c.h.b16 %v781
  %v1464 = vunpack.c.l.b16 %v782
  %v1465 = vunpack.c.h.b16 %v782
  %v1466 = vunpack.c.l.b16 %v783
  %v1467 = vunpack.c.h.b16 %v783
  %v1468 = vunpack.c.l.b16 %v784
  %v1469 = vunpack.c.h.b16 %v784
  %v1470 = vunpack.c.l.b16 %v785
  %v1471 = vunpack.c.h.b16 %v785
  %v1472 = vunpack.c.l.b16 %v786
  %v1473 = vunpack.c.h.b16 %v786
  %v1474 = vunpack.c.l.b16 %v787
  %v1475 = vunpack.c.h.b16 %v787
  %v1476 = vunpack.c.l.b16 %v788
  %v1477 = vunpack.c.h.b16 %v788
  %v1478 = vunpack.c.l.b16 %v789
  %v1479 = vunpack.c.h.b16 %v789
  %v1480 = vunpack.c.l.b16 %v790
  %v1481 = vunpack.c.h.b16 %v790
  %v1482 = vunpack.c.l.b16 %v791
  %v1483 = vunpack.c.h.b16 %v791
  %v1484 = vunpack.c.l.b16 %v792
  %v1485 = vunpack.c.h.b16 %v792
  %v1486 = vunpack.c.l.b16 %v793
  %v1487 = vunpack.c.h.b16 %v793
  %v1488 = vunpack.c.l.b16 %v794
  %v1489 = vunpack.c.h.b16 %v794
  %v1490 = vunpack.c.l.b16 %v795
  %v1491 = vunpack.c.h.b16 %v795
  %v1492 = vunpack.c.l.b16 %v796
  %v1493 = vunpack.c.h.b16 %v796
  %v1494 = vunpack.c.l.b16 %v797
  %v1495 = vunpack.c.h.b16 %v797
  %v1496 = vunpack.c.l.b16 %v798
  %v1497 = vunpack.c.h.b16 %v798
  %v1498 = vunpack.c.l.b16 %v799
  %v1499 = vunpack.c.h.b16 %v799
  %v1500 = vunpack.c.l.b16 %v800
  %v1501 = vunpack.c.h.b16 %v800
  %v1502 = vunpack.c.l.b16 %v801
  %v1503 = vunpack.c.h.b16 %v801
  %v1504 = vunpack.c.l.b16 %v802
  %v1505 = vunpack.c.h.b16 %v802
  %v1506 = vunpack.c.l.b16 %v803
  %v1507 = vunpack.c.h.b16 %v803
  %v1508 = vunpack.c.l.b16 %v804
  %v1509 = vunpack.c.h.b16 %v804
  %v1510 = vunpack.c.l.b16 %v805
  %v1511 = vunpack.c.h.b16 %v805
  %v1512 = vunpack.c.l.b16 %v806
  %v1513 = vunpack.c.h.b16 %v806
  %v1514 = vunpack.c.l.b16 %v807
  %v1515 = vunpack.c.h.b16 %v807
  %v1516 = vunpack.c.l.b16 %v808
  %v1517 = vunpack.c.h.b16 %v808
  %v1518 = vunpack.c.l.b16 %v809
  %v1519 = vunpack.c.h.b16 %v809
  %v1520 = vunpack.c.l.b16 %v810
  %v1521 = vunpack.c.h.b16 %v810
  %v1522 = vunpack.c.l.b16 %v811
  %v1523 = vunpack.c.h.b16 %v811
  %v1524 = vunpack.c.l.b16 %v812
  %v1525 = vunpack.c.h.b16 %v812
  %v1526 = vunpack.c.l.b16 %v813
  %v1527 = vunpack.c.h.b16 %v813
  %v1528 = vunpack.c.l.b16 %v814
  %v1529 = vunpack.c.h.b16 %v814
  %v1530 = vunpack.c.l.b16 %v815
  %v1531 = vunpack.c.h.b16 %v815
  %v1532 = vunpack.c.l.b16 %v816
  %v1533 = vunpack.c.h.b16 %v816
  %v1534 = vunpack.c.l.b16 %v817
  %v1535 = vunpack.c.h.b16 %v817
  %v1536 = vunpack.c.l.b16 %v818
  %v1537 = vunpack.c.h.b16 %v818
  %v1538 = vunpack.c.l.b16 %v819
  %v1539 = vunpack.c.h.b16 %v819
  %v1540 = vunpack.c.l.b16 %v820
  %v1541 = vunpack.c.h.b16 %v820
  %v1542 = vunpack.c.l.b16 %v821
  %v1543 = vunpack.c.h.b16 %v821
  %v1544 = vunpack.c.l.b16 %v822
  %v1545 = vunpack.c.h.b16 %v822
  %v1546 = vunpack.c.l.b16 %v823
  %v1547 = vunpack.c.h.b16 %v823
  %v1548 = vunpack.c.l.b16 %v824
  %v1549 = vunpack.c.h.b16 %v824
  %v1550 = vunpack.c.l.b16 %v825
  %v1551 = vunpack.c.h.b16 %v825
  %v1552 = vunpack.c.l.b16 %v826
  %v1553 = vunpack.c.h.b16 %v826
  %v1554 = vunpack.c.l.b16 %v827
  %v1555 = vunpack.c.h.b16 %v827
  %v1556 = vunpack.c.l.b16 %v828
  %v1557 = vunpack.c.h.b16 %v828
  %v1558 = vunpack.c.l.b16 %v829
  %v1559 = vunpack.c.h.b16 %v829
  %v1560 = vunpack.c.l.b16 %v830
  %v1561 = vunpack.c.h.b16 %v830
  %v1562 = vunpack.c.l.b16 %v831
  %v1563 = vunpack.c.h.b16 %v831
  %v1564 = vunpack.c.l.b16 %v832
  %v1565 = vunpack.c.h.b16 %v832
  %v1566 = vunpack.c.l.b16 %v833
  %v1567 = vunpack.c.h.b16 %v833
  %v1568 = vunpack.c.l.b16 %v834
  %v1569 = vunpack.c.h.b16 %v834
  %v1570 = vunpack.c.l.b16 %v835
  %v1571 = vunpack.c.h.b16 %v835
  %v1572 = vunpack.c.l.b16 %v836
  %v1573 = vunpack.c.h.b16 %v836
  %v1574 = vunpack.c.l.b16 %v837
  %v1575 = vunpack.c.h.b16 %v837
  %v1576 = vunpack.c.l.b16 %v838
  %v1577 = vunpack.c.h.b16 %v838
  %v1578 = vunpack.c.l.b16 %v839
  %v1579 = vunpack.c.h.b16 %v839
  %v1580 = vunpack.c.l.b16 %v840
  %v1581 = vunpack.c.h.b16 %v840
  %v1582 = vunpack.c.l.b16 %v841
  %v1583 = vunpack.c.h.b16 %v841
  %v1584 = vunpack.c.l.b16 %v842
  %v1585 = vunpack.c.h.b16 %v842
  %v1586 = vunpack.c.l.b16 %v843
  %v1587 = vunpack.c.h.b16 %v843
  %v1588 = vunpack.c.l.b16 %v844
  %v1589 = vunpack.c.h.b16 %v844
  %v1590 = vunpack.c.l.b16 %v845
  %v1591 = vunpack.c.h.b16 %v845
  %v1592 = vunpack.c.l.b16 %v846
  %v1593 = vunpack.c.h.b16 %v846
  %v1594 = vunpack.c.l.b16 %v847
  %v1595 = vunpack.c.h.b16 %v847
  %v1596 = vunpack.c.l.b16 %v848
  %v1597 = vunpack.c.h.b16 %v848
  %v1598 = vunpack.c.l.b16 %v849
  %v1599 = vunpack.c.h.b16 %v849
  %v1600 = vunpack.c.l.b16 %v850
  %v1601 = vunpack.c.h.b16 %v850
  %v1602 = vunpack.c.l.b16 %v851
  %v1603 = vunpack.c.h.b16 %v851
  %v1604 = vunpack.c.l.b16 %v852
  %v1605 = vunpack.c.h.b16 %v852
  %v1606 = vunpack.c.l.b16 %v853
  %v1607 = vunpack.c.h.b16 %v853
  %v1608 = vunpack.c.l.b16 %v854
  %v1609 = vunpack.c.h.b16 %v854
  %v1610 = vunpack.c.l.b16 %v855
  %v1611 = vunpack.c.h.b16 %v855
  %v1612 = vunpack.c.l.b16 %v856
  %v1613 = vunpack.c.h.b16 %v856
  %v1614 = vunpack.c.l.b16 %v857
  %v1615 = vunpack.c.h.b16 %v857
  %v1616 = vunpack.c.l.b16 %v858
  %v1617 = vunpack.c.h.b16 %v858
  %v1618 = vunpack.c.l.b16 %v859
  %v1619 = vunpack.c.h.b16 %v859
  %v1620 = vunpack.c.l.b16 %v860
  %v1621 = vunpack.c.h.b16 %v860
  %v1622 = vunpack.c.l.b16 %v861
  %v1623 = vunpack.c.h.b16 %v861
  %v1624 = vunpack.c.l.b16 %v862
  %v1625 = vunpack.c.h.b16 %v862
  %v1626 = vunpack.c.l.b16 %v863
  %v1627 = vunpack.c.h.b16 %v863
  %v1628 = vunpack.c.l.b16 %v864
  %v1629 = vunpack.c.h.b16 %v864
  %v1630 = vunpack.c.l.b16 %v865
  %v1631 = vunpack.c.h.b16 %v865
  %v1632 = vunpack.c.l.b16 %v866
  %v1633 = vunpack.c.h.b16 %v866
  %v1634 = vunpack.c.l.b16 %v867
  %v1635 = vunpack.c.h.b16 %v867
  %v1636 = vunpack.c.l.b16 %v868
  %v1637 = vunpack.c.h.b16 %v868
  %v1638 = vunpack.c.l.b16 %v869
  %v1639 = vunpack.c.h.b16 %v869
  %v1640 = vunpack.c.l.b16 %v870
  %v1641 = vunpack.c.h.b16 %v870
  %v1642 = vunpack.c.l.b16 %v871
  %v1643 = vunpack.c.h.b16 %v871
  %v1644 = vunpack.c.l.b16 %v872
  %v1645 = vunpack.c.h.b16 %v872
  %v1646 = vunpack.c.l.b16 %v873
  %v1647 = vunpack.c.h.b16 %v873
  %v1648 = vunpack.c.l.b16 %v874
  %v1649 = vunpack.c.h.b16 %v874
  %v1650 = vunpack.c.l.b16 %v875
  %v1651 = vunpack.c.h.b16 %v875
  %v1652 = vunpack.c.l.b16 %v876
  %v1653 = vunpack.c.h.b16 %v876
  %v1654 = vunpack.c.l.b16 %v877
  %v1655 = vunpack.c.h.b16 %v877
  %v1656 = vunpack.c.l.b16 %v878
  %v1657 = vunpack.c.h.b16 %v878
  %v1658 = vunpack.c.l.b16 %v879
  %v1659 = vunpack.c.h.b16 %v879
  %v1660 = vunpack.c.l.b16 %v880
  %v1661 = vunpack.c.h.b16 %v880
  %v1662 = vunpack.c.l.b16 %v881
  %v1663 = vunpack.c.h.b16 %v881
  %v1664 = vunpack.c.l.b16 %v882
  %v1665 = vunpack.c.h.b16 %v882
  %v1666 = vunpack.c.l.b16 %v883
  %v1667 = vunpack.c.h.b16 %v883
  %v1668 = vunpack.c.l.b16 %v884
  %v1669 = vunpack.c.h.b16 %v884
  %v1670 = vunpack.c.l.b16 %v885
  %v1671 = vunpack.c.h.b16 %v885
  %v1672 = vunpack.c.l.b16 %v886
  %v1673 = vunpack.c.h.b16 %v886
  %v1674 = vunpack.c.l.b16 %v887
  %v1675 = vunpack.c.h.b16 %v887
  %v1676 = vunpack.c.l.b16 %v888
  %v1677 = vunpack.c.h.b16 %v888
  %v1678 = vunpack.c.l.b16 %v889
  %v1679 = vunpack.c.h.b16 %v889
  %v1680 = vpack.c.b16 %v1172, %v1168
  %v1681 = vpack.c.b16 %v1173, %v1169
  %v1682 = vpack.c.b16 %v1174, %v1170
  %v1683 = vpack.c.b16 %v1175, %v1171
  %v1684 = vpack.c.b16 %v1180, %v1176
  %v1685 = vpack.c.b16 %v1181, %v1177
  %v1686 = vpack.c.b16 %v1182, %v1178
  %v1687 = vpack.c.b16 %v1183, %v1179
  %v1688 = vpack.c.b16 %v1188, %v1184
  %v1689 = vpack.c.b16 %v1189, %v1185
  %v1690 = vpack.c.b16 %v1190, %v1186
  %v1691 = vpack.c.b16 %v1191, %v1187
  %v1692 = vpack.c.b16 %v1196, %v1192
  %v1693 = vpack.c.b16 %v1197, %v1193
  %v1694 = vpack.c.b16 %v1198, %v1194
  %v1695 = vpack.c.b16 %v1199, %v1195
  %v1696 = vpack.c.b16 %v1204, %v1200
  %v1697 = vpack.c.b16 %v1205, %v1201
  %v1698 = vpack.c.b16 %v1206, %v1202
  %v1699 = vpack.c.b16 %v1207, %v1203
  %v1700 = vpack.c.b16 %v1212, %v1208
  %v1701 = vpack.c.b16 %v1213, %v1209
  %v1702 = vpack.c.b16 %v1214, %v1210
  %v1703 = vpack.c.b16 %v1215, %v1211
  %v1704 = vpack.c.b16 %v1220, %v1216
  %v1705 = vpack.c.b16 %v1221, %v1217
  %v1706 = vpack.c.b16 %v1222, %v1218
  %v1707 = vpack.c.b16 %v1223, %v1219
  %v1708 = vpack.c.b16 %v1228, %v1224
  %v1709 = vpack.c.b16 %v1229, %v1225
  %v1710 = vpack.c.b16 %v1230, %v1226
  %v1711 = vpack.c.b16 %v1231, %v1227
  %v1712 = vpack.c.b16 %v1236, %v1232
  %v1713 = vpack.c.b16 %v1237, %v1233
  %v1714 = vpack.c.b16 %v1238, %v1234
  %v1715 = vpack.c.b16 %v1239, %v1235
  %v1716 = vpack.c.b16 %v1244, %v1240
  %v1717 = vpack.c.b16 %v1245, %v1241
  %v1718 = vpack.c.b16 %v1246, %v1242
  %v1719 = vpack.c.b16 %v1247, %v1243
  %v1720 = vpack.c.b16 %v1252, %v1248
  %v1721 = vpack.c.b16 %v1253, %v1249
  %v1722 = vpack.c.b16 %v1254, %v1250
  %v1723 = vpack.c.b16 %v1255, %v1251
  %v1724 = vpack.c.b16 %v1260, %v1256
  %v1725 = vpack.c.b16 %v1261, %v1257
  %v1726 = vpack.c.b16 %v1262, %v1258
  %v1727 = vpack.c.b16 %v1263, %v1259
  %v1728 = vpack.c.b16 %v1268, %v1264
  %v1729 = vpack.c.b16 %v1269, %v1265
  %v1730 = vpack.c.b16 %v1270, %v1266
  %v1731 = vpack.c.b16 %v1271, %v1267
  %v1732 = vpack.c.b16 %v1276, %v1272
  %v1733 = vpack.c.b16 %v1277, %v1273
  %v1734 = vpack.c.b16 %v1278, %v1274
  %v1735 = vpack.c.b16 %v1279, %v1275
  %v1736 = vpack.c.b16 %v1284, %v1280
  %v1737 = vpack.c.b16 %v1285, %v1281
  %v1738 = vpack.c.b16 %v1286, %v1282
  %v1739 = vpack.c.b16 %v1287, %v1283
  %v1740 = vpack.c.b16 %v1292, %v1288
  %v1741 = vpack.c.b16 %v1293, %v1289
  %v1742 = vpack.c.b16 %v1294, %v1290
  %v1743 = vpack.c.b16 %v1295, %v1291
  %v1744 = vpack.c.b16 %v1300, %v1296
  %v1745 = vpack.c.b16 %v1301, %v1297
  %v1746 = vpack.c.b16 %v1302, %v1298
  %v1747 = vpack.c.b16 %v1303, %v1299
  %v1748 = vpack.c.b16 %v1308, %v1304
  %v1749 = vpack.c.b16 %v1309, %v1305
  %v1750 = vpack.c.b16 %v1310, %v1306
  %v1751 = vpack.c.b16 %v1311, %v1307
  %v1752 = vpack.c.b16 %v1316, %v1312
  %v1753 = vpack.c.b16 %v1317, %v1313
  %v1754 = vpack.c.b16 %v1318, %v1314
  %v1755 = vpack.c.b16 %v1319, %v1315
  %v1756 = vpack.c.b16 %v1324, %v1320
  %v1757 = vpack.c.b16 %v1325, %v1321
  %v1758 = vpack.c.b16 %v1326, %v1322
  %v1759 = vpack.c.b16 %v1327, %v1323
  %v1760 = vpack.c.b16 %v1332, %v1328
  %v1761 = vpack.c.b16 %v1333, %v1329
  %v1762 = vpack.c.b16 %v1334, %v1330
  %v1763 = vpack.c.b16 %v1335, %v1331
  %v1764 = vpack.c.b16 %v1340, %v1336
  %v1765 = vpack.c.b16 %v1341, %v1337
  %v1766 = vpack.c.b16 %v1342, %v1338
  %v1767 = vpack.c.b16 %v1343, %v1339
  %v1768 = vpack.c.b16 %v1348, %v1344
  %v1769 = vpack.c.b16 %v1349, %v1345
  %v1770 = vpack.c.b16 %v1350, %v1346
  %v1771 = vpack.c.b16 %v1351, %v1347
  %v1772 = vpack.c.b16 %v1356, %v1352
  %v1773 = vpack.c.b16 %v1357, %v1353
  %v1774 = vpack.c.b16 %v1358, %v1354
  %v1775 = vpack.c.b16 %v1359, %v1355
  %v1776 = vpack.c.b16 %v1364, %v1360
  %v1777 = vpack.c.b16 %v1365, %v1361
  %v1778 = vpack.c.b16 %v1366, %v1362
  %v1779 = vpack.c.b16 %v1367, %v1363
  %v1780 = vpack.c.b16 %v1372, %v1368
  %v1781 = vpack.c.b16 %v1373, %v1369
  %v1782 = vpack.c.b16 %v1374, %v1370
  %v1783 = vpack.c.b16 %v1375, %v1371
  %v1784 = vpack.c.b16 %v1380, %v1376
  %v1785 = vpack.c.b16 %v1381, %v1377
  %v1786 = vpack.c.b16 %v1382, %v1378
  %v1787 = vpack.c.b16 %v1383, %v1379
  %v1788 = vpack.c.b16 %v1388, %v1384
  %v1789 = vpack.c.b16 %v1389, %v1385
  %v1790 = vpack.c.b16 %v1390, %v1386
  %v1791 = vpack.c.b16 %v1391, %v1387
  %v1792 = vpack.c.b16 %v1396, %v1392
  %v1793 = vpack.c.b16 %v1397, %v1393
  %v1794 = vpack.c.b16 %v1398, %v1394
  %v1795 = vpack.c.b16 %v1399, %v1395
  %v1796 = vpack.c.b16 %v1404, %v1400
  %v1797 = vpack.c.b16 %v1405, %v1401
  %v1798 = vpack.c.b16 %v1406, %v1402
  %v1799 = vpack.c.b16 %v1407, %v1403
  %v1800 = vpack.c.b16 %v1412, %v1408
  %v1801 = vpack.c.b16 %v1413, %v1409
  %v1802 = vpack.c.b16 %v1414, %v1410
  %v1803 = vpack.c.b16 %v1415, %v1411
  %v1804 = vpack.c.b16 %v1420, %v1416
  %v1805 = vpack.c.b16 %v1421, %v1417
  %v1806 = vpack.c.b16 %v1422, %v1418
  %v1807 = vpack.c.b16 %v1423, %v1419
  %v1808 = vpack.c.b16 %v1428, %v1424
  %v1809 = vpack.c.b16 %v1429, %v1425
  %v1810 = vpack.c.b16 %v1430, %v1426
  %v1811 = vpack.c.b16 %v1431, %v1427
  %v1812 = vpack.c.b16 %v1436, %v1432
  %v1813 = vpack.c.b16 %v1437, %v1433
  %v1814 = vpack.c.b16 %v1438, %v1434
  %v1815 = vpack.c.b16 %v1439, %v1435
  %v1816 = vpack.c.b16 %v1444, %v1440
  %v1817 = vpack.c.b16 %v1445, %v1441
  %v1818 = vpack.c.b16 %v1446, %v1442
  %v1819 = vpack.c.b16 %v1447, %v1443
  %v1820 = vpack.c.b16 %v1452, %v1448
  %v1821 = vpack.c.b16 %v1453, %v1449
  %v1822 = vpack.c.b16 %v1454, %v1450
  %v1823 = vpack.c.b16 %v1455, %v1451
  %v1824 = vpack.c.b16 %v1460, %v1456
  %v1825 = vpack.c.b16 %v1461, %v1457
  %v1826 = vpack.c.b16 %v1462, %v1458
  %v1827 = vpack.c.b16 %v1463, %v1459
  %v1828 = vpack.c.b16 %v1468, %v1464
  %v1829 = vpack.c.b16 %v1469, %v1465
  %v1830 = vpack.c.b16 %v1470, %v1466
  %v1831 = vpack.c.b16 %v1471, %v1467
  %v1832 = vpack.c.b16 %v1476, %v1472
  %v1833 = vpack.c.b16 %v1477, %v1473
  %v1834 = vpack.c.b16 %v1478, %v1474
  %v1835 = vpack.c.b16 %v1479, %v1475
  %v1836 = vpack.c.b16 %v1484, %v1480
  %v1837 = vpack.c.b16 %v1485, %v1481
  %v1838 = vpack.c.b16 %v1486, %v1482
  %v1839 = vpack.c.b16 %v1487, %v1483
  %v1840 = vpack.c.b16 %v1492, %v1488
  %v1841 = vpack.c.b16 %v1493, %v1489
  %v1842 = vpack.c.b16 %v1494, %v1490
  %v1843 = vpack.c.b16 %v1495, %v1491
  %v1844 = vpack.c.b16 %v1500, %v1496
  %v1845 = vpack.c.b16 %v1501, %v1497
  %v1846 = vpack.c.b16 %v1502, %v1498
  %v1847 = vpack.c.b16 %v1503, %v1499
  %v1848 = vpack.c.b16 %v1508, %v1504
  %v1849 = vpack.c.b16 %v1509, %v1505
  %v1850 = vpack.c.b16 %v1510, %v1506
  %v1851 = vpack.c.b16 %v1511, %v1507
  %v1852 = vpack.c.b16 %v1516, %v1512
  %v1853 = vpack.c.b16 %v1517, %v1513
  %v1854 = vpack.c.b16 %v1518, %v1514
  %v1855 = vpack.c.b16 %v1519, %v1515
  %v1856 = vpack.c.b16 %v1524, %v1520
  %v1857 = vpack.c.b16 %v1525, %v1521
  %v1858 = vpack.c.b16 %v1526, %v1522
  %v1859 = vpack.c.b16 %v1527, %v1523
  %v1860 = vpack.c.b16 %v1532, %v1528
  %v1861 = vpack.c.b16 %v1533, %v1529
  %v1862 = vpack.c.b16 %v1534, %v1530
  %v1863 = vpack.c.b16 %v1535, %v1531
  %v1864 = vpack.c.b16 %v1540, %v1536
  %v1865 = vpack.c.b16 %v1541, %v1537
  %v1866 = vpack.c.b16 %v1542, %v1538
  %v1867 = vpack.c.b16 %v1543, %v1539
  %v1868 = vpack.c.b16 %v1548, %v1544
  %v1869 = vpack.c.b16 %v1549, %v1545
  %v1870 = vpack.c.b16 %v1550, %v1546
  %v1871 = vpack.c.b16 %v1551, %v1547
  %v1872 = vpack.c.b16 %v1556, %v1552
  %v1873 = vpack.c.b16 %v1557, %v1553
  %v1874 = vpack.c.b16 %v1558, %v1554
  %v1875 = vpack.c.b16 %v1559, %v1555
  %v1876 = vpack.c.b16 %v1564, %v1560
  %v1877 = vpack.c.b16 %v1565, %v1561
  %v1878 = vpack.c.b16 %v1566, %v1562
  %v1879 = vpack.c.b16 %v1567, %v1563
  %v1880 = vpack.c.b16 %v1572, %v1568
  %v1881 = vpack.c.b16 %v1573, %v1569
  %v1882 = vpack.c.b16 %v1574, %v1570
  %v1883 = vpack.c.b16 %v1575, %v1571
  %v1884 = vpack.c.b16 %v1580, %v1576
  %v1885 = vpack.c.b16 %v1581, %v1577
  %v1886 = vpack.c.b16 %v1582, %v1578
  %v1887 = vpack.c.b16 %v1583, %v1579
  %v1888 = vpack.c.b16 %v1588, %v1584
  %v1889 = vpack.c.b16 %v1589, %v1585
  %v1890 = vpack.c.b16 %v1590, %v1586
  %v1891 = vpack.c.b16 %v1591, %v1587
  %v1892 = vpack.c.b16 %v1596, %v1592
  %v1893 = vpack.c.b16 %v1597, %v1593
  %v1894 = vpack.c.b16 %v1598, %v1594
  %v1895 = vpack.c.b16 %v1599, %v1595
  %v1896 = vpack.c.b16 %v1604, %v1600
  %v1897 = vpack.c.b16 %v1605, %v1601
  %v1898 = vpack.c.b16 %v1606, %v1602
  %v1899 = vpack.c.b16 %v1607, %v1603
  %v1900 = vpack.c.b16 %v1612, %v1608
  %v1901 = vpack.c.b16 %v1613, %v1609
  %v1902 = vpack.c.b16 %v1614, %v1610
  %v1903 = vpack.c.b16 %v1615, %v1611
  %v1904 = vpack.c.b16 %v1620, %v1616
  %v1905 = vpack.c.b16 %v1621, %v1617
  %v1906 = vpack.c.b16 %v1622, %v1618
  %v1907 = vpack.c.b16 %v1623, %v1619
  %v1908 = vpack.c.b16 %v1628, %v1624
  %v1909 = vpack.c.b16 %v1629, %v1625
  %v1910 = vpack.c.b16 %v1630, %v1626
  %v1911 = vpack.c.b16 %v1631, %v1627
  %v1912 = vpack.c.b16 %v1636, %v1632
  %v1913 = vpack.c.b16 %v1637, %v1633
  %v1914 = vpack.c.b16 %v1638, %v1634
  %v1915 = vpack.c.b16 %v1639, %v1635
  %v1916 = vpack.c.b16 %v1644, %v1640
  %v1917 = vpack.c.b16 %v1645, %v1641
  %v1918 = vpack.c.b16 %v1646, %v1642
  %v1919 = vpack.c.b16 %v1647, %v1643
  %v1920 = vpack.c.b16 %v1652, %v1648
  %v1921 = vpack.c.b16 %v1653, %v1649
  %v1922 = vpack.c.b16 %v1654, %v1650
  %v1923 = vpack.c.b16 %v1655, %v1651
  %v1924 = vpack.c.b16 %v1660, %v1656
  %v1925 = vpack.c.b16 %v1661, %v1657
  %v1926 = vpack.c.b16 %v1662, %v1658
  %v1927 = vpack.c.b16 %v1663, %v1659
  %v1928 = vpack.c.b16 %v1668, %v1664
  %v1929 = vpack.c.b16 %v1669, %v1665
  %v1930 = vpack.c.b16 %v1670, %v1666
  %v1931 = vpack.c.b16 %v1671, %v1667
  %v1932 = vpack.c.b16 %v1676, %v1672
  %v1933 = vpack.c.b16 %v1677, %v1673
  %v1934 = vpack.c.b16 %v1678, %v1674
  %v1935 = vpack.c.b16 %v1679, %v1675
  %2192 = vmatprep.subr.bf16.mxu0 %v1681
  %2193 = vmatpush1.bf16.msra.mxu0 %v1680
  %2194 = vmatprep.subr.bf16.mxu0 %v1685
  %2195 = vmatpush1.bf16.msra.mxu0 %v1684
  %2196 = vmatprep.subr.bf16.mxu0 %v1689
  %2197 = vmatpush1.bf16.msra.mxu0 %v1688
  %2198 = vmatprep.subr.bf16.mxu0 %v1693
  %2199 = vmatpush1.bf16.msra.mxu0 %v1692
  %2200 = vmatprep.subr.bf16.mxu0 %v1697
  %2201 = vmatpush1.bf16.msra.mxu0 %v1696
  %2202 = vmatprep.subr.bf16.mxu0 %v1701
  %2203 = vmatpush1.bf16.msra.mxu0 %v1700
  %2204 = vmatprep.subr.bf16.mxu0 %v1705
  %2205 = vmatpush1.bf16.msra.mxu0 %v1704
  %2206 = vmatprep.subr.bf16.mxu0 %v1709
  %2207 = vmatpush1.bf16.msra.mxu0 %v1708
  %2208 = vmatprep.subr.bf16.mxu0 %v1713
  %2209 = vmatpush1.bf16.msra.mxu0 %v1712
  %2210 = vmatprep.subr.bf16.mxu0 %v1717
  %2211 = vmatpush1.bf16.msra.mxu0 %v1716
  %2212 = vmatprep.subr.bf16.mxu0 %v1721
  %2213 = vmatpush1.bf16.msra.mxu0 %v1720
  %2214 = vmatprep.subr.bf16.mxu0 %v1725
  %2215 = vmatpush1.bf16.msra.mxu0 %v1724
  %2216 = vmatprep.subr.bf16.mxu0 %v1729
  %2217 = vmatpush1.bf16.msra.mxu0 %v1728
  %2218 = vmatprep.subr.bf16.mxu0 %v1733
  %2219 = vmatpush1.bf16.msra.mxu0 %v1732
  %2220 = vmatprep.subr.bf16.mxu0 %v1737
  %2221 = vmatpush1.bf16.msra.mxu0 %v1736
  %2222 = vmatprep.subr.bf16.mxu0 %v1741
  %2223 = vmatpush1.bf16.msra.mxu0 %v1740
  %2224 = vmatprep.mubr.bf16.mxu0 %v627
  %2225 = vmatmul.mubr.bf16.gmra.mrb[0].mxu0 %v626
  %v2226 = vpop.f32.mrb[0].mxu0
  %v2227 = vadd.f32 %v895, %v2226
  %v2228 = vpop.f32.mrb[0].mxu0
  %v2229 = vadd.f32 %v899, %v2228
  %v2230 = vpop.f32.mrb[0].mxu0
  %v2231 = vpop.f32.mrb[0].mxu0
  %2232 = vdwg.mxu0
  %2233 = vmatprep.subr.bf16.mxu0 %v1745
  %2234 = vmatpush1.bf16.msra.mxu0 %v1744
  %2235 = vmatprep.subr.bf16.mxu0 %v1749
  %2236 = vmatpush1.bf16.msra.mxu0 %v1748
  %2237 = vmatprep.subr.bf16.mxu0 %v1753
  %2238 = vmatpush1.bf16.msra.mxu0 %v1752
  %2239 = vmatprep.subr.bf16.mxu0 %v1757
  %2240 = vmatpush1.bf16.msra.mxu0 %v1756
  %2241 = vmatprep.subr.bf16.mxu0 %v1761
  %2242 = vmatpush1.bf16.msra.mxu0 %v1760
  %2243 = vmatprep.subr.bf16.mxu0 %v1765
  %2244 = vmatpush1.bf16.msra.mxu0 %v1764
  %2245 = vmatprep.subr.bf16.mxu0 %v1769
  %2246 = vmatpush1.bf16.msra.mxu0 %v1768
  %2247 = vmatprep.subr.bf16.mxu0 %v1773
  %2248 = vmatpush1.bf16.msra.mxu0 %v1772
  %2249 = vmatprep.subr.bf16.mxu0 %v1777
  %2250 = vmatpush1.bf16.msra.mxu0 %v1776
  %2251 = vmatprep.subr.bf16.mxu0 %v1781
  %2252 = vmatpush1.bf16.msra.mxu0 %v1780
  %2253 = vmatprep.subr.bf16.mxu0 %v1785
  %2254 = vmatpush1.bf16.msra.mxu0 %v1784
  %2255 = vmatprep.subr.bf16.mxu0 %v1789
  %2256 = vmatpush1.bf16.msra.mxu0 %v1788
  %2257 = vmatprep.subr.bf16.mxu0 %v1793
  %2258 = vmatpush1.bf16.msra.mxu0 %v1792
  %2259 = vmatprep.subr.bf16.mxu0 %v1797
  %2260 = vmatpush1.bf16.msra.mxu0 %v1796
  %2261 = vmatprep.subr.bf16.mxu0 %v1801
  %2262 = vmatpush1.bf16.msra.mxu0 %v1800
  %2263 = vmatprep.subr.bf16.mxu0 %v1805
  %2264 = vmatpush1.bf16.msra.mxu0 %v1804
  %2265 = vmatprep.mubr.bf16.mxu0 %v629
  %2266 = vmatmul.mubr.bf16.gmra.mrb[0].mxu0 %v628
  %v2267 = vpop.f32.mrb[0].mxu0
  %v2268 = vadd.f32 %v2227, %v2267
  %v2269 = vpop.f32.mrb[0].mxu0
  %v2270 = vadd.f32 %v2229, %v2269
  %v2271 = vpop.f32.mrb[0].mxu0
  %v2272 = vpop.f32.mrb[0].mxu0
  %2273 = vdwg.mxu0
  %2274 = vmatprep.subr.bf16.mxu0 %v1809
  %2275 = vmatpush1.bf16.msra.mxu0 %v1808
  %2276 = vmatprep.subr.bf16.mxu0 %v1813
  %2277 = vmatpush1.bf16.msra.mxu0 %v1812
  %2278 = vmatprep.subr.bf16.mxu0 %v1817
  %2279 = vmatpush1.bf16.msra.mxu0 %v1816
  %2280 = vmatprep.subr.bf16.mxu0 %v1821
  %2281 = vmatpush1.bf16.msra.mxu0 %v1820
  %2282 = vmatprep.subr.bf16.mxu0 %v1825
  %2283 = vmatpush1.bf16.msra.mxu0 %v1824
  %2284 = vmatprep.subr.bf16.mxu0 %v1829
  %2285 = vmatpush1.bf16.msra.mxu0 %v1828
  %2286 = vmatprep.subr.bf16.mxu0 %v1833
  %2287 = vmatpush1.bf16.msra.mxu0 %v1832
  %2288 = vmatprep.subr.bf16.mxu0 %v1837
  %2289 = vmatpush1.bf16.msra.mxu0 %v1836
  %2290 = vmatprep.subr.bf16.mxu0 %v1841
  %2291 = vmatpush1.bf16.msra.mxu0 %v1840
  %2292 = vmatprep.subr.bf16.mxu0 %v1845
  %2293 = vmatpush1.bf16.msra.mxu0 %v1844
  %2294 = vmatprep.subr.bf16.mxu0 %v1849
  %2295 = vmatpush1.bf16.msra.mxu0 %v1848
  %2296 = vmatprep.subr.bf16.mxu0 %v1853
  %2297 = vmatpush1.bf16.msra.mxu0 %v1852
  %2298 = vmatprep.subr.bf16.mxu0 %v1857
  %2299 = vmatpush1.bf16.msra.mxu0 %v1856
  %2300 = vmatprep.subr.bf16.mxu0 %v1861
  %2301 = vmatpush1.bf16.msra.mxu0 %v1860
  %2302 = vmatprep.subr.bf16.mxu0 %v1865
  %2303 = vmatpush1.bf16.msra.mxu0 %v1864
  %2304 = vmatprep.subr.bf16.mxu0 %v1869
  %2305 = vmatpush1.bf16.msra.mxu0 %v1868
  %2306 = vmatprep.mubr.bf16.mxu0 %v631
  %2307 = vmatmul.mubr.bf16.gmra.mrb[0].mxu0 %v630
  %v2308 = vpop.f32.mrb[0].mxu0
  %v2309 = vadd.f32 %v2268, %v2308
  %v2310 = vpop.f32.mrb[0].mxu0
  %v2311 = vadd.f32 %v2270, %v2310
  %v2312 = vpop.f32.mrb[0].mxu0
  %v2313 = vpop.f32.mrb[0].mxu0
  %2314 = vdwg.mxu0
  %2315 = vmatprep.subr.bf16.mxu0 %v1873
  %2316 = vmatpush1.bf16.msra.mxu0 %v1872
  %2317 = vmatprep.subr.bf16.mxu0 %v1877
  %2318 = vmatpush1.bf16.msra.mxu0 %v1876
  %2319 = vmatprep.subr.bf16.mxu0 %v1881
  %2320 = vmatpush1.bf16.msra.mxu0 %v1880
  %2321 = vmatprep.subr.bf16.mxu0 %v1885
  %2322 = vmatpush1.bf16.msra.mxu0 %v1884
  %2323 = vmatprep.subr.bf16.mxu0 %v1889
  %2324 = vmatpush1.bf16.msra.mxu0 %v1888
  %2325 = vmatprep.subr.bf16.mxu0 %v1893
  %2326 = vmatpush1.bf16.msra.mxu0 %v1892
  %2327 = vmatprep.subr.bf16.mxu0 %v1897
  %2328 = vmatpush1.bf16.msra.mxu0 %v1896
  %2329 = vmatprep.subr.bf16.mxu0 %v1901
  %2330 = vmatpush1.bf16.msra.mxu0 %v1900
  %2331 = vmatprep.subr.bf16.mxu0 %v1905
  %2332 = vmatpush1.bf16.msra.mxu0 %v1904
  %2333 = vmatprep.subr.bf16.mxu0 %v1909
  %2334 = vmatpush1.bf16.msra.mxu0 %v1908
  %2335 = vmatprep.subr.bf16.mxu0 %v1913
  %2336 = vmatpush1.bf16.msra.mxu0 %v1912
  %2337 = vmatprep.subr.bf16.mxu0 %v1917
  %2338 = vmatpush1.bf16.msra.mxu0 %v1916
  %2339 = vmatprep.subr.bf16.mxu0 %v1921
  %2340 = vmatpush1.bf16.msra.mxu0 %v1920
  %2341 = vmatprep.subr.bf16.mxu0 %v1925
  %2342 = vmatpush1.bf16.msra.mxu0 %v1924
  %2343 = vmatprep.subr.bf16.mxu0 %v1929
  %2344 = vmatpush1.bf16.msra.mxu0 %v1928
  %2345 = vmatprep.subr.bf16.mxu0 %v1933
  %2346 = vmatpush1.bf16.msra.mxu0 %v1932
  %2347 = vmatprep.mubr.bf16.mxu0 %v633
  %2348 = vmatmul.mubr.bf16.gmra.mrb[0].mxu0 %v632
  %v2349 = vpop.f32.mrb[0].mxu0
  %v2350 = vadd.f32 %v2309, %v2349
  %v2351 = vpop.f32.mrb[0].mxu0
  %v2352 = vadd.f32 %v2311, %v2351
  %v2353 = vpop.f32.mrb[0].mxu0
  %v2354 = vpop.f32.mrb[0].mxu0
  %2355 = vdwg.mxu0
  %2356 = vmatprep.subr.bf16.mxu0 %v1683
  %2357 = vmatpush1.bf16.msra.mxu0 %v1682
  %2358 = vmatprep.subr.bf16.mxu0 %v1687
  %2359 = vmatpush1.bf16.msra.mxu0 %v1686
  %2360 = vmatprep.subr.bf16.mxu0 %v1691
  %2361 = vmatpush1.bf16.msra.mxu0 %v1690
  %2362 = vmatprep.subr.bf16.mxu0 %v1695
  %2363 = vmatpush1.bf16.msra.mxu0 %v1694
  %2364 = vmatprep.subr.bf16.mxu0 %v1699
  %2365 = vmatpush1.bf16.msra.mxu0 %v1698
  %2366 = vmatprep.subr.bf16.mxu0 %v1703
  %2367 = vmatpush1.bf16.msra.mxu0 %v1702
  %2368 = vmatprep.subr.bf16.mxu0 %v1707
  %2369 = vmatpush1.bf16.msra.mxu0 %v1706
  %2370 = vmatprep.subr.bf16.mxu0 %v1711
  %2371 = vmatpush1.bf16.msra.mxu0 %v1710
  %2372 = vmatprep.subr.bf16.mxu0 %v1715
  %2373 = vmatpush1.bf16.msra.mxu0 %v1714
  %2374 = vmatprep.subr.bf16.mxu0 %v1719
  %2375 = vmatpush1.bf16.msra.mxu0 %v1718
  %2376 = vmatprep.subr.bf16.mxu0 %v1723
  %2377 = vmatpush1.bf16.msra.mxu0 %v1722
  %2378 = vmatprep.subr.bf16.mxu0 %v1727
  %2379 = vmatpush1.bf16.msra.mxu0 %v1726
  %2380 = vmatprep.subr.bf16.mxu0 %v1731
  %2381 = vmatpush1.bf16.msra.mxu0 %v1730
  %2382 = vmatprep.subr.bf16.mxu0 %v1735
  %2383 = vmatpush1.bf16.msra.mxu0 %v1734
  %2384 = vmatprep.subr.bf16.mxu0 %v1739
  %2385 = vmatpush1.bf16.msra.mxu0 %v1738
  %2386 = vmatprep.subr.bf16.mxu0 %v1743
  %2387 = vmatpush1.bf16.msra.mxu0 %v1742
  %2388 = vmatprep.mubr.bf16.mxu0 %v627
  %2389 = vmatmul.mubr.bf16.gmra.mrb[0].mxu0 %v626
  %v2390 = vpop.f32.mrb[0].mxu0
  %v2391 = vadd.f32 %v903, %v2390
  %v2392 = vpop.f32.mrb[0].mxu0
  %v2393 = vadd.f32 %v907, %v2392
  %v2394 = vpop.f32.mrb[0].mxu0
  %v2395 = vpop.f32.mrb[0].mxu0
  %2396 = vdwg.mxu0
  %2397 = vmatprep.subr.bf16.mxu0 %v1747
  %2398 = vmatpush1.bf16.msra.mxu0 %v1746
  %2399 = vmatprep.subr.bf16.mxu0 %v1751
  %2400 = vmatpush1.bf16.msra.mxu0 %v1750
  %2401 = vmatprep.subr.bf16.mxu0 %v1755
  %2402 = vmatpush1.bf16.msra.mxu0 %v1754
  %2403 = vmatprep.subr.bf16.mxu0 %v1759
  %2404 = vmatpush1.bf16.msra.mxu0 %v1758
  %2405 = vmatprep.subr.bf16.mxu0 %v1763
  %2406 = vmatpush1.bf16.msra.mxu0 %v1762
  %2407 = vmatprep.subr.bf16.mxu0 %v1767
  %2408 = vmatpush1.bf16.msra.mxu0 %v1766
  %2409 = vmatprep.subr.bf16.mxu0 %v1771
  %2410 = vmatpush1.bf16.msra.mxu0 %v1770
  %2411 = vmatprep.subr.bf16.mxu0 %v1775
  %2412 = vmatpush1.bf16.msra.mxu0 %v1774
  %2413 = vmatprep.subr.bf16.mxu0 %v1779
  %2414 = vmatpush1.bf16.msra.mxu0 %v1778
  %2415 = vmatprep.subr.bf16.mxu0 %v1783
  %2416 = vmatpush1.bf16.msra.mxu0 %v1782
  %2417 = vmatprep.subr.bf16.mxu0 %v1787
  %2418 = vmatpush1.bf16.msra.mxu0 %v1786
  %2419 = vmatprep.subr.bf16.mxu0 %v1791
  %2420 = vmatpush1.bf16.msra.mxu0 %v1790
  %2421 = vmatprep.subr.bf16.mxu0 %v1795
  %2422 = vmatpush1.bf16.msra.mxu0 %v1794
  %2423 = vmatprep.subr.bf16.mxu0 %v1799
  %2424 = vmatpush1.bf16.msra.mxu0 %v1798
  %2425 = vmatprep.subr.bf16.mxu0 %v1803
  %2426 = vmatpush1.bf16.msra.mxu0 %v1802
  %2427 = vmatprep.subr.bf16.mxu0 %v1807
  %2428 = vmatpush1.bf16.msra.mxu0 %v1806
  %2429 = vmatprep.mubr.bf16.mxu0 %v629
  %2430 = vmatmul.mubr.bf16.gmra.mrb[0].mxu0 %v628
  %v2431 = vpop.f32.mrb[0].mxu0
  %v2432 = vadd.f32 %v2391, %v2431
  %v2433 = vpop.f32.mrb[0].mxu0
  %v2434 = vadd.f32 %v2393, %v2433
  %v2435 = vpop.f32.mrb[0].mxu0
  %v2436 = vpop.f32.mrb[0].mxu0
  %2437 = vdwg.mxu0
  %2438 = vmatprep.subr.bf16.mxu0 %v1811
  %2439 = vmatpush1.bf16.msra.mxu0 %v1810
  %2440 = vmatprep.subr.bf16.mxu0 %v1815
  %2441 = vmatpush1.bf16.msra.mxu0 %v1814
  %2442 = vmatprep.subr.bf16.mxu0 %v1819
  %2443 = vmatpush1.bf16.msra.mxu0 %v1818
  %2444 = vmatprep.subr.bf16.mxu0 %v1823
  %2445 = vmatpush1.bf16.msra.mxu0 %v1822
  %2446 = vmatprep.subr.bf16.mxu0 %v1827
  %2447 = vmatpush1.bf16.msra.mxu0 %v1826
  %2448 = vmatprep.subr.bf16.mxu0 %v1831
  %2449 = vmatpush1.bf16.msra.mxu0 %v1830
  %2450 = vmatprep.subr.bf16.mxu0 %v1835
  %2451 = vmatpush1.bf16.msra.mxu0 %v1834
  %2452 = vmatprep.subr.bf16.mxu0 %v1839
  %2453 = vmatpush1.bf16.msra.mxu0 %v1838
  %2454 = vmatprep.subr.bf16.mxu0 %v1843
  %2455 = vmatpush1.bf16.msra.mxu0 %v1842
  %2456 = vmatprep.subr.bf16.mxu0 %v1847
  %2457 = vmatpush1.bf16.msra.mxu0 %v1846
  %2458 = vmatprep.subr.bf16.mxu0 %v1851
  %2459 = vmatpush1.bf16.msra.mxu0 %v1850
  %2460 = vmatprep.subr.bf16.mxu0 %v1855
  %2461 = vmatpush1.bf16.msra.mxu0 %v1854
  %2462 = vmatprep.subr.bf16.mxu0 %v1859
  %2463 = vmatpush1.bf16.msra.mxu0 %v1858
  %2464 = vmatprep.subr.bf16.mxu0 %v1863
  %2465 = vmatpush1.bf16.msra.mxu0 %v1862
  %2466 = vmatprep.subr.bf16.mxu0 %v1867
  %2467 = vmatpush1.bf16.msra.mxu0 %v1866
  %2468 = vmatprep.subr.bf16.mxu0 %v1871
  %2469 = vmatpush1.bf16.msra.mxu0 %v1870
  %2470 = vmatprep.mubr.bf16.mxu0 %v631
  %2471 = vmatmul.mubr.bf16.gmra.mrb[0].mxu0 %v630
  %v2472 = vpop.f32.mrb[0].mxu0
  %v2473 = vadd.f32 %v2432, %v2472
  %v2474 = vpop.f32.mrb[0].mxu0
  %v2475 = vadd.f32 %v2434, %v2474
  %v2476 = vpop.f32.mrb[0].mxu0
  %v2477 = vpop.f32.mrb[0].mxu0
  %2478 = vdwg.mxu0
  %2479 = vmatprep.subr.bf16.mxu0 %v1875
  %2480 = vmatpush1.bf16.msra.mxu0 %v1874
  %2481 = vmatprep.subr.bf16.mxu0 %v1879
  %2482 = vmatpush1.bf16.msra.mxu0 %v1878
  %2483 = vmatprep.subr.bf16.mxu0 %v1883
  %2484 = vmatpush1.bf16.msra.mxu0 %v1882
  %2485 = vmatprep.subr.bf16.mxu0 %v1887
  %2486 = vmatpush1.bf16.msra.mxu0 %v1886
  %2487 = vmatprep.subr.bf16.mxu0 %v1891
  %2488 = vmatpush1.bf16.msra.mxu0 %v1890
  %2489 = vmatprep.subr.bf16.mxu0 %v1895
  %2490 = vmatpush1.bf16.msra.mxu0 %v1894
  %2491 = vmatprep.subr.bf16.mxu0 %v1899
  %2492 = vmatpush1.bf16.msra.mxu0 %v1898
  %2493 = vmatprep.subr.bf16.mxu0 %v1903
  %2494 = vmatpush1.bf16.msra.mxu0 %v1902
  %2495 = vmatprep.subr.bf16.mxu0 %v1907
  %2496 = vmatpush1.bf16.msra.mxu0 %v1906
  %2497 = vmatprep.subr.bf16.mxu0 %v1911
  %2498 = vmatpush1.bf16.msra.mxu0 %v1910
  %2499 = vmatprep.subr.bf16.mxu0 %v1915
  %2500 = vmatpush1.bf16.msra.mxu0 %v1914
  %2501 = vmatprep.subr.bf16.mxu0 %v1919
  %2502 = vmatpush1.bf16.msra.mxu0 %v1918
  %2503 = vmatprep.subr.bf16.mxu0 %v1923
  %2504 = vmatpush1.bf16.msra.mxu0 %v1922
  %2505 = vmatprep.subr.bf16.mxu0 %v1927
  %2506 = vmatpush1.bf16.msra.mxu0 %v1926
  %2507 = vmatprep.subr.bf16.mxu0 %v1931
  %2508 = vmatpush1.bf16.msra.mxu0 %v1930
  %2509 = vmatprep.subr.bf16.mxu0 %v1935
  %2510 = vmatpush1.bf16.msra.mxu0 %v1934
  %2511 = vmatprep.mubr.bf16.mxu0 %v633
  %2512 = vmatmul.mubr.bf16.gmra.mrb[0].mxu0 %v632
  %v2513 = vpop.f32.mrb[0].mxu0
  %v2514 = vadd.f32 %v2473, %v2513
  %v2515 = vpop.f32.mrb[0].mxu0
  %v2516 = vadd.f32 %v2475, %v2515
  %v2517 = vpop.f32.mrb[0].mxu0
  %v2518 = vpop.f32.mrb[0].mxu0
  %2519 = vdwg.mxu0
  %v2520 = vmax.f32 %v2350, 0.0
  %v2521 = vmax.f32 %v2352, 0.0
  %v2522 = vmax.f32 %v2514, 0.0
  %v2523 = vmax.f32 %v2516, 0.0
  %v2524 = vpack.c.bf16 %v2520, %v2520
  %v2525 = vpack.c.bf16 %v2521, %v2521
  %v2526 = vpack.c.bf16 %v2522, %v2522
  %v2527 = vpack.c.bf16 %v2523, %v2523
  %v2528 = vld [vmem:[%s5] sm:$0xf]
  %v2529 = vld [vmem:[%s5 + $0x4] sm:$0xf]
  %v2530 = vld [vmem:[%s5 + $0x8] sm:$0xf]
  %v2531 = vld [vmem:[%s5 + $0xc] sm:$0xf]
  %v2532 = vld [vmem:[%s5 + $0x10] sm:$0xf]
  %v2533 = vld [vmem:[%s5 + $0x14] sm:$0xf]
  %v2534 = vld [vmem:[%s5 + $0x18] sm:$0xf]
  %v2535 = vld [vmem:[%s5 + $0x1c] sm:$0xf]
  %v2536 = vld [vmem:[%s5 + $0x20] sm:$0xf]
  %v2537 = vld [vmem:[%s5 + $0x24] sm:$0xf]
  %v2538 = vld [vmem:[%s5 + $0x28] sm:$0xf]
  %v2539 = vld [vmem:[%s5 + $0x2c] sm:$0xf]
  %v2540 = vld [vmem:[%s5 + $0x30] sm:$0xf]
  %v2541 = vld [vmem:[%s5 + $0x34] sm:$0xf]
  %v2542 = vld [vmem:[%s5 + $0x38] sm:$0xf]
  %v2543 = vld [vmem:[%s5 + $0x3c] sm:$0xf]
  %v2544 = vld [vmem:[%s5 + $0x40] sm:$0xf]
  %v2545 = vld [vmem:[%s5 + $0x44] sm:$0xf]
  %v2546 = vld [vmem:[%s5 + $0x48] sm:$0xf]
  %v2547 = vld [vmem:[%s5 + $0x4c] sm:$0xf]
  %v2548 = vld [vmem:[%s5 + $0x50] sm:$0xf]
  %v2549 = vld [vmem:[%s5 + $0x54] sm:$0xf]
  %v2550 = vld [vmem:[%s5 + $0x58] sm:$0xf]
  %v2551 = vld [vmem:[%s5 + $0x5c] sm:$0xf]
  %v2552 = vld [vmem:[%s5 + $0x60] sm:$0xf]
  %v2553 = vld [vmem:[%s5 + $0x64] sm:$0xf]
  %v2554 = vld [vmem:[%s5 + $0x68] sm:$0xf]
  %v2555 = vld [vmem:[%s5 + $0x6c] sm:$0xf]
  %v2556 = vld [vmem:[%s5 + $0x70] sm:$0xf]
  %v2557 = vld [vmem:[%s5 + $0x74] sm:$0xf]
  %v2558 = vld [vmem:[%s5 + $0x78] sm:$0xf]
  %v2559 = vld [vmem:[%s5 + $0x7c] sm:$0xf]
  %v2560 = vld [vmem:[%s5 + $0x80] sm:$0xf]
  %v2561 = vld [vmem:[%s5 + $0x84] sm:$0xf]
  %v2562 = vld [vmem:[%s5 + $0x88] sm:$0xf]
  %v2563 = vld [vmem:[%s5 + $0x8c] sm:$0xf]
  %v2564 = vld [vmem:[%s5 + $0x90] sm:$0xf]
  %v2565 = vld [vmem:[%s5 + $0x94] sm:$0xf]
  %v2566 = vld [vmem:[%s5 + $0x98] sm:$0xf]
  %v2567 = vld [vmem:[%s5 + $0x9c] sm:$0xf]
  %v2568 = vld [vmem:[%s5 + $0xa0] sm:$0xf]
  %v2569 = vld [vmem:[%s5 + $0xa4] sm:$0xf]
  %v2570 = vld [vmem:[%s5 + $0xa8] sm:$0xf]
  %v2571 = vld [vmem:[%s5 + $0xac] sm:$0xf]
  %v2572 = vld [vmem:[%s5 + $0xb0] sm:$0xf]
  %v2573 = vld [vmem:[%s5 + $0xb4] sm:$0xf]
  %v2574 = vld [vmem:[%s5 + $0xb8] sm:$0xf]
  %v2575 = vld [vmem:[%s5 + $0xbc] sm:$0xf]
  %v2576 = vld [vmem:[%s5 + $0xc0] sm:$0xf]
  %v2577 = vld [vmem:[%s5 + $0xc4] sm:$0xf]
  %v2578 = vld [vmem:[%s5 + $0xc8] sm:$0xf]
  %v2579 = vld [vmem:[%s5 + $0xcc] sm:$0xf]
  %v2580 = vld [vmem:[%s5 + $0xd0] sm:$0xf]
  %v2581 = vld [vmem:[%s5 + $0xd4] sm:$0xf]
  %v2582 = vld [vmem:[%s5 + $0xd8] sm:$0xf]
  %v2583 = vld [vmem:[%s5 + $0xdc] sm:$0xf]
  %v2584 = vld [vmem:[%s5 + $0xe0] sm:$0xf]
  %v2585 = vld [vmem:[%s5 + $0xe4] sm:$0xf]
  %v2586 = vld [vmem:[%s5 + $0xe8] sm:$0xf]
  %v2587 = vld [vmem:[%s5 + $0xec] sm:$0xf]
  %v2588 = vld [vmem:[%s5 + $0xf0] sm:$0xf]
  %v2589 = vld [vmem:[%s5 + $0xf4] sm:$0xf]
  %v2590 = vld [vmem:[%s5 + $0xf8] sm:$0xf]
  %v2591 = vld [vmem:[%s5 + $0xfc] sm:$0xf]
  %v2592 = vld [vmem:[%s6] sm:$0x1]
  %v2594 = vlaneseq
  %v2595 = vshrl.u32 %v2594, 7
  %v2596 = vsub.s32 0, %v2595
  %v2597 = vrot.slane %v2592, %v2596
  %v2663 = vunpack.c.l.b16 %v2528
  %v2664 = vunpack.c.l.b16 %v2529
  %v2665 = vunpack.c.l.b16 %v2530
  %v2666 = vunpack.c.l.b16 %v2531
  %v2667 = vunpack.c.l.b16 %v2532
  %v2668 = vunpack.c.l.b16 %v2533
  %v2669 = vunpack.c.l.b16 %v2534
  %v2670 = vunpack.c.l.b16 %v2535
  %v2671 = vunpack.c.l.b16 %v2536
  %v2672 = vunpack.c.l.b16 %v2537
  %v2673 = vunpack.c.l.b16 %v2538
  %v2674 = vunpack.c.l.b16 %v2539
  %v2675 = vunpack.c.l.b16 %v2540
  %v2676 = vunpack.c.l.b16 %v2541
  %v2677 = vunpack.c.l.b16 %v2542
  %v2678 = vunpack.c.l.b16 %v2543
  %v2679 = vunpack.c.l.b16 %v2544
  %v2680 = vunpack.c.l.b16 %v2545
  %v2681 = vunpack.c.l.b16 %v2546
  %v2682 = vunpack.c.l.b16 %v2547
  %v2683 = vunpack.c.l.b16 %v2548
  %v2684 = vunpack.c.l.b16 %v2549
  %v2685 = vunpack.c.l.b16 %v2550
  %v2686 = vunpack.c.l.b16 %v2551
  %v2687 = vunpack.c.l.b16 %v2552
  %v2688 = vunpack.c.l.b16 %v2553
  %v2689 = vunpack.c.l.b16 %v2554
  %v2690 = vunpack.c.l.b16 %v2555
  %v2691 = vunpack.c.l.b16 %v2556
  %v2692 = vunpack.c.l.b16 %v2557
  %v2693 = vunpack.c.l.b16 %v2558
  %v2694 = vunpack.c.l.b16 %v2559
  %v2695 = vunpack.c.l.b16 %v2560
  %v2696 = vunpack.c.l.b16 %v2561
  %v2697 = vunpack.c.l.b16 %v2562
  %v2698 = vunpack.c.l.b16 %v2563
  %v2699 = vunpack.c.l.b16 %v2564
  %v2700 = vunpack.c.l.b16 %v2565
  %v2701 = vunpack.c.l.b16 %v2566
  %v2702 = vunpack.c.l.b16 %v2567
  %v2703 = vunpack.c.l.b16 %v2568
  %v2704 = vunpack.c.l.b16 %v2569
  %v2705 = vunpack.c.l.b16 %v2570
  %v2706 = vunpack.c.l.b16 %v2571
  %v2707 = vunpack.c.l.b16 %v2572
  %v2708 = vunpack.c.l.b16 %v2573
  %v2709 = vunpack.c.l.b16 %v2574
  %v2710 = vunpack.c.l.b16 %v2575
  %v2711 = vunpack.c.l.b16 %v2576
  %v2712 = vunpack.c.l.b16 %v2577
  %v2713 = vunpack.c.l.b16 %v2578
  %v2714 = vunpack.c.l.b16 %v2579
  %v2715 = vunpack.c.l.b16 %v2580
  %v2716 = vunpack.c.l.b16 %v2581
  %v2717 = vunpack.c.l.b16 %v2582
  %v2718 = vunpack.c.l.b16 %v2583
  %v2719 = vunpack.c.l.b16 %v2584
  %v2720 = vunpack.c.l.b16 %v2585
  %v2721 = vunpack.c.l.b16 %v2586
  %v2722 = vunpack.c.l.b16 %v2587
  %v2723 = vunpack.c.l.b16 %v2588
  %v2724 = vunpack.c.l.b16 %v2589
  %v2725 = vunpack.c.l.b16 %v2590
  %v2726 = vunpack.c.l.b16 %v2591
  %v2727 = vpack.c.b16 %v2664, %v2663
  %v2728 = vpack.c.b16 %v2666, %v2665
  %v2729 = vpack.c.b16 %v2668, %v2667
  %v2730 = vpack.c.b16 %v2670, %v2669
  %v2731 = vpack.c.b16 %v2672, %v2671
  %v2732 = vpack.c.b16 %v2674, %v2673
  %v2733 = vpack.c.b16 %v2676, %v2675
  %v2734 = vpack.c.b16 %v2678, %v2677
  %v2735 = vpack.c.b16 %v2680, %v2679
  %v2736 = vpack.c.b16 %v2682, %v2681
  %v2737 = vpack.c.b16 %v2684, %v2683
  %v2738 = vpack.c.b16 %v2686, %v2685
  %v2739 = vpack.c.b16 %v2688, %v2687
  %v2740 = vpack.c.b16 %v2690, %v2689
  %v2741 = vpack.c.b16 %v2692, %v2691
  %v2742 = vpack.c.b16 %v2694, %v2693
  %v2743 = vpack.c.b16 %v2696, %v2695
  %v2744 = vpack.c.b16 %v2698, %v2697
  %v2745 = vpack.c.b16 %v2700, %v2699
  %v2746 = vpack.c.b16 %v2702, %v2701
  %v2747 = vpack.c.b16 %v2704, %v2703
  %v2748 = vpack.c.b16 %v2706, %v2705
  %v2749 = vpack.c.b16 %v2708, %v2707
  %v2750 = vpack.c.b16 %v2710, %v2709
  %v2751 = vpack.c.b16 %v2712, %v2711
  %v2752 = vpack.c.b16 %v2714, %v2713
  %v2753 = vpack.c.b16 %v2716, %v2715
  %v2754 = vpack.c.b16 %v2718, %v2717
  %v2755 = vpack.c.b16 %v2720, %v2719
  %v2756 = vpack.c.b16 %v2722, %v2721
  %v2757 = vpack.c.b16 %v2724, %v2723
  %v2758 = vpack.c.b16 %v2726, %v2725
  %2791 = vmatprep.subr.bf16.mxu0 0
  %2792 = vmatpush1.bf16.msra.mxu0 %v2727
  %2793 = vmatprep.subr.bf16.mxu0 0
  %2794 = vmatpush1.bf16.msra.mxu0 %v2728
  %2795 = vmatprep.subr.bf16.mxu0 0
  %2796 = vmatpush1.bf16.msra.mxu0 %v2729
  %2797 = vmatprep.subr.bf16.mxu0 0
  %2798 = vmatpush1.bf16.msra.mxu0 %v2730
  %2799 = vmatprep.subr.bf16.mxu0 0
  %2800 = vmatpush1.bf16.msra.mxu0 %v2731
  %2801 = vmatprep.subr.bf16.mxu0 0
  %2802 = vmatpush1.bf16.msra.mxu0 %v2732
  %2803 = vmatprep.subr.bf16.mxu0 0
  %2804 = vmatpush1.bf16.msra.mxu0 %v2733
  %2805 = vmatprep.subr.bf16.mxu0 0
  %2806 = vmatpush1.bf16.msra.mxu0 %v2734
  %2807 = vmatprep.subr.bf16.mxu0 0
  %2808 = vmatpush1.bf16.msra.mxu0 %v2735
  %2809 = vmatprep.subr.bf16.mxu0 0
  %2810 = vmatpush1.bf16.msra.mxu0 %v2736
  %2811 = vmatprep.subr.bf16.mxu0 0
  %2812 = vmatpush1.bf16.msra.mxu0 %v2737
  %2813 = vmatprep.subr.bf16.mxu0 0
  %2814 = vmatpush1.bf16.msra.mxu0 %v2738
  %2815 = vmatprep.subr.bf16.mxu0 0
  %2816 = vmatpush1.bf16.msra.mxu0 %v2739
  %2817 = vmatprep.subr.bf16.mxu0 0
  %2818 = vmatpush1.bf16.msra.mxu0 %v2740
  %2819 = vmatprep.subr.bf16.mxu0 0
  %2820 = vmatpush1.bf16.msra.mxu0 %v2741
  %2821 = vmatprep.subr.bf16.mxu0 0
  %2822 = vmatpush1.bf16.msra.mxu0 %v2742
  %2823 = vmatprep.mubr.bf16.mxu0 %v2525
  %2824 = vmatmul.mubr.bf16.gmra.mrb[0].mxu0 %v2524
  %v2825 = vpop.f32.mrb[0].mxu0
  %v2826 = vadd.f32 %v2597, %v2825
  %v2827 = vpop.f32.mrb[0].mxu0
  %v2828 = vpop.f32.mrb[0].mxu0
  %v2829 = vpop.f32.mrb[0].mxu0
  %2830 = vdwg.mxu0
  %2831 = vmatprep.subr.bf16.mxu0 0
  %2832 = vmatpush1.bf16.msra.mxu0 %v2743
  %2833 = vmatprep.subr.bf16.mxu0 0
  %2834 = vmatpush1.bf16.msra.mxu0 %v2744
  %2835 = vmatprep.subr.bf16.mxu0 0
  %2836 = vmatpush1.bf16.msra.mxu0 %v2745
  %2837 = vmatprep.subr.bf16.mxu0 0
  %2838 = vmatpush1.bf16.msra.mxu0 %v2746
  %2839 = vmatprep.subr.bf16.mxu0 0
  %2840 = vmatpush1.bf16.msra.mxu0 %v2747
  %2841 = vmatprep.subr.bf16.mxu0 0
  %2842 = vmatpush1.bf16.msra.mxu0 %v2748
  %2843 = vmatprep.subr.bf16.mxu0 0
  %2844 = vmatpush1.bf16.msra.mxu0 %v2749
  %2845 = vmatprep.subr.bf16.mxu0 0
  %2846 = vmatpush1.bf16.msra.mxu0 %v2750
  %2847 = vmatprep.subr.bf16.mxu0 0
  %2848 = vmatpush1.bf16.msra.mxu0 %v2751
  %2849 = vmatprep.subr.bf16.mxu0 0
  %2850 = vmatpush1.bf16.msra.mxu0 %v2752
  %2851 = vmatprep.subr.bf16.mxu0 0
  %2852 = vmatpush1.bf16.msra.mxu0 %v2753
  %2853 = vmatprep.subr.bf16.mxu0 0
  %2854 = vmatpush1.bf16.msra.mxu0 %v2754
  %2855 = vmatprep.subr.bf16.mxu0 0
  %2856 = vmatpush1.bf16.msra.mxu0 %v2755
  %2857 = vmatprep.subr.bf16.mxu0 0
  %2858 = vmatpush1.bf16.msra.mxu0 %v2756
  %2859 = vmatprep.subr.bf16.mxu0 0
  %2860 = vmatpush1.bf16.msra.mxu0 %v2757
  %2861 = vmatprep.subr.bf16.mxu0 0
  %2862 = vmatpush1.bf16.msra.mxu0 %v2758
  %2863 = vmatprep.mubr.bf16.mxu0 %v2527
  %2864 = vmatmul.mubr.bf16.gmra.mrb[0].mxu0 %v2526
  %v2865 = vpop.f32.mrb[0].mxu0
  %v2866 = vadd.f32 %v2826, %v2865
  %v2867 = vpop.f32.mrb[0].mxu0
  %v2868 = vpop.f32.mrb[0].mxu0
  %v2869 = vpop.f32.mrb[0].mxu0
  %2870 = vdwg.mxu0
  %2871 = vst [vmem:[%s7] sm:$0x3] %v2866
  // Predicated region
  $region30: #{forward.7} parent=0 // pred_check
    _
  $region31: #{forward.7} parent=0 // pred_check_branch
    %2873 = sbr.rel (0) target = $region33
  $region32: #{forward.7} parent=0 // pred_region
    _
  $region33: #{forward.7} parent=0 // pred_fallthru
    _
  // Predicated region
  $region34: #{forward.7} parent=0 // pred_check
    _
  $region35: #{forward.7} parent=0 // pred_check_branch
    %2875 = sbr.rel (0) target = $region37
  $region36: #{forward.7} parent=0 // pred_region
    _
  $region37: #{forward.7} parent=0 // pred_fallthru
    _

</llo_original>
